<compile_context>
chip_gen: v7x
topology: tpu7x:2x2x1
jax: 0.10.0
libtpu: 0.0.40
codegen_flags: <defaults>
</compile_context>

<pallas_src>
import functools

import jax
import jax.numpy as jnp
from jax.experimental import pallas as pl
from jax.experimental.pallas import tpu as pltpu


def _round_up(v, m):
    return ((v + m - 1) // m) * m


def _dsa_kernel(filt_ref, a_ref, b_ref, d_ref, xp_ref, o_ref, *,
                K, dil, G, Cg, g_blk, H, W, pad):
    """One grid step: sample n, channel-block cb (= g_blk groups of Cg chans)."""
    n = pl.program_id(0)
    cb = pl.program_id(1)

    for gg in range(g_blk):                       # static, small (<= group)
        cs = gg * Cg                              # channel offset inside block
        g_abs = cb * g_blk + gg                   # absolute group index
        base = (n * G + g_abs) * (K * K)

        # Hoisted scalar reads of the K*K dynamic-filter weights (SMEM).
        ws = [filt_ref[base + t] for t in range(K * K)]

        # 9-tap weighted sum over the whole (Cg, H, W) slab.  The windows are
        # ref loads (offset vector loads), not value slices, so no per-slice
        # relayout copies are materialized.
        acc = None
        for ki in range(K):
            for kj in range(K):
                win = xp_ref[0, cs:cs + Cg,
                             ki * dil:ki * dil + H,
                             kj * dil:kj * dil + W].astype(jnp.float32)
                term = win * ws[ki * K + kj]
                acc = term if acc is None else acc + term

        # Identity plane == interior of the reflection-padded block.
        xin = xp_ref[0, cs:cs + Cg, pad:pad + H, pad:pad + W].astype(jnp.float32)

        # Per-channel affine recombination (A, B, D precomputed in wrapper):
        #   out = acc*(ia+1)*ll + x*(lh+1) - ia*ll*gap
        out = (acc * a_ref[cs:cs + Cg]
               + xin * b_ref[cs:cs + Cg]
               - d_ref[0, cs:cs + Cg])

        # TODO(synk): for W < 128 this store is lane-masked; a lane-dense
        # (N, C, H*W) output layout would speed up small feature maps further
        # but requires an in-kernel minor-dim relayout (skipped for robustness).
        o_ref[0, cs:cs + Cg] = out.astype(o_ref.dtype)


def _choose_groups_per_block(G, Cg, H, W, pad, itemsize,
                             budget_bytes=20 << 20):
    """Largest divisor of G such that double-buffered in+out blocks fit VMEM."""
    Hp, Wp = H + 2 * pad, W + 2 * pad
    in_tile = _round_up(Hp, 8) * _round_up(Wp, 128) * itemsize
    out_tile = _round_up(H, 8) * _round_up(W, 128) * itemsize
    per_group = Cg * 2 * (in_tile + out_tile)      # x2 for double buffering
    for g in range(G, 0, -1):
        if G % g == 0 and g * per_group <= budget_bytes:
            return g
    return 1


def dynamic_filter(x, conv_w, lamb_l, lamb_h, inside_all, *, K=3, dil=1, G=8):
    """Pallas implementation of DynamicFilter.forward (inference semantics)."""
    N, C, H, W = x.shape
    assert C % G == 0
    Cg = C // G
    pad = dil * (K - 1) // 2
    Hp, Wp = H + 2 * pad, W + 2 * pad

    # ---- glue (tiny per-sample vector math): ap -> 1x1 conv -> BN(eval) -> tanh
    gap = jnp.mean(x.astype(jnp.float32), axis=(2, 3))            # (N, C)
    low = gap @ conv_w.T                                          # (N, G*K*K)
    # TODO(synk): BatchNorm modeled in eval mode with default-initialized
    # running stats (mean=0, var=1, gamma=1, beta=0); train-mode batch stats
    # are not modeled.
    low = low * (1.0 / jnp.sqrt(1.0 + 1e-5))
    filt = jnp.tanh(low).reshape(-1).astype(jnp.float32)          # (N*G*K*K,)

    # Fold the per-channel recombination into an affine  out = acc*A + x*B - D.
    a_vec = ((inside_all + 1.0) * lamb_l).astype(jnp.float32).reshape(C, 1, 1)
    b_vec = (lamb_h + 1.0).astype(jnp.float32).reshape(C, 1, 1)
    d_vec = ((inside_all * lamb_l)[None, :] * gap).astype(jnp.float32)
    d_vec = d_vec.reshape(N, C, 1, 1)

    # Reflection pad (matches nn.ReflectionPad2d).
    # TODO(synk): the padded array is materialized in HBM; synthesizing the
    # 1-pixel halo in-kernel would cut HBM traffic further but needs unaligned
    # VMEM scratch stores, skipped for lowering robustness.
    xp = jnp.pad(x, ((0, 0), (0, 0), (pad, pad), (pad, pad)), mode='reflect')

    g_blk = _choose_groups_per_block(G, Cg, H, W, pad, x.dtype.itemsize)
    Cb = g_blk * Cg                    # channels per grid step
    n_cblk = G // g_blk                # channel blocks per sample

    kernel = functools.partial(_dsa_kernel, K=K, dil=dil, G=G, Cg=Cg,
                               g_blk=g_blk, H=H, W=W, pad=pad)

    out = pl.pallas_call(
        kernel,
        out_shape=jax.ShapeDtypeStruct((N, C, H, W), x.dtype),
        grid_spec=pltpu.PrefetchScalarGridSpec(
            num_scalar_prefetch=0,
            grid=(N, n_cblk),
            in_specs=[
                pl.BlockSpec(memory_space=pltpu.MemorySpace.SMEM),         # filt
                pl.BlockSpec((Cb, 1, 1), lambda n, cb: (cb, 0, 0)),        # A
                pl.BlockSpec((Cb, 1, 1), lambda n, cb: (cb, 0, 0)),        # B
                pl.BlockSpec((1, Cb, 1, 1), lambda n, cb: (n, cb, 0, 0)),  # D
                pl.BlockSpec((1, Cb, Hp, Wp), lambda n, cb: (n, cb, 0, 0)),  # padded x
            ],
            out_specs=pl.BlockSpec((1, Cb, H, W), lambda n, cb: (n, cb, 0, 0)),
        ),
        compiler_params=pltpu.CompilerParams(
            dimension_semantics=("parallel", "parallel")),
    )(filt, a_vec, b_vec, d_vec, xp)
    return out


def reference(x, conv_w, lamb_l, lamb_h, inside_all, *, K=3, dil=1, G=8):
    """Pure-JAX reference mirroring the PyTorch forward."""
    N, C, H, W = x.shape
    Cg = C // G
    gap = jnp.mean(x.astype(jnp.float32), axis=(2, 3))            # (N, C)
    low = gap @ conv_w.T
    low = low * (1.0 / jnp.sqrt(1.0 + 1e-5))
    filt = jnp.tanh(low).reshape(N, G, K * K)
    pad = dil * (K - 1) // 2
    xp = jnp.pad(x, ((0, 0), (0, 0), (pad, pad), (pad, pad)), mode='reflect')
    acc = jnp.zeros_like(x)
    for ki in range(K):
        for kj in range(K):
            shifted = xp[:, :, ki * dil:ki * dil + H, kj * dil:kj * dil + W]
            w = jnp.repeat(filt[:, :, ki * K + kj], Cg, axis=1)[:, :, None, None]
            acc = acc + shifted * w
    gap4 = gap[:, :, None, None]
    ia = inside_all[None, :, None, None]
    out_low = (acc * (ia + 1.0) - ia * gap4) * lamb_l[None, :, None, None]
    out_high = x * (lamb_h[None, :, None, None] + 1.0)
    return out_low + out_high


if __name__ == "__main__":
    N, C, H, W = 2, 16, 16, 16
    K, DIL, G = 3, 1, 8

    key = jax.random.PRNGKey(0)
    k1, k2, k3, k4, k5 = jax.random.split(key, 5)
    x = jax.random.normal(k1, (N, C, H, W), jnp.float32)

    # conv: nn.Conv2d(C, G*K*K, 1, bias=False), kaiming_normal_(fan_out, relu)
    fan_out = G * K * K
    conv_w = jax.random.normal(k2, (G * K * K, C), jnp.float32) * jnp.sqrt(2.0 / fan_out)

    # NOTE: the module initializes lamb_l / lamb_h / inside_all to zeros (which
    # makes forward(x) == x); we use small deterministic nonzero values so the
    # full compute path is actually exercised.
    lamb_l = 0.1 * jax.random.normal(k3, (C,), jnp.float32)
    lamb_h = 0.1 * jax.random.normal(k4, (C,), jnp.float32)
    inside_all = 0.1 * jax.random.normal(k5, (C,), jnp.float32)

    out = dynamic_filter(x, conv_w, lamb_l, lamb_h, inside_all, K=K, dil=DIL, G=G)
    out = jax.block_until_ready(out)

    ref = reference(x, conv_w, lamb_l, lamb_h, inside_all, K=K, dil=DIL, G=G)
    max_err = float(jnp.max(jnp.abs(out - ref)))
    assert jnp.allclose(out, ref, atol=1e-4, rtol=1e-4), max_err
    print("KERNEL_OK")
</pallas_src>

<mosaic_0001>
module attributes {stable_mosaic.version = 11 : i64} {
  func.func @_dsa_kernel(%arg0: i32, %arg1: i32, %arg2: memref<144xf32, #tpu.memory_space<smem>>, %arg3: memref<16x1x1xf32, #tpu.memory_space<vmem>>, %arg4: memref<16x1x1xf32, #tpu.memory_space<vmem>>, %arg5: memref<1x16x1x1xf32, #tpu.memory_space<vmem>>, %arg6: memref<1x16x18x18xf32, #tpu.memory_space<vmem>>, %arg7: memref<1x16x16x16xf32, #tpu.memory_space<vmem>>) attributes {dimension_semantics = [#tpu.dimension_semantics<parallel>, #tpu.dimension_semantics<parallel>], iteration_bounds = array<i64: 2, 1>, scalar_prefetch = 0 : i64, scratch_operands = 0 : i64, tpu.core_type = #tpu.core_type<tc>, window_params = [{transform_indices = @transform_0, window_bounds = array<i64: 144>}, {transform_indices = @transform_1, window_bounds = array<i64: 16, 1, 1>}, {transform_indices = @transform_2, window_bounds = array<i64: 16, 1, 1>}, {transform_indices = @transform_3, window_bounds = array<i64: 1, 16, 1, 1>}, {transform_indices = @transform_4, window_bounds = array<i64: 1, 16, 18, 18>}, {transform_indices = @transform_5, window_bounds = array<i64: 1, 16, 16, 16>}]} {
    %c8_i32 = arith.constant 8 : i32
    %0 = arith.muli %arg1, %c8_i32 : i32
    %c0_i32 = arith.constant 0 : i32
    %1 = arith.addi %0, %c0_i32 : i32
    %c8_i32_0 = arith.constant 8 : i32
    %2 = arith.muli %arg0, %c8_i32_0 : i32
    %3 = arith.addi %2, %1 : i32
    %c9_i32 = arith.constant 9 : i32
    %4 = arith.muli %3, %c9_i32 : i32
    %c0_i32_1 = arith.constant 0 : i32
    %5 = arith.addi %4, %c0_i32_1 : i32
    %6 = arith.index_cast %5 : i32 to index
    %7 = memref.load %arg2[%6] : memref<144xf32, #tpu.memory_space<smem>>
    %c1_i32 = arith.constant 1 : i32
    %8 = arith.addi %4, %c1_i32 : i32
    %9 = arith.index_cast %8 : i32 to index
    %10 = memref.load %arg2[%9] : memref<144xf32, #tpu.memory_space<smem>>
    %c2_i32 = arith.constant 2 : i32
    %11 = arith.addi %4, %c2_i32 : i32
    %12 = arith.index_cast %11 : i32 to index
    %13 = memref.load %arg2[%12] : memref<144xf32, #tpu.memory_space<smem>>
    %c3_i32 = arith.constant 3 : i32
    %14 = arith.addi %4, %c3_i32 : i32
    %15 = arith.index_cast %14 : i32 to index
    %16 = memref.load %arg2[%15] : memref<144xf32, #tpu.memory_space<smem>>
    %c4_i32 = arith.constant 4 : i32
    %17 = arith.addi %4, %c4_i32 : i32
    %18 = arith.index_cast %17 : i32 to index
    %19 = memref.load %arg2[%18] : memref<144xf32, #tpu.memory_space<smem>>
    %c5_i32 = arith.constant 5 : i32
    %20 = arith.addi %4, %c5_i32 : i32
    %21 = arith.index_cast %20 : i32 to index
    %22 = memref.load %arg2[%21] : memref<144xf32, #tpu.memory_space<smem>>
    %c6_i32 = arith.constant 6 : i32
    %23 = arith.addi %4, %c6_i32 : i32
    %24 = arith.index_cast %23 : i32 to index
    %25 = memref.load %arg2[%24] : memref<144xf32, #tpu.memory_space<smem>>
    %c7_i32 = arith.constant 7 : i32
    %26 = arith.addi %4, %c7_i32 : i32
    %27 = arith.index_cast %26 : i32 to index
    %28 = memref.load %arg2[%27] : memref<144xf32, #tpu.memory_space<smem>>
    %c8_i32_2 = arith.constant 8 : i32
    %29 = arith.addi %4, %c8_i32_2 : i32
    %30 = arith.index_cast %29 : i32 to index
    %31 = memref.load %arg2[%30] : memref<144xf32, #tpu.memory_space<smem>>
    %c0 = arith.constant 0 : index
    %c0_3 = arith.constant 0 : index
    %c0_4 = arith.constant 0 : index
    %c0_5 = arith.constant 0 : index
    %32 = vector.load %arg6[%c0, %c0_3, %c0_4, %c0_5] : memref<1x16x18x18xf32, #tpu.memory_space<vmem>>, vector<1x2x16x16xf32>
    %33 = vector.shape_cast %32 : vector<1x2x16x16xf32> to vector<2x16x16xf32>
    %34 = vector.broadcast %7 : f32 to vector<2x16x16xf32>
    %35 = arith.mulf %33, %34 : vector<2x16x16xf32>
    %c0_6 = arith.constant 0 : index
    %c0_7 = arith.constant 0 : index
    %c0_8 = arith.constant 0 : index
    %c1 = arith.constant 1 : index
    %36 = vector.load %arg6[%c0_6, %c0_7, %c0_8, %c1] : memref<1x16x18x18xf32, #tpu.memory_space<vmem>>, vector<1x2x16x16xf32>
    %37 = vector.shape_cast %36 : vector<1x2x16x16xf32> to vector<2x16x16xf32>
    %38 = vector.broadcast %10 : f32 to vector<2x16x16xf32>
    %39 = arith.mulf %37, %38 : vector<2x16x16xf32>
    %40 = arith.addf %35, %39 : vector<2x16x16xf32>
    %c0_9 = arith.constant 0 : index
    %c0_10 = arith.constant 0 : index
    %c0_11 = arith.constant 0 : index
    %c2 = arith.constant 2 : index
    %41 = vector.load %arg6[%c0_9, %c0_10, %c0_11, %c2] : memref<1x16x18x18xf32, #tpu.memory_space<vmem>>, vector<1x2x16x16xf32>
    %42 = vector.shape_cast %41 : vector<1x2x16x16xf32> to vector<2x16x16xf32>
    %43 = vector.broadcast %13 : f32 to vector<2x16x16xf32>
    %44 = arith.mulf %42, %43 : vector<2x16x16xf32>
    %45 = arith.addf %40, %44 : vector<2x16x16xf32>
    %c0_12 = arith.constant 0 : index
    %c0_13 = arith.constant 0 : index
    %c1_14 = arith.constant 1 : index
    %c0_15 = arith.constant 0 : index
    %46 = vector.load %arg6[%c0_12, %c0_13, %c1_14, %c0_15] : memref<1x16x18x18xf32, #tpu.memory_space<vmem>>, vector<1x2x16x16xf32>
    %47 = vector.shape_cast %46 : vector<1x2x16x16xf32> to vector<2x16x16xf32>
    %48 = vector.broadcast %16 : f32 to vector<2x16x16xf32>
    %49 = arith.mulf %47, %48 : vector<2x16x16xf32>
    %50 = arith.addf %45, %49 : vector<2x16x16xf32>
    %c0_16 = arith.constant 0 : index
    %c0_17 = arith.constant 0 : index
    %c1_18 = arith.constant 1 : index
    %c1_19 = arith.constant 1 : index
    %51 = vector.load %arg6[%c0_16, %c0_17, %c1_18, %c1_19] : memref<1x16x18x18xf32, #tpu.memory_space<vmem>>, vector<1x2x16x16xf32>
    %52 = vector.shape_cast %51 : vector<1x2x16x16xf32> to vector<2x16x16xf32>
    %53 = vector.broadcast %19 : f32 to vector<2x16x16xf32>
    %54 = arith.mulf %52, %53 : vector<2x16x16xf32>
    %55 = arith.addf %50, %54 : vector<2x16x16xf32>
    %c0_20 = arith.constant 0 : index
    %c0_21 = arith.constant 0 : index
    %c1_22 = arith.constant 1 : index
    %c2_23 = arith.constant 2 : index
    %56 = vector.load %arg6[%c0_20, %c0_21, %c1_22, %c2_23] : memref<1x16x18x18xf32, #tpu.memory_space<vmem>>, vector<1x2x16x16xf32>
    %57 = vector.shape_cast %56 : vector<1x2x16x16xf32> to vector<2x16x16xf32>
    %58 = vector.broadcast %22 : f32 to vector<2x16x16xf32>
    %59 = arith.mulf %57, %58 : vector<2x16x16xf32>
    %60 = arith.addf %55, %59 : vector<2x16x16xf32>
    %c0_24 = arith.constant 0 : index
    %c0_25 = arith.constant 0 : index
    %c2_26 = arith.constant 2 : index
    %c0_27 = arith.constant 0 : index
    %61 = vector.load %arg6[%c0_24, %c0_25, %c2_26, %c0_27] : memref<1x16x18x18xf32, #tpu.memory_space<vmem>>, vector<1x2x16x16xf32>
    %62 = vector.shape_cast %61 : vector<1x2x16x16xf32> to vector<2x16x16xf32>
    %63 = vector.broadcast %25 : f32 to vector<2x16x16xf32>
    %64 = arith.mulf %62, %63 : vector<2x16x16xf32>
    %65 = arith.addf %60, %64 : vector<2x16x16xf32>
    %c0_28 = arith.constant 0 : index
    %c0_29 = arith.constant 0 : index
    %c2_30 = arith.constant 2 : index
    %c1_31 = arith.constant 1 : index
    %66 = vector.load %arg6[%c0_28, %c0_29, %c2_30, %c1_31] : memref<1x16x18x18xf32, #tpu.memory_space<vmem>>, vector<1x2x16x16xf32>
    %67 = vector.shape_cast %66 : vector<1x2x16x16xf32> to vector<2x16x16xf32>
    %68 = vector.broadcast %28 : f32 to vector<2x16x16xf32>
    %69 = arith.mulf %67, %68 : vector<2x16x16xf32>
    %70 = arith.addf %65, %69 : vector<2x16x16xf32>
    %c0_32 = arith.constant 0 : index
    %c0_33 = arith.constant 0 : index
    %c2_34 = arith.constant 2 : index
    %c2_35 = arith.constant 2 : index
    %71 = vector.load %arg6[%c0_32, %c0_33, %c2_34, %c2_35] : memref<1x16x18x18xf32, #tpu.memory_space<vmem>>, vector<1x2x16x16xf32>
    %72 = vector.shape_cast %71 : vector<1x2x16x16xf32> to vector<2x16x16xf32>
    %73 = vector.broadcast %31 : f32 to vector<2x16x16xf32>
    %74 = arith.mulf %72, %73 : vector<2x16x16xf32>
    %75 = arith.addf %70, %74 : vector<2x16x16xf32>
    %c0_36 = arith.constant 0 : index
    %c0_37 = arith.constant 0 : index
    %c1_38 = arith.constant 1 : index
    %c1_39 = arith.constant 1 : index
    %76 = vector.load %arg6[%c0_36, %c0_37, %c1_38, %c1_39] : memref<1x16x18x18xf32, #tpu.memory_space<vmem>>, vector<1x2x16x16xf32>
    %77 = vector.shape_cast %76 : vector<1x2x16x16xf32> to vector<2x16x16xf32>
    %c0_40 = arith.constant 0 : index
    %c0_41 = arith.constant 0 : index
    %c0_42 = arith.constant 0 : index
    %78 = vector.load %arg3[%c0_40, %c0_41, %c0_42] : memref<16x1x1xf32, #tpu.memory_space<vmem>>, vector<2x1x1xf32>
    %79 = vector.broadcast %78 : vector<2x1x1xf32> to vector<2x16x16xf32>
    %80 = arith.mulf %75, %79 : vector<2x16x16xf32>
    %c0_43 = arith.constant 0 : index
    %c0_44 = arith.constant 0 : index
    %c0_45 = arith.constant 0 : index
    %81 = vector.load %arg4[%c0_43, %c0_44, %c0_45] : memref<16x1x1xf32, #tpu.memory_space<vmem>>, vector<2x1x1xf32>
    %82 = vector.broadcast %81 : vector<2x1x1xf32> to vector<2x16x16xf32>
    %83 = arith.mulf %77, %82 : vector<2x16x16xf32>
    %84 = arith.addf %80, %83 : vector<2x16x16xf32>
    %c0_46 = arith.constant 0 : index
    %c0_47 = arith.constant 0 : index
    %c0_48 = arith.constant 0 : index
    %c0_49 = arith.constant 0 : index
    %85 = vector.load %arg5[%c0_46, %c0_47, %c0_48, %c0_49] : memref<1x16x1x1xf32, #tpu.memory_space<vmem>>, vector<1x2x1x1xf32>
    %86 = vector.shape_cast %85 : vector<1x2x1x1xf32> to vector<2x1x1xf32>
    %87 = vector.broadcast %86 : vector<2x1x1xf32> to vector<2x16x16xf32>
    %88 = arith.subf %84, %87 : vector<2x16x16xf32>
    %c0_50 = arith.constant 0 : index
    %c0_51 = arith.constant 0 : index
    %c0_52 = arith.constant 0 : index
    %c0_53 = arith.constant 0 : index
    %89 = vector.load %arg7[%c0_50, %c0_51, %c0_52, %c0_53] : memref<1x16x16x16xf32, #tpu.memory_space<vmem>>, vector<1x2x16x16xf32>
    %90 = vector.shape_cast %89 : vector<1x2x16x16xf32> to vector<2x16x16xf32>
    %91 = vector.shape_cast %88 : vector<2x16x16xf32> to vector<1x2x16x16xf32>
    tpu.vector_store %arg7[%c0_50, %c0_51, %c0_52, %c0_53], %91 {strides = array<i32>} : memref<1x16x16x16xf32, #tpu.memory_space<vmem>>, vector<1x2x16x16xf32>,
    %c8_i32_54 = arith.constant 8 : i32
    %92 = arith.muli %arg1, %c8_i32_54 : i32
    %c1_i32_55 = arith.constant 1 : i32
    %93 = arith.addi %92, %c1_i32_55 : i32
    %c8_i32_56 = arith.constant 8 : i32
    %94 = arith.muli %arg0, %c8_i32_56 : i32
    %95 = arith.addi %94, %93 : i32
    %c9_i32_57 = arith.constant 9 : i32
    %96 = arith.muli %95, %c9_i32_57 : i32
    %c0_i32_58 = arith.constant 0 : i32
    %97 = arith.addi %96, %c0_i32_58 : i32
    %98 = arith.index_cast %97 : i32 to index
    %99 = memref.load %arg2[%98] : memref<144xf32, #tpu.memory_space<smem>>
    %c1_i32_59 = arith.constant 1 : i32
    %100 = arith.addi %96, %c1_i32_59 : i32
    %101 = arith.index_cast %100 : i32 to index
    %102 = memref.load %arg2[%101] : memref<144xf32, #tpu.memory_space<smem>>
    %c2_i32_60 = arith.constant 2 : i32
    %103 = arith.addi %96, %c2_i32_60 : i32
    %104 = arith.index_cast %103 : i32 to index
    %105 = memref.load %arg2[%104] : memref<144xf32, #tpu.memory_space<smem>>
    %c3_i32_61 = arith.constant 3 : i32
    %106 = arith.addi %96, %c3_i32_61 : i32
    %107 = arith.index_cast %106 : i32 to index
    %108 = memref.load %arg2[%107] : memref<144xf32, #tpu.memory_space<smem>>
    %c4_i32_62 = arith.constant 4 : i32
    %109 = arith.addi %96, %c4_i32_62 : i32
    %110 = arith.index_cast %109 : i32 to index
    %111 = memref.load %arg2[%110] : memref<144xf32, #tpu.memory_space<smem>>
    %c5_i32_63 = arith.constant 5 : i32
    %112 = arith.addi %96, %c5_i32_63 : i32
    %113 = arith.index_cast %112 : i32 to index
    %114 = memref.load %arg2[%113] : memref<144xf32, #tpu.memory_space<smem>>
    %c6_i32_64 = arith.constant 6 : i32
    %115 = arith.addi %96, %c6_i32_64 : i32
    %116 = arith.index_cast %115 : i32 to index
    %117 = memref.load %arg2[%116] : memref<144xf32, #tpu.memory_space<smem>>
    %c7_i32_65 = arith.constant 7 : i32
    %118 = arith.addi %96, %c7_i32_65 : i32
    %119 = arith.index_cast %118 : i32 to index
    %120 = memref.load %arg2[%119] : memref<144xf32, #tpu.memory_space<smem>>
    %c8_i32_66 = arith.constant 8 : i32
    %121 = arith.addi %96, %c8_i32_66 : i32
    %122 = arith.index_cast %121 : i32 to index
    %123 = memref.load %arg2[%122] : memref<144xf32, #tpu.memory_space<smem>>
    %c0_67 = arith.constant 0 : index
    %c2_68 = arith.constant 2 : index
    %c0_69 = arith.constant 0 : index
    %c0_70 = arith.constant 0 : index
    %124 = vector.load %arg6[%c0_67, %c2_68, %c0_69, %c0_70] : memref<1x16x18x18xf32, #tpu.memory_space<vmem>>, vector<1x2x16x16xf32>
    %125 = vector.shape_cast %124 : vector<1x2x16x16xf32> to vector<2x16x16xf32>
    %126 = vector.broadcast %99 : f32 to vector<2x16x16xf32>
    %127 = arith.mulf %125, %126 : vector<2x16x16xf32>
    %c0_71 = arith.constant 0 : index
    %c2_72 = arith.constant 2 : index
    %c0_73 = arith.constant 0 : index
    %c1_74 = arith.constant 1 : index
    %128 = vector.load %arg6[%c0_71, %c2_72, %c0_73, %c1_74] : memref<1x16x18x18xf32, #tpu.memory_space<vmem>>, vector<1x2x16x16xf32>
    %129 = vector.shape_cast %128 : vector<1x2x16x16xf32> to vector<2x16x16xf32>
    %130 = vector.broadcast %102 : f32 to vector<2x16x16xf32>
    %131 = arith.mulf %129, %130 : vector<2x16x16xf32>
    %132 = arith.addf %127, %131 : vector<2x16x16xf32>
    %c0_75 = arith.constant 0 : index
    %c2_76 = arith.constant 2 : index
    %c0_77 = arith.constant 0 : index
    %c2_78 = arith.constant 2 : index
    %133 = vector.load %arg6[%c0_75, %c2_76, %c0_77, %c2_78] : memref<1x16x18x18xf32, #tpu.memory_space<vmem>>, vector<1x2x16x16xf32>
    %134 = vector.shape_cast %133 : vector<1x2x16x16xf32> to vector<2x16x16xf32>
    %135 = vector.broadcast %105 : f32 to vector<2x16x16xf32>
    %136 = arith.mulf %134, %135 : vector<2x16x16xf32>
    %137 = arith.addf %132, %136 : vector<2x16x16xf32>
    %c0_79 = arith.constant 0 : index
    %c2_80 = arith.constant 2 : index
    %c1_81 = arith.constant 1 : index
    %c0_82 = arith.constant 0 : index
    %138 = vector.load %arg6[%c0_79, %c2_80, %c1_81, %c0_82] : memref<1x16x18x18xf32, #tpu.memory_space<vmem>>, vector<1x2x16x16xf32>
    %139 = vector.shape_cast %138 : vector<1x2x16x16xf32> to vector<2x16x16xf32>
    %140 = vector.broadcast %108 : f32 to vector<2x16x16xf32>
    %141 = arith.mulf %139, %140 : vector<2x16x16xf32>
    %142 = arith.addf %137, %141 : vector<2x16x16xf32>
    %c0_83 = arith.constant 0 : index
    %c2_84 = arith.constant 2 : index
    %c1_85 = arith.constant 1 : index
    %c1_86 = arith.constant 1 : index
    %143 = vector.load %arg6[%c0_83, %c2_84, %c1_85, %c1_86] : memref<1x16x18x18xf32, #tpu.memory_space<vmem>>, vector<1x2x16x16xf32>
    %144 = vector.shape_cast %143 : vector<1x2x16x16xf32> to vector<2x16x16xf32>
    %145 = vector.broadcast %111 : f32 to vector<2x16x16xf32>
    %146 = arith.mulf %144, %145 : vector<2x16x16xf32>
    %147 = arith.addf %142, %146 : vector<2x16x16xf32>
    %c0_87 = arith.constant 0 : index
    %c2_88 = arith.constant 2 : index
    %c1_89 = arith.constant 1 : index
    %c2_90 = arith.constant 2 : index
    %148 = vector.load %arg6[%c0_87, %c2_88, %c1_89, %c2_90] : memref<1x16x18x18xf32, #tpu.memory_space<vmem>>, vector<1x2x16x16xf32>
    %149 = vector.shape_cast %148 : vector<1x2x16x16xf32> to vector<2x16x16xf32>
    %150 = vector.broadcast %114 : f32 to vector<2x16x16xf32>
    %151 = arith.mulf %149, %150 : vector<2x16x16xf32>
    %152 = arith.addf %147, %151 : vector<2x16x16xf32>
    %c0_91 = arith.constant 0 : index
    %c2_92 = arith.constant 2 : index
    %c2_93 = arith.constant 2 : index
    %c0_94 = arith.constant 0 : index
    %153 = vector.load %arg6[%c0_91, %c2_92, %c2_93, %c0_94] : memref<1x16x18x18xf32, #tpu.memory_space<vmem>>, vector<1x2x16x16xf32>
    %154 = vector.shape_cast %153 : vector<1x2x16x16xf32> to vector<2x16x16xf32>
    %155 = vector.broadcast %117 : f32 to vector<2x16x16xf32>
    %156 = arith.mulf %154, %155 : vector<2x16x16xf32>
    %157 = arith.addf %152, %156 : vector<2x16x16xf32>
    %c0_95 = arith.constant 0 : index
    %c2_96 = arith.constant 2 : index
    %c2_97 = arith.constant 2 : index
    %c1_98 = arith.constant 1 : index
    %158 = vector.load %arg6[%c0_95, %c2_96, %c2_97, %c1_98] : memref<1x16x18x18xf32, #tpu.memory_space<vmem>>, vector<1x2x16x16xf32>
    %159 = vector.shape_cast %158 : vector<1x2x16x16xf32> to vector<2x16x16xf32>
    %160 = vector.broadcast %120 : f32 to vector<2x16x16xf32>
    %161 = arith.mulf %159, %160 : vector<2x16x16xf32>
    %162 = arith.addf %157, %161 : vector<2x16x16xf32>
    %c0_99 = arith.constant 0 : index
    %c2_100 = arith.constant 2 : index
    %c2_101 = arith.constant 2 : index
    %c2_102 = arith.constant 2 : index
    %163 = vector.load %arg6[%c0_99, %c2_100, %c2_101, %c2_102] : memref<1x16x18x18xf32, #tpu.memory_space<vmem>>, vector<1x2x16x16xf32>
    %164 = vector.shape_cast %163 : vector<1x2x16x16xf32> to vector<2x16x16xf32>
    %165 = vector.broadcast %123 : f32 to vector<2x16x16xf32>
    %166 = arith.mulf %164, %165 : vector<2x16x16xf32>
    %167 = arith.addf %162, %166 : vector<2x16x16xf32>
    %c0_103 = arith.constant 0 : index
    %c2_104 = arith.constant 2 : index
    %c1_105 = arith.constant 1 : index
    %c1_106 = arith.constant 1 : index
    %168 = vector.load %arg6[%c0_103, %c2_104, %c1_105, %c1_106] : memref<1x16x18x18xf32, #tpu.memory_space<vmem>>, vector<1x2x16x16xf32>
    %169 = vector.shape_cast %168 : vector<1x2x16x16xf32> to vector<2x16x16xf32>
    %c2_107 = arith.constant 2 : index
    %c0_108 = arith.constant 0 : index
    %c0_109 = arith.constant 0 : index
    %170 = vector.load %arg3[%c2_107, %c0_108, %c0_109] : memref<16x1x1xf32, #tpu.memory_space<vmem>>, vector<2x1x1xf32>
    %171 = vector.broadcast %170 : vector<2x1x1xf32> to vector<2x16x16xf32>
    %172 = arith.mulf %167, %171 : vector<2x16x16xf32>
    %c2_110 = arith.constant 2 : index
    %c0_111 = arith.constant 0 : index
    %c0_112 = arith.constant 0 : index
    %173 = vector.load %arg4[%c2_110, %c0_111, %c0_112] : memref<16x1x1xf32, #tpu.memory_space<vmem>>, vector<2x1x1xf32>
    %174 = vector.broadcast %173 : vector<2x1x1xf32> to vector<2x16x16xf32>
    %175 = arith.mulf %169, %174 : vector<2x16x16xf32>
    %176 = arith.addf %172, %175 : vector<2x16x16xf32>
    %c0_113 = arith.constant 0 : index
    %c2_114 = arith.constant 2 : index
    %c0_115 = arith.constant 0 : index
    %c0_116 = arith.constant 0 : index
    %177 = vector.load %arg5[%c0_113, %c2_114, %c0_115, %c0_116] : memref<1x16x1x1xf32, #tpu.memory_space<vmem>>, vector<1x2x1x1xf32>
    %178 = vector.shape_cast %177 : vector<1x2x1x1xf32> to vector<2x1x1xf32>
    %179 = vector.broadcast %178 : vector<2x1x1xf32> to vector<2x16x16xf32>
    %180 = arith.subf %176, %179 : vector<2x16x16xf32>
    %c0_117 = arith.constant 0 : index
    %c2_118 = arith.constant 2 : index
    %c0_119 = arith.constant 0 : index
    %c0_120 = arith.constant 0 : index
    %181 = vector.load %arg7[%c0_117, %c2_118, %c0_119, %c0_120] : memref<1x16x16x16xf32, #tpu.memory_space<vmem>>, vector<1x2x16x16xf32>
    %182 = vector.shape_cast %181 : vector<1x2x16x16xf32> to vector<2x16x16xf32>
    %183 = vector.shape_cast %180 : vector<2x16x16xf32> to vector<1x2x16x16xf32>
    tpu.vector_store %arg7[%c0_117, %c2_118, %c0_119, %c0_120], %183 {strides = array<i32>} : memref<1x16x16x16xf32, #tpu.memory_space<vmem>>, vector<1x2x16x16xf32>,
    %c8_i32_121 = arith.constant 8 : i32
    %184 = arith.muli %arg1, %c8_i32_121 : i32
    %c2_i32_122 = arith.constant 2 : i32
    %185 = arith.addi %184, %c2_i32_122 : i32
    %c8_i32_123 = arith.constant 8 : i32
    %186 = arith.muli %arg0, %c8_i32_123 : i32
    %187 = arith.addi %186, %185 : i32
    %c9_i32_124 = arith.constant 9 : i32
    %188 = arith.muli %187, %c9_i32_124 : i32
    %c0_i32_125 = arith.constant 0 : i32
    %189 = arith.addi %188, %c0_i32_125 : i32
    %190 = arith.index_cast %189 : i32 to index
    %191 = memref.load %arg2[%190] : memref<144xf32, #tpu.memory_space<smem>>
    %c1_i32_126 = arith.constant 1 : i32
    %192 = arith.addi %188, %c1_i32_126 : i32
    %193 = arith.index_cast %192 : i32 to index
    %194 = memref.load %arg2[%193] : memref<144xf32, #tpu.memory_space<smem>>
    %c2_i32_127 = arith.constant 2 : i32
    %195 = arith.addi %188, %c2_i32_127 : i32
    %196 = arith.index_cast %195 : i32 to index
    %197 = memref.load %arg2[%196] : memref<144xf32, #tpu.memory_space<smem>>
    %c3_i32_128 = arith.constant 3 : i32
    %198 = arith.addi %188, %c3_i32_128 : i32
    %199 = arith.index_cast %198 : i32 to index
    %200 = memref.load %arg2[%199] : memref<144xf32, #tpu.memory_space<smem>>
    %c4_i32_129 = arith.constant 4 : i32
    %201 = arith.addi %188, %c4_i32_129 : i32
    %202 = arith.index_cast %201 : i32 to index
    %203 = memref.load %arg2[%202] : memref<144xf32, #tpu.memory_space<smem>>
    %c5_i32_130 = arith.constant 5 : i32
    %204 = arith.addi %188, %c5_i32_130 : i32
    %205 = arith.index_cast %204 : i32 to index
    %206 = memref.load %arg2[%205] : memref<144xf32, #tpu.memory_space<smem>>
    %c6_i32_131 = arith.constant 6 : i32
    %207 = arith.addi %188, %c6_i32_131 : i32
    %208 = arith.index_cast %207 : i32 to index
    %209 = memref.load %arg2[%208] : memref<144xf32, #tpu.memory_space<smem>>
    %c7_i32_132 = arith.constant 7 : i32
    %210 = arith.addi %188, %c7_i32_132 : i32
    %211 = arith.index_cast %210 : i32 to index
    %212 = memref.load %arg2[%211] : memref<144xf32, #tpu.memory_space<smem>>
    %c8_i32_133 = arith.constant 8 : i32
    %213 = arith.addi %188, %c8_i32_133 : i32
    %214 = arith.index_cast %213 : i32 to index
    %215 = memref.load %arg2[%214] : memref<144xf32, #tpu.memory_space<smem>>
    %c0_134 = arith.constant 0 : index
    %c4 = arith.constant 4 : index
    %c0_135 = arith.constant 0 : index
    %c0_136 = arith.constant 0 : index
    %216 = vector.load %arg6[%c0_134, %c4, %c0_135, %c0_136] : memref<1x16x18x18xf32, #tpu.memory_space<vmem>>, vector<1x2x16x16xf32>
    %217 = vector.shape_cast %216 : vector<1x2x16x16xf32> to vector<2x16x16xf32>
    %218 = vector.broadcast %191 : f32 to vector<2x16x16xf32>
    %219 = arith.mulf %217, %218 : vector<2x16x16xf32>
    %c0_137 = arith.constant 0 : index
    %c4_138 = arith.constant 4 : index
    %c0_139 = arith.constant 0 : index
    %c1_140 = arith.constant 1 : index
    %220 = vector.load %arg6[%c0_137, %c4_138, %c0_139, %c1_140] : memref<1x16x18x18xf32, #tpu.memory_space<vmem>>, vector<1x2x16x16xf32>
    %221 = vector.shape_cast %220 : vector<1x2x16x16xf32> to vector<2x16x16xf32>
    %222 = vector.broadcast %194 : f32 to vector<2x16x16xf32>
    %223 = arith.mulf %221, %222 : vector<2x16x16xf32>
    %224 = arith.addf %219, %223 : vector<2x16x16xf32>
    %c0_141 = arith.constant 0 : index
    %c4_142 = arith.constant 4 : index
    %c0_143 = arith.constant 0 : index
    %c2_144 = arith.constant 2 : index
    %225 = vector.load %arg6[%c0_141, %c4_142, %c0_143, %c2_144] : memref<1x16x18x18xf32, #tpu.memory_space<vmem>>, vector<1x2x16x16xf32>
    %226 = vector.shape_cast %225 : vector<1x2x16x16xf32> to vector<2x16x16xf32>
    %227 = vector.broadcast %197 : f32 to vector<2x16x16xf32>
    %228 = arith.mulf %226, %227 : vector<2x16x16xf32>
    %229 = arith.addf %224, %228 : vector<2x16x16xf32>
    %c0_145 = arith.constant 0 : index
    %c4_146 = arith.constant 4 : index
    %c1_147 = arith.constant 1 : index
    %c0_148 = arith.constant 0 : index
    %230 = vector.load %arg6[%c0_145, %c4_146, %c1_147, %c0_148] : memref<1x16x18x18xf32, #tpu.memory_space<vmem>>, vector<1x2x16x16xf32>
    %231 = vector.shape_cast %230 : vector<1x2x16x16xf32> to vector<2x16x16xf32>
    %232 = vector.broadcast %200 : f32 to vector<2x16x16xf32>
    %233 = arith.mulf %231, %232 : vector<2x16x16xf32>
    %234 = arith.addf %229, %233 : vector<2x16x16xf32>
    %c0_149 = arith.constant 0 : index
    %c4_150 = arith.constant 4 : index
    %c1_151 = arith.constant 1 : index
    %c1_152 = arith.constant 1 : index
    %235 = vector.load %arg6[%c0_149, %c4_150, %c1_151, %c1_152] : memref<1x16x18x18xf32, #tpu.memory_space<vmem>>, vector<1x2x16x16xf32>
    %236 = vector.shape_cast %235 : vector<1x2x16x16xf32> to vector<2x16x16xf32>
    %237 = vector.broadcast %203 : f32 to vector<2x16x16xf32>
    %238 = arith.mulf %236, %237 : vector<2x16x16xf32>
    %239 = arith.addf %234, %238 : vector<2x16x16xf32>
    %c0_153 = arith.constant 0 : index
    %c4_154 = arith.constant 4 : index
    %c1_155 = arith.constant 1 : index
    %c2_156 = arith.constant 2 : index
    %240 = vector.load %arg6[%c0_153, %c4_154, %c1_155, %c2_156] : memref<1x16x18x18xf32, #tpu.memory_space<vmem>>, vector<1x2x16x16xf32>
    %241 = vector.shape_cast %240 : vector<1x2x16x16xf32> to vector<2x16x16xf32>
    %242 = vector.broadcast %206 : f32 to vector<2x16x16xf32>
    %243 = arith.mulf %241, %242 : vector<2x16x16xf32>
    %244 = arith.addf %239, %243 : vector<2x16x16xf32>
    %c0_157 = arith.constant 0 : index
    %c4_158 = arith.constant 4 : index
    %c2_159 = arith.constant 2 : index
    %c0_160 = arith.constant 0 : index
    %245 = vector.load %arg6[%c0_157, %c4_158, %c2_159, %c0_160] : memref<1x16x18x18xf32, #tpu.memory_space<vmem>>, vector<1x2x16x16xf32>
    %246 = vector.shape_cast %245 : vector<1x2x16x16xf32> to vector<2x16x16xf32>
    %247 = vector.broadcast %209 : f32 to vector<2x16x16xf32>
    %248 = arith.mulf %246, %247 : vector<2x16x16xf32>
    %249 = arith.addf %244, %248 : vector<2x16x16xf32>
    %c0_161 = arith.constant 0 : index
    %c4_162 = arith.constant 4 : index
    %c2_163 = arith.constant 2 : index
    %c1_164 = arith.constant 1 : index
    %250 = vector.load %arg6[%c0_161, %c4_162, %c2_163, %c1_164] : memref<1x16x18x18xf32, #tpu.memory_space<vmem>>, vector<1x2x16x16xf32>
    %251 = vector.shape_cast %250 : vector<1x2x16x16xf32> to vector<2x16x16xf32>
    %252 = vector.broadcast %212 : f32 to vector<2x16x16xf32>
    %253 = arith.mulf %251, %252 : vector<2x16x16xf32>
    %254 = arith.addf %249, %253 : vector<2x16x16xf32>
    %c0_165 = arith.constant 0 : index
    %c4_166 = arith.constant 4 : index
    %c2_167 = arith.constant 2 : index
    %c2_168 = arith.constant 2 : index
    %255 = vector.load %arg6[%c0_165, %c4_166, %c2_167, %c2_168] : memref<1x16x18x18xf32, #tpu.memory_space<vmem>>, vector<1x2x16x16xf32>
    %256 = vector.shape_cast %255 : vector<1x2x16x16xf32> to vector<2x16x16xf32>
    %257 = vector.broadcast %215 : f32 to vector<2x16x16xf32>
    %258 = arith.mulf %256, %257 : vector<2x16x16xf32>
    %259 = arith.addf %254, %258 : vector<2x16x16xf32>
    %c0_169 = arith.constant 0 : index
    %c4_170 = arith.constant 4 : index
    %c1_171 = arith.constant 1 : index
    %c1_172 = arith.constant 1 : index
    %260 = vector.load %arg6[%c0_169, %c4_170, %c1_171, %c1_172] : memref<1x16x18x18xf32, #tpu.memory_space<vmem>>, vector<1x2x16x16xf32>
    %261 = vector.shape_cast %260 : vector<1x2x16x16xf32> to vector<2x16x16xf32>
    %c4_173 = arith.constant 4 : index
    %c0_174 = arith.constant 0 : index
    %c0_175 = arith.constant 0 : index
    %262 = vector.load %arg3[%c4_173, %c0_174, %c0_175] : memref<16x1x1xf32, #tpu.memory_space<vmem>>, vector<2x1x1xf32>
    %263 = vector.broadcast %262 : vector<2x1x1xf32> to vector<2x16x16xf32>
    %264 = arith.mulf %259, %263 : vector<2x16x16xf32>
    %c4_176 = arith.constant 4 : index
    %c0_177 = arith.constant 0 : index
    %c0_178 = arith.constant 0 : index
    %265 = vector.load %arg4[%c4_176, %c0_177, %c0_178] : memref<16x1x1xf32, #tpu.memory_space<vmem>>, vector<2x1x1xf32>
    %266 = vector.broadcast %265 : vector<2x1x1xf32> to vector<2x16x16xf32>
    %267 = arith.mulf %261, %266 : vector<2x16x16xf32>
    %268 = arith.addf %264, %267 : vector<2x16x16xf32>
    %c0_179 = arith.constant 0 : index
    %c4_180 = arith.constant 4 : index
    %c0_181 = arith.constant 0 : index
    %c0_182 = arith.constant 0 : index
    %269 = vector.load %arg5[%c0_179, %c4_180, %c0_181, %c0_182] : memref<1x16x1x1xf32, #tpu.memory_space<vmem>>, vector<1x2x1x1xf32>
    %270 = vector.shape_cast %269 : vector<1x2x1x1xf32> to vector<2x1x1xf32>
    %271 = vector.broadcast %270 : vector<2x1x1xf32> to vector<2x16x16xf32>
    %272 = arith.subf %268, %271 : vector<2x16x16xf32>
    %c0_183 = arith.constant 0 : index
    %c4_184 = arith.constant 4 : index
    %c0_185 = arith.constant 0 : index
    %c0_186 = arith.constant 0 : index
    %273 = vector.load %arg7[%c0_183, %c4_184, %c0_185, %c0_186] : memref<1x16x16x16xf32, #tpu.memory_space<vmem>>, vector<1x2x16x16xf32>
    %274 = vector.shape_cast %273 : vector<1x2x16x16xf32> to vector<2x16x16xf32>
    %275 = vector.shape_cast %272 : vector<2x16x16xf32> to vector<1x2x16x16xf32>
    tpu.vector_store %arg7[%c0_183, %c4_184, %c0_185, %c0_186], %275 {strides = array<i32>} : memref<1x16x16x16xf32, #tpu.memory_space<vmem>>, vector<1x2x16x16xf32>,
    %c8_i32_187 = arith.constant 8 : i32
    %276 = arith.muli %arg1, %c8_i32_187 : i32
    %c3_i32_188 = arith.constant 3 : i32
    %277 = arith.addi %276, %c3_i32_188 : i32
    %c8_i32_189 = arith.constant 8 : i32
    %278 = arith.muli %arg0, %c8_i32_189 : i32
    %279 = arith.addi %278, %277 : i32
    %c9_i32_190 = arith.constant 9 : i32
    %280 = arith.muli %279, %c9_i32_190 : i32
    %c0_i32_191 = arith.constant 0 : i32
    %281 = arith.addi %280, %c0_i32_191 : i32
    %282 = arith.index_cast %281 : i32 to index
    %283 = memref.load %arg2[%282] : memref<144xf32, #tpu.memory_space<smem>>
    %c1_i32_192 = arith.constant 1 : i32
    %284 = arith.addi %280, %c1_i32_192 : i32
    %285 = arith.index_cast %284 : i32 to index
    %286 = memref.load %arg2[%285] : memref<144xf32, #tpu.memory_space<smem>>
    %c2_i32_193 = arith.constant 2 : i32
    %287 = arith.addi %280, %c2_i32_193 : i32
    %288 = arith.index_cast %287 : i32 to index
    %289 = memref.load %arg2[%288] : memref<144xf32, #tpu.memory_space<smem>>
    %c3_i32_194 = arith.constant 3 : i32
    %290 = arith.addi %280, %c3_i32_194 : i32
    %291 = arith.index_cast %290 : i32 to index
    %292 = memref.load %arg2[%291] : memref<144xf32, #tpu.memory_space<smem>>
    %c4_i32_195 = arith.constant 4 : i32
    %293 = arith.addi %280, %c4_i32_195 : i32
    %294 = arith.index_cast %293 : i32 to index
    %295 = memref.load %arg2[%294] : memref<144xf32, #tpu.memory_space<smem>>
    %c5_i32_196 = arith.constant 5 : i32
    %296 = arith.addi %280, %c5_i32_196 : i32
    %297 = arith.index_cast %296 : i32 to index
    %298 = memref.load %arg2[%297] : memref<144xf32, #tpu.memory_space<smem>>
    %c6_i32_197 = arith.constant 6 : i32
    %299 = arith.addi %280, %c6_i32_197 : i32
    %300 = arith.index_cast %299 : i32 to index
    %301 = memref.load %arg2[%300] : memref<144xf32, #tpu.memory_space<smem>>
    %c7_i32_198 = arith.constant 7 : i32
    %302 = arith.addi %280, %c7_i32_198 : i32
    %303 = arith.index_cast %302 : i32 to index
    %304 = memref.load %arg2[%303] : memref<144xf32, #tpu.memory_space<smem>>
    %c8_i32_199 = arith.constant 8 : i32
    %305 = arith.addi %280, %c8_i32_199 : i32
    %306 = arith.index_cast %305 : i32 to index
    %307 = memref.load %arg2[%306] : memref<144xf32, #tpu.memory_space<smem>>
    %c0_200 = arith.constant 0 : index
    %c6 = arith.constant 6 : index
    %c0_201 = arith.constant 0 : index
    %c0_202 = arith.constant 0 : index
    %308 = vector.load %arg6[%c0_200, %c6, %c0_201, %c0_202] : memref<1x16x18x18xf32, #tpu.memory_space<vmem>>, vector<1x2x16x16xf32>
    %309 = vector.shape_cast %308 : vector<1x2x16x16xf32> to vector<2x16x16xf32>
    %310 = vector.broadcast %283 : f32 to vector<2x16x16xf32>
    %311 = arith.mulf %309, %310 : vector<2x16x16xf32>
    %c0_203 = arith.constant 0 : index
    %c6_204 = arith.constant 6 : index
    %c0_205 = arith.constant 0 : index
    %c1_206 = arith.constant 1 : index
    %312 = vector.load %arg6[%c0_203, %c6_204, %c0_205, %c1_206] : memref<1x16x18x18xf32, #tpu.memory_space<vmem>>, vector<1x2x16x16xf32>
    %313 = vector.shape_cast %312 : vector<1x2x16x16xf32> to vector<2x16x16xf32>
    %314 = vector.broadcast %286 : f32 to vector<2x16x16xf32>
    %315 = arith.mulf %313, %314 : vector<2x16x16xf32>
    %316 = arith.addf %311, %315 : vector<2x16x16xf32>
    %c0_207 = arith.constant 0 : index
    %c6_208 = arith.constant 6 : index
    %c0_209 = arith.constant 0 : index
    %c2_210 = arith.constant 2 : index
    %317 = vector.load %arg6[%c0_207, %c6_208, %c0_209, %c2_210] : memref<1x16x18x18xf32, #tpu.memory_space<vmem>>, vector<1x2x16x16xf32>
    %318 = vector.shape_cast %317 : vector<1x2x16x16xf32> to vector<2x16x16xf32>
    %319 = vector.broadcast %289 : f32 to vector<2x16x16xf32>
    %320 = arith.mulf %318, %319 : vector<2x16x16xf32>
    %321 = arith.addf %316, %320 : vector<2x16x16xf32>
    %c0_211 = arith.constant 0 : index
    %c6_212 = arith.constant 6 : index
    %c1_213 = arith.constant 1 : index
    %c0_214 = arith.constant 0 : index
    %322 = vector.load %arg6[%c0_211, %c6_212, %c1_213, %c0_214] : memref<1x16x18x18xf32, #tpu.memory_space<vmem>>, vector<1x2x16x16xf32>
    %323 = vector.shape_cast %322 : vector<1x2x16x16xf32> to vector<2x16x16xf32>
    %324 = vector.broadcast %292 : f32 to vector<2x16x16xf32>
    %325 = arith.mulf %323, %324 : vector<2x16x16xf32>
    %326 = arith.addf %321, %325 : vector<2x16x16xf32>
    %c0_215 = arith.constant 0 : index
    %c6_216 = arith.constant 6 : index
    %c1_217 = arith.constant 1 : index
    %c1_218 = arith.constant 1 : index
    %327 = vector.load %arg6[%c0_215, %c6_216, %c1_217, %c1_218] : memref<1x16x18x18xf32, #tpu.memory_space<vmem>>, vector<1x2x16x16xf32>
    %328 = vector.shape_cast %327 : vector<1x2x16x16xf32> to vector<2x16x16xf32>
    %329 = vector.broadcast %295 : f32 to vector<2x16x16xf32>
    %330 = arith.mulf %328, %329 : vector<2x16x16xf32>
    %331 = arith.addf %326, %330 : vector<2x16x16xf32>
    %c0_219 = arith.constant 0 : index
    %c6_220 = arith.constant 6 : index
    %c1_221 = arith.constant 1 : index
    %c2_222 = arith.constant 2 : index
    %332 = vector.load %arg6[%c0_219, %c6_220, %c1_221, %c2_222] : memref<1x16x18x18xf32, #tpu.memory_space<vmem>>, vector<1x2x16x16xf32>
    %333 = vector.shape_cast %332 : vector<1x2x16x16xf32> to vector<2x16x16xf32>
    %334 = vector.broadcast %298 : f32 to vector<2x16x16xf32>
    %335 = arith.mulf %333, %334 : vector<2x16x16xf32>
    %336 = arith.addf %331, %335 : vector<2x16x16xf32>
    %c0_223 = arith.constant 0 : index
    %c6_224 = arith.constant 6 : index
    %c2_225 = arith.constant 2 : index
    %c0_226 = arith.constant 0 : index
    %337 = vector.load %arg6[%c0_223, %c6_224, %c2_225, %c0_226] : memref<1x16x18x18xf32, #tpu.memory_space<vmem>>, vector<1x2x16x16xf32>
    %338 = vector.shape_cast %337 : vector<1x2x16x16xf32> to vector<2x16x16xf32>
    %339 = vector.broadcast %301 : f32 to vector<2x16x16xf32>
    %340 = arith.mulf %338, %339 : vector<2x16x16xf32>
    %341 = arith.addf %336, %340 : vector<2x16x16xf32>
    %c0_227 = arith.constant 0 : index
    %c6_228 = arith.constant 6 : index
    %c2_229 = arith.constant 2 : index
    %c1_230 = arith.constant 1 : index
    %342 = vector.load %arg6[%c0_227, %c6_228, %c2_229, %c1_230] : memref<1x16x18x18xf32, #tpu.memory_space<vmem>>, vector<1x2x16x16xf32>
    %343 = vector.shape_cast %342 : vector<1x2x16x16xf32> to vector<2x16x16xf32>
    %344 = vector.broadcast %304 : f32 to vector<2x16x16xf32>
    %345 = arith.mulf %343, %344 : vector<2x16x16xf32>
    %346 = arith.addf %341, %345 : vector<2x16x16xf32>
    %c0_231 = arith.constant 0 : index
    %c6_232 = arith.constant 6 : index
    %c2_233 = arith.constant 2 : index
    %c2_234 = arith.constant 2 : index
    %347 = vector.load %arg6[%c0_231, %c6_232, %c2_233, %c2_234] : memref<1x16x18x18xf32, #tpu.memory_space<vmem>>, vector<1x2x16x16xf32>
    %348 = vector.shape_cast %347 : vector<1x2x16x16xf32> to vector<2x16x16xf32>
    %349 = vector.broadcast %307 : f32 to vector<2x16x16xf32>
    %350 = arith.mulf %348, %349 : vector<2x16x16xf32>
    %351 = arith.addf %346, %350 : vector<2x16x16xf32>
    %c0_235 = arith.constant 0 : index
    %c6_236 = arith.constant 6 : index
    %c1_237 = arith.constant 1 : index
    %c1_238 = arith.constant 1 : index
    %352 = vector.load %arg6[%c0_235, %c6_236, %c1_237, %c1_238] : memref<1x16x18x18xf32, #tpu.memory_space<vmem>>, vector<1x2x16x16xf32>
    %353 = vector.shape_cast %352 : vector<1x2x16x16xf32> to vector<2x16x16xf32>
    %c6_239 = arith.constant 6 : index
    %c0_240 = arith.constant 0 : index
    %c0_241 = arith.constant 0 : index
    %354 = vector.load %arg3[%c6_239, %c0_240, %c0_241] : memref<16x1x1xf32, #tpu.memory_space<vmem>>, vector<2x1x1xf32>
    %355 = vector.broadcast %354 : vector<2x1x1xf32> to vector<2x16x16xf32>
    %356 = arith.mulf %351, %355 : vector<2x16x16xf32>
    %c6_242 = arith.constant 6 : index
    %c0_243 = arith.constant 0 : index
    %c0_244 = arith.constant 0 : index
    %357 = vector.load %arg4[%c6_242, %c0_243, %c0_244] : memref<16x1x1xf32, #tpu.memory_space<vmem>>, vector<2x1x1xf32>
    %358 = vector.broadcast %357 : vector<2x1x1xf32> to vector<2x16x16xf32>
    %359 = arith.mulf %353, %358 : vector<2x16x16xf32>
    %360 = arith.addf %356, %359 : vector<2x16x16xf32>
    %c0_245 = arith.constant 0 : index
    %c6_246 = arith.constant 6 : index
    %c0_247 = arith.constant 0 : index
    %c0_248 = arith.constant 0 : index
    %361 = vector.load %arg5[%c0_245, %c6_246, %c0_247, %c0_248] : memref<1x16x1x1xf32, #tpu.memory_space<vmem>>, vector<1x2x1x1xf32>
    %362 = vector.shape_cast %361 : vector<1x2x1x1xf32> to vector<2x1x1xf32>
    %363 = vector.broadcast %362 : vector<2x1x1xf32> to vector<2x16x16xf32>
    %364 = arith.subf %360, %363 : vector<2x16x16xf32>
    %c0_249 = arith.constant 0 : index
    %c6_250 = arith.constant 6 : index
    %c0_251 = arith.constant 0 : index
    %c0_252 = arith.constant 0 : index
    %365 = vector.load %arg7[%c0_249, %c6_250, %c0_251, %c0_252] : memref<1x16x16x16xf32, #tpu.memory_space<vmem>>, vector<1x2x16x16xf32>
    %366 = vector.shape_cast %365 : vector<1x2x16x16xf32> to vector<2x16x16xf32>
    %367 = vector.shape_cast %364 : vector<2x16x16xf32> to vector<1x2x16x16xf32>
    tpu.vector_store %arg7[%c0_249, %c6_250, %c0_251, %c0_252], %367 {strides = array<i32>} : memref<1x16x16x16xf32, #tpu.memory_space<vmem>>, vector<1x2x16x16xf32>,
    %c8_i32_253 = arith.constant 8 : i32
    %368 = arith.muli %arg1, %c8_i32_253 : i32
    %c4_i32_254 = arith.constant 4 : i32
    %369 = arith.addi %368, %c4_i32_254 : i32
    %c8_i32_255 = arith.constant 8 : i32
    %370 = arith.muli %arg0, %c8_i32_255 : i32
    %371 = arith.addi %370, %369 : i32
    %c9_i32_256 = arith.constant 9 : i32
    %372 = arith.muli %371, %c9_i32_256 : i32
    %c0_i32_257 = arith.constant 0 : i32
    %373 = arith.addi %372, %c0_i32_257 : i32
    %374 = arith.index_cast %373 : i32 to index
    %375 = memref.load %arg2[%374] : memref<144xf32, #tpu.memory_space<smem>>
    %c1_i32_258 = arith.constant 1 : i32
    %376 = arith.addi %372, %c1_i32_258 : i32
    %377 = arith.index_cast %376 : i32 to index
    %378 = memref.load %arg2[%377] : memref<144xf32, #tpu.memory_space<smem>>
    %c2_i32_259 = arith.constant 2 : i32
    %379 = arith.addi %372, %c2_i32_259 : i32
    %380 = arith.index_cast %379 : i32 to index
    %381 = memref.load %arg2[%380] : memref<144xf32, #tpu.memory_space<smem>>
    %c3_i32_260 = arith.constant 3 : i32
    %382 = arith.addi %372, %c3_i32_260 : i32
    %383 = arith.index_cast %382 : i32 to index
    %384 = memref.load %arg2[%383] : memref<144xf32, #tpu.memory_space<smem>>
    %c4_i32_261 = arith.constant 4 : i32
    %385 = arith.addi %372, %c4_i32_261 : i32
    %386 = arith.index_cast %385 : i32 to index
    %387 = memref.load %arg2[%386] : memref<144xf32, #tpu.memory_space<smem>>
    %c5_i32_262 = arith.constant 5 : i32
    %388 = arith.addi %372, %c5_i32_262 : i32
    %389 = arith.index_cast %388 : i32 to index
    %390 = memref.load %arg2[%389] : memref<144xf32, #tpu.memory_space<smem>>
    %c6_i32_263 = arith.constant 6 : i32
    %391 = arith.addi %372, %c6_i32_263 : i32
    %392 = arith.index_cast %391 : i32 to index
    %393 = memref.load %arg2[%392] : memref<144xf32, #tpu.memory_space<smem>>
    %c7_i32_264 = arith.constant 7 : i32
    %394 = arith.addi %372, %c7_i32_264 : i32
    %395 = arith.index_cast %394 : i32 to index
    %396 = memref.load %arg2[%395] : memref<144xf32, #tpu.memory_space<smem>>
    %c8_i32_265 = arith.constant 8 : i32
    %397 = arith.addi %372, %c8_i32_265 : i32
    %398 = arith.index_cast %397 : i32 to index
    %399 = memref.load %arg2[%398] : memref<144xf32, #tpu.memory_space<smem>>
    %c0_266 = arith.constant 0 : index
    %c8 = arith.constant 8 : index
    %c0_267 = arith.constant 0 : index
    %c0_268 = arith.constant 0 : index
    %400 = vector.load %arg6[%c0_266, %c8, %c0_267, %c0_268] : memref<1x16x18x18xf32, #tpu.memory_space<vmem>>, vector<1x2x16x16xf32>
    %401 = vector.shape_cast %400 : vector<1x2x16x16xf32> to vector<2x16x16xf32>
    %402 = vector.broadcast %375 : f32 to vector<2x16x16xf32>
    %403 = arith.mulf %401, %402 : vector<2x16x16xf32>
    %c0_269 = arith.constant 0 : index
    %c8_270 = arith.constant 8 : index
    %c0_271 = arith.constant 0 : index
    %c1_272 = arith.constant 1 : index
    %404 = vector.load %arg6[%c0_269, %c8_270, %c0_271, %c1_272] : memref<1x16x18x18xf32, #tpu.memory_space<vmem>>, vector<1x2x16x16xf32>
    %405 = vector.shape_cast %404 : vector<1x2x16x16xf32> to vector<2x16x16xf32>
    %406 = vector.broadcast %378 : f32 to vector<2x16x16xf32>
    %407 = arith.mulf %405, %406 : vector<2x16x16xf32>
    %408 = arith.addf %403, %407 : vector<2x16x16xf32>
    %c0_273 = arith.constant 0 : index
    %c8_274 = arith.constant 8 : index
    %c0_275 = arith.constant 0 : index
    %c2_276 = arith.constant 2 : index
    %409 = vector.load %arg6[%c0_273, %c8_274, %c0_275, %c2_276] : memref<1x16x18x18xf32, #tpu.memory_space<vmem>>, vector<1x2x16x16xf32>
    %410 = vector.shape_cast %409 : vector<1x2x16x16xf32> to vector<2x16x16xf32>
    %411 = vector.broadcast %381 : f32 to vector<2x16x16xf32>
    %412 = arith.mulf %410, %411 : vector<2x16x16xf32>
    %413 = arith.addf %408, %412 : vector<2x16x16xf32>
    %c0_277 = arith.constant 0 : index
    %c8_278 = arith.constant 8 : index
    %c1_279 = arith.constant 1 : index
    %c0_280 = arith.constant 0 : index
    %414 = vector.load %arg6[%c0_277, %c8_278, %c1_279, %c0_280] : memref<1x16x18x18xf32, #tpu.memory_space<vmem>>, vector<1x2x16x16xf32>
    %415 = vector.shape_cast %414 : vector<1x2x16x16xf32> to vector<2x16x16xf32>
    %416 = vector.broadcast %384 : f32 to vector<2x16x16xf32>
    %417 = arith.mulf %415, %416 : vector<2x16x16xf32>
    %418 = arith.addf %413, %417 : vector<2x16x16xf32>
    %c0_281 = arith.constant 0 : index
    %c8_282 = arith.constant 8 : index
    %c1_283 = arith.constant 1 : index
    %c1_284 = arith.constant 1 : index
    %419 = vector.load %arg6[%c0_281, %c8_282, %c1_283, %c1_284] : memref<1x16x18x18xf32, #tpu.memory_space<vmem>>, vector<1x2x16x16xf32>
    %420 = vector.shape_cast %419 : vector<1x2x16x16xf32> to vector<2x16x16xf32>
    %421 = vector.broadcast %387 : f32 to vector<2x16x16xf32>
    %422 = arith.mulf %420, %421 : vector<2x16x16xf32>
    %423 = arith.addf %418, %422 : vector<2x16x16xf32>
    %c0_285 = arith.constant 0 : index
    %c8_286 = arith.constant 8 : index
    %c1_287 = arith.constant 1 : index
    %c2_288 = arith.constant 2 : index
    %424 = vector.load %arg6[%c0_285, %c8_286, %c1_287, %c2_288] : memref<1x16x18x18xf32, #tpu.memory_space<vmem>>, vector<1x2x16x16xf32>
    %425 = vector.shape_cast %424 : vector<1x2x16x16xf32> to vector<2x16x16xf32>
    %426 = vector.broadcast %390 : f32 to vector<2x16x16xf32>
    %427 = arith.mulf %425, %426 : vector<2x16x16xf32>
    %428 = arith.addf %423, %427 : vector<2x16x16xf32>
    %c0_289 = arith.constant 0 : index
    %c8_290 = arith.constant 8 : index
    %c2_291 = arith.constant 2 : index
    %c0_292 = arith.constant 0 : index
    %429 = vector.load %arg6[%c0_289, %c8_290, %c2_291, %c0_292] : memref<1x16x18x18xf32, #tpu.memory_space<vmem>>, vector<1x2x16x16xf32>
    %430 = vector.shape_cast %429 : vector<1x2x16x16xf32> to vector<2x16x16xf32>
    %431 = vector.broadcast %393 : f32 to vector<2x16x16xf32>
    %432 = arith.mulf %430, %431 : vector<2x16x16xf32>
    %433 = arith.addf %428, %432 : vector<2x16x16xf32>
    %c0_293 = arith.constant 0 : index
    %c8_294 = arith.constant 8 : index
    %c2_295 = arith.constant 2 : index
    %c1_296 = arith.constant 1 : index
    %434 = vector.load %arg6[%c0_293, %c8_294, %c2_295, %c1_296] : memref<1x16x18x18xf32, #tpu.memory_space<vmem>>, vector<1x2x16x16xf32>
    %435 = vector.shape_cast %434 : vector<1x2x16x16xf32> to vector<2x16x16xf32>
    %436 = vector.broadcast %396 : f32 to vector<2x16x16xf32>
    %437 = arith.mulf %435, %436 : vector<2x16x16xf32>
    %438 = arith.addf %433, %437 : vector<2x16x16xf32>
    %c0_297 = arith.constant 0 : index
    %c8_298 = arith.constant 8 : index
    %c2_299 = arith.constant 2 : index
    %c2_300 = arith.constant 2 : index
    %439 = vector.load %arg6[%c0_297, %c8_298, %c2_299, %c2_300] : memref<1x16x18x18xf32, #tpu.memory_space<vmem>>, vector<1x2x16x16xf32>
    %440 = vector.shape_cast %439 : vector<1x2x16x16xf32> to vector<2x16x16xf32>
    %441 = vector.broadcast %399 : f32 to vector<2x16x16xf32>
    %442 = arith.mulf %440, %441 : vector<2x16x16xf32>
    %443 = arith.addf %438, %442 : vector<2x16x16xf32>
    %c0_301 = arith.constant 0 : index
    %c8_302 = arith.constant 8 : index
    %c1_303 = arith.constant 1 : index
    %c1_304 = arith.constant 1 : index
    %444 = vector.load %arg6[%c0_301, %c8_302, %c1_303, %c1_304] : memref<1x16x18x18xf32, #tpu.memory_space<vmem>>, vector<1x2x16x16xf32>
    %445 = vector.shape_cast %444 : vector<1x2x16x16xf32> to vector<2x16x16xf32>
    %c8_305 = arith.constant 8 : index
    %c0_306 = arith.constant 0 : index
    %c0_307 = arith.constant 0 : index
    %446 = vector.load %arg3[%c8_305, %c0_306, %c0_307] : memref<16x1x1xf32, #tpu.memory_space<vmem>>, vector<2x1x1xf32>
    %447 = vector.broadcast %446 : vector<2x1x1xf32> to vector<2x16x16xf32>
    %448 = arith.mulf %443, %447 : vector<2x16x16xf32>
    %c8_308 = arith.constant 8 : index
    %c0_309 = arith.constant 0 : index
    %c0_310 = arith.constant 0 : index
    %449 = vector.load %arg4[%c8_308, %c0_309, %c0_310] : memref<16x1x1xf32, #tpu.memory_space<vmem>>, vector<2x1x1xf32>
    %450 = vector.broadcast %449 : vector<2x1x1xf32> to vector<2x16x16xf32>
    %451 = arith.mulf %445, %450 : vector<2x16x16xf32>
    %452 = arith.addf %448, %451 : vector<2x16x16xf32>
    %c0_311 = arith.constant 0 : index
    %c8_312 = arith.constant 8 : index
    %c0_313 = arith.constant 0 : index
    %c0_314 = arith.constant 0 : index
    %453 = vector.load %arg5[%c0_311, %c8_312, %c0_313, %c0_314] : memref<1x16x1x1xf32, #tpu.memory_space<vmem>>, vector<1x2x1x1xf32>
    %454 = vector.shape_cast %453 : vector<1x2x1x1xf32> to vector<2x1x1xf32>
    %455 = vector.broadcast %454 : vector<2x1x1xf32> to vector<2x16x16xf32>
    %456 = arith.subf %452, %455 : vector<2x16x16xf32>
    %c0_315 = arith.constant 0 : index
    %c8_316 = arith.constant 8 : index
    %c0_317 = arith.constant 0 : index
    %c0_318 = arith.constant 0 : index
    %457 = vector.load %arg7[%c0_315, %c8_316, %c0_317, %c0_318] : memref<1x16x16x16xf32, #tpu.memory_space<vmem>>, vector<1x2x16x16xf32>
    %458 = vector.shape_cast %457 : vector<1x2x16x16xf32> to vector<2x16x16xf32>
    %459 = vector.shape_cast %456 : vector<2x16x16xf32> to vector<1x2x16x16xf32>
    tpu.vector_store %arg7[%c0_315, %c8_316, %c0_317, %c0_318], %459 {strides = array<i32>} : memref<1x16x16x16xf32, #tpu.memory_space<vmem>>, vector<1x2x16x16xf32>,
    %c8_i32_319 = arith.constant 8 : i32
    %460 = arith.muli %arg1, %c8_i32_319 : i32
    %c5_i32_320 = arith.constant 5 : i32
    %461 = arith.addi %460, %c5_i32_320 : i32
    %c8_i32_321 = arith.constant 8 : i32
    %462 = arith.muli %arg0, %c8_i32_321 : i32
    %463 = arith.addi %462, %461 : i32
    %c9_i32_322 = arith.constant 9 : i32
    %464 = arith.muli %463, %c9_i32_322 : i32
    %c0_i32_323 = arith.constant 0 : i32
    %465 = arith.addi %464, %c0_i32_323 : i32
    %466 = arith.index_cast %465 : i32 to index
    %467 = memref.load %arg2[%466] : memref<144xf32, #tpu.memory_space<smem>>
    %c1_i32_324 = arith.constant 1 : i32
    %468 = arith.addi %464, %c1_i32_324 : i32
    %469 = arith.index_cast %468 : i32 to index
    %470 = memref.load %arg2[%469] : memref<144xf32, #tpu.memory_space<smem>>
    %c2_i32_325 = arith.constant 2 : i32
    %471 = arith.addi %464, %c2_i32_325 : i32
    %472 = arith.index_cast %471 : i32 to index
    %473 = memref.load %arg2[%472] : memref<144xf32, #tpu.memory_space<smem>>
    %c3_i32_326 = arith.constant 3 : i32
    %474 = arith.addi %464, %c3_i32_326 : i32
    %475 = arith.index_cast %474 : i32 to index
    %476 = memref.load %arg2[%475] : memref<144xf32, #tpu.memory_space<smem>>
    %c4_i32_327 = arith.constant 4 : i32
    %477 = arith.addi %464, %c4_i32_327 : i32
    %478 = arith.index_cast %477 : i32 to index
    %479 = memref.load %arg2[%478] : memref<144xf32, #tpu.memory_space<smem>>
    %c5_i32_328 = arith.constant 5 : i32
    %480 = arith.addi %464, %c5_i32_328 : i32
    %481 = arith.index_cast %480 : i32 to index
    %482 = memref.load %arg2[%481] : memref<144xf32, #tpu.memory_space<smem>>
    %c6_i32_329 = arith.constant 6 : i32
    %483 = arith.addi %464, %c6_i32_329 : i32
    %484 = arith.index_cast %483 : i32 to index
    %485 = memref.load %arg2[%484] : memref<144xf32, #tpu.memory_space<smem>>
    %c7_i32_330 = arith.constant 7 : i32
    %486 = arith.addi %464, %c7_i32_330 : i32
    %487 = arith.index_cast %486 : i32 to index
    %488 = memref.load %arg2[%487] : memref<144xf32, #tpu.memory_space<smem>>
    %c8_i32_331 = arith.constant 8 : i32
    %489 = arith.addi %464, %c8_i32_331 : i32
    %490 = arith.index_cast %489 : i32 to index
    %491 = memref.load %arg2[%490] : memref<144xf32, #tpu.memory_space<smem>>
    %c0_332 = arith.constant 0 : index
    %c10 = arith.constant 10 : index
    %c0_333 = arith.constant 0 : index
    %c0_334 = arith.constant 0 : index
    %492 = vector.load %arg6[%c0_332, %c10, %c0_333, %c0_334] : memref<1x16x18x18xf32, #tpu.memory_space<vmem>>, vector<1x2x16x16xf32>
    %493 = vector.shape_cast %492 : vector<1x2x16x16xf32> to vector<2x16x16xf32>
    %494 = vector.broadcast %467 : f32 to vector<2x16x16xf32>
    %495 = arith.mulf %493, %494 : vector<2x16x16xf32>
    %c0_335 = arith.constant 0 : index
    %c10_336 = arith.constant 10 : index
    %c0_337 = arith.constant 0 : index
    %c1_338 = arith.constant 1 : index
    %496 = vector.load %arg6[%c0_335, %c10_336, %c0_337, %c1_338] : memref<1x16x18x18xf32, #tpu.memory_space<vmem>>, vector<1x2x16x16xf32>
    %497 = vector.shape_cast %496 : vector<1x2x16x16xf32> to vector<2x16x16xf32>
    %498 = vector.broadcast %470 : f32 to vector<2x16x16xf32>
    %499 = arith.mulf %497, %498 : vector<2x16x16xf32>
    %500 = arith.addf %495, %499 : vector<2x16x16xf32>
    %c0_339 = arith.constant 0 : index
    %c10_340 = arith.constant 10 : index
    %c0_341 = arith.constant 0 : index
    %c2_342 = arith.constant 2 : index
    %501 = vector.load %arg6[%c0_339, %c10_340, %c0_341, %c2_342] : memref<1x16x18x18xf32, #tpu.memory_space<vmem>>, vector<1x2x16x16xf32>
    %502 = vector.shape_cast %501 : vector<1x2x16x16xf32> to vector<2x16x16xf32>
    %503 = vector.broadcast %473 : f32 to vector<2x16x16xf32>
    %504 = arith.mulf %502, %503 : vector<2x16x16xf32>
    %505 = arith.addf %500, %504 : vector<2x16x16xf32>
    %c0_343 = arith.constant 0 : index
    %c10_344 = arith.constant 10 : index
    %c1_345 = arith.constant 1 : index
    %c0_346 = arith.constant 0 : index
    %506 = vector.load %arg6[%c0_343, %c10_344, %c1_345, %c0_346] : memref<1x16x18x18xf32, #tpu.memory_space<vmem>>, vector<1x2x16x16xf32>
    %507 = vector.shape_cast %506 : vector<1x2x16x16xf32> to vector<2x16x16xf32>
    %508 = vector.broadcast %476 : f32 to vector<2x16x16xf32>
    %509 = arith.mulf %507, %508 : vector<2x16x16xf32>
    %510 = arith.addf %505, %509 : vector<2x16x16xf32>
    %c0_347 = arith.constant 0 : index
    %c10_348 = arith.constant 10 : index
    %c1_349 = arith.constant 1 : index
    %c1_350 = arith.constant 1 : index
    %511 = vector.load %arg6[%c0_347, %c10_348, %c1_349, %c1_350] : memref<1x16x18x18xf32, #tpu.memory_space<vmem>>, vector<1x2x16x16xf32>
    %512 = vector.shape_cast %511 : vector<1x2x16x16xf32> to vector<2x16x16xf32>
    %513 = vector.broadcast %479 : f32 to vector<2x16x16xf32>
    %514 = arith.mulf %512, %513 : vector<2x16x16xf32>
    %515 = arith.addf %510, %514 : vector<2x16x16xf32>
    %c0_351 = arith.constant 0 : index
    %c10_352 = arith.constant 10 : index
    %c1_353 = arith.constant 1 : index
    %c2_354 = arith.constant 2 : index
    %516 = vector.load %arg6[%c0_351, %c10_352, %c1_353, %c2_354] : memref<1x16x18x18xf32, #tpu.memory_space<vmem>>, vector<1x2x16x16xf32>
    %517 = vector.shape_cast %516 : vector<1x2x16x16xf32> to vector<2x16x16xf32>
    %518 = vector.broadcast %482 : f32 to vector<2x16x16xf32>
    %519 = arith.mulf %517, %518 : vector<2x16x16xf32>
    %520 = arith.addf %515, %519 : vector<2x16x16xf32>
    %c0_355 = arith.constant 0 : index
    %c10_356 = arith.constant 10 : index
    %c2_357 = arith.constant 2 : index
    %c0_358 = arith.constant 0 : index
    %521 = vector.load %arg6[%c0_355, %c10_356, %c2_357, %c0_358] : memref<1x16x18x18xf32, #tpu.memory_space<vmem>>, vector<1x2x16x16xf32>
    %522 = vector.shape_cast %521 : vector<1x2x16x16xf32> to vector<2x16x16xf32>
    %523 = vector.broadcast %485 : f32 to vector<2x16x16xf32>
    %524 = arith.mulf %522, %523 : vector<2x16x16xf32>
    %525 = arith.addf %520, %524 : vector<2x16x16xf32>
    %c0_359 = arith.constant 0 : index
    %c10_360 = arith.constant 10 : index
    %c2_361 = arith.constant 2 : index
    %c1_362 = arith.constant 1 : index
    %526 = vector.load %arg6[%c0_359, %c10_360, %c2_361, %c1_362] : memref<1x16x18x18xf32, #tpu.memory_space<vmem>>, vector<1x2x16x16xf32>
    %527 = vector.shape_cast %526 : vector<1x2x16x16xf32> to vector<2x16x16xf32>
    %528 = vector.broadcast %488 : f32 to vector<2x16x16xf32>
    %529 = arith.mulf %527, %528 : vector<2x16x16xf32>
    %530 = arith.addf %525, %529 : vector<2x16x16xf32>
    %c0_363 = arith.constant 0 : index
    %c10_364 = arith.constant 10 : index
    %c2_365 = arith.constant 2 : index
    %c2_366 = arith.constant 2 : index
    %531 = vector.load %arg6[%c0_363, %c10_364, %c2_365, %c2_366] : memref<1x16x18x18xf32, #tpu.memory_space<vmem>>, vector<1x2x16x16xf32>
    %532 = vector.shape_cast %531 : vector<1x2x16x16xf32> to vector<2x16x16xf32>
    %533 = vector.broadcast %491 : f32 to vector<2x16x16xf32>
    %534 = arith.mulf %532, %533 : vector<2x16x16xf32>
    %535 = arith.addf %530, %534 : vector<2x16x16xf32>
    %c0_367 = arith.constant 0 : index
    %c10_368 = arith.constant 10 : index
    %c1_369 = arith.constant 1 : index
    %c1_370 = arith.constant 1 : index
    %536 = vector.load %arg6[%c0_367, %c10_368, %c1_369, %c1_370] : memref<1x16x18x18xf32, #tpu.memory_space<vmem>>, vector<1x2x16x16xf32>
    %537 = vector.shape_cast %536 : vector<1x2x16x16xf32> to vector<2x16x16xf32>
    %c10_371 = arith.constant 10 : index
    %c0_372 = arith.constant 0 : index
    %c0_373 = arith.constant 0 : index
    %538 = vector.load %arg3[%c10_371, %c0_372, %c0_373] : memref<16x1x1xf32, #tpu.memory_space<vmem>>, vector<2x1x1xf32>
    %539 = vector.broadcast %538 : vector<2x1x1xf32> to vector<2x16x16xf32>
    %540 = arith.mulf %535, %539 : vector<2x16x16xf32>
    %c10_374 = arith.constant 10 : index
    %c0_375 = arith.constant 0 : index
    %c0_376 = arith.constant 0 : index
    %541 = vector.load %arg4[%c10_374, %c0_375, %c0_376] : memref<16x1x1xf32, #tpu.memory_space<vmem>>, vector<2x1x1xf32>
    %542 = vector.broadcast %541 : vector<2x1x1xf32> to vector<2x16x16xf32>
    %543 = arith.mulf %537, %542 : vector<2x16x16xf32>
    %544 = arith.addf %540, %543 : vector<2x16x16xf32>
    %c0_377 = arith.constant 0 : index
    %c10_378 = arith.constant 10 : index
    %c0_379 = arith.constant 0 : index
    %c0_380 = arith.constant 0 : index
    %545 = vector.load %arg5[%c0_377, %c10_378, %c0_379, %c0_380] : memref<1x16x1x1xf32, #tpu.memory_space<vmem>>, vector<1x2x1x1xf32>
    %546 = vector.shape_cast %545 : vector<1x2x1x1xf32> to vector<2x1x1xf32>
    %547 = vector.broadcast %546 : vector<2x1x1xf32> to vector<2x16x16xf32>
    %548 = arith.subf %544, %547 : vector<2x16x16xf32>
    %c0_381 = arith.constant 0 : index
    %c10_382 = arith.constant 10 : index
    %c0_383 = arith.constant 0 : index
    %c0_384 = arith.constant 0 : index
    %549 = vector.load %arg7[%c0_381, %c10_382, %c0_383, %c0_384] : memref<1x16x16x16xf32, #tpu.memory_space<vmem>>, vector<1x2x16x16xf32>
    %550 = vector.shape_cast %549 : vector<1x2x16x16xf32> to vector<2x16x16xf32>
    %551 = vector.shape_cast %548 : vector<2x16x16xf32> to vector<1x2x16x16xf32>
    tpu.vector_store %arg7[%c0_381, %c10_382, %c0_383, %c0_384], %551 {strides = array<i32>} : memref<1x16x16x16xf32, #tpu.memory_space<vmem>>, vector<1x2x16x16xf32>,
    %c8_i32_385 = arith.constant 8 : i32
    %552 = arith.muli %arg1, %c8_i32_385 : i32
    %c6_i32_386 = arith.constant 6 : i32
    %553 = arith.addi %552, %c6_i32_386 : i32
    %c8_i32_387 = arith.constant 8 : i32
    %554 = arith.muli %arg0, %c8_i32_387 : i32
    %555 = arith.addi %554, %553 : i32
    %c9_i32_388 = arith.constant 9 : i32
    %556 = arith.muli %555, %c9_i32_388 : i32
    %c0_i32_389 = arith.constant 0 : i32
    %557 = arith.addi %556, %c0_i32_389 : i32
    %558 = arith.index_cast %557 : i32 to index
    %559 = memref.load %arg2[%558] : memref<144xf32, #tpu.memory_space<smem>>
    %c1_i32_390 = arith.constant 1 : i32
    %560 = arith.addi %556, %c1_i32_390 : i32
    %561 = arith.index_cast %560 : i32 to index
    %562 = memref.load %arg2[%561] : memref<144xf32, #tpu.memory_space<smem>>
    %c2_i32_391 = arith.constant 2 : i32
    %563 = arith.addi %556, %c2_i32_391 : i32
    %564 = arith.index_cast %563 : i32 to index
    %565 = memref.load %arg2[%564] : memref<144xf32, #tpu.memory_space<smem>>
    %c3_i32_392 = arith.constant 3 : i32
    %566 = arith.addi %556, %c3_i32_392 : i32
    %567 = arith.index_cast %566 : i32 to index
    %568 = memref.load %arg2[%567] : memref<144xf32, #tpu.memory_space<smem>>
    %c4_i32_393 = arith.constant 4 : i32
    %569 = arith.addi %556, %c4_i32_393 : i32
    %570 = arith.index_cast %569 : i32 to index
    %571 = memref.load %arg2[%570] : memref<144xf32, #tpu.memory_space<smem>>
    %c5_i32_394 = arith.constant 5 : i32
    %572 = arith.addi %556, %c5_i32_394 : i32
    %573 = arith.index_cast %572 : i32 to index
    %574 = memref.load %arg2[%573] : memref<144xf32, #tpu.memory_space<smem>>
    %c6_i32_395 = arith.constant 6 : i32
    %575 = arith.addi %556, %c6_i32_395 : i32
    %576 = arith.index_cast %575 : i32 to index
    %577 = memref.load %arg2[%576] : memref<144xf32, #tpu.memory_space<smem>>
    %c7_i32_396 = arith.constant 7 : i32
    %578 = arith.addi %556, %c7_i32_396 : i32
    %579 = arith.index_cast %578 : i32 to index
    %580 = memref.load %arg2[%579] : memref<144xf32, #tpu.memory_space<smem>>
    %c8_i32_397 = arith.constant 8 : i32
    %581 = arith.addi %556, %c8_i32_397 : i32
    %582 = arith.index_cast %581 : i32 to index
    %583 = memref.load %arg2[%582] : memref<144xf32, #tpu.memory_space<smem>>
    %c0_398 = arith.constant 0 : index
    %c12 = arith.constant 12 : index
    %c0_399 = arith.constant 0 : index
    %c0_400 = arith.constant 0 : index
    %584 = vector.load %arg6[%c0_398, %c12, %c0_399, %c0_400] : memref<1x16x18x18xf32, #tpu.memory_space<vmem>>, vector<1x2x16x16xf32>
    %585 = vector.shape_cast %584 : vector<1x2x16x16xf32> to vector<2x16x16xf32>
    %586 = vector.broadcast %559 : f32 to vector<2x16x16xf32>
    %587 = arith.mulf %585, %586 : vector<2x16x16xf32>
    %c0_401 = arith.constant 0 : index
    %c12_402 = arith.constant 12 : index
    %c0_403 = arith.constant 0 : index
    %c1_404 = arith.constant 1 : index
    %588 = vector.load %arg6[%c0_401, %c12_402, %c0_403, %c1_404] : memref<1x16x18x18xf32, #tpu.memory_space<vmem>>, vector<1x2x16x16xf32>
    %589 = vector.shape_cast %588 : vector<1x2x16x16xf32> to vector<2x16x16xf32>
    %590 = vector.broadcast %562 : f32 to vector<2x16x16xf32>
    %591 = arith.mulf %589, %590 : vector<2x16x16xf32>
    %592 = arith.addf %587, %591 : vector<2x16x16xf32>
    %c0_405 = arith.constant 0 : index
    %c12_406 = arith.constant 12 : index
    %c0_407 = arith.constant 0 : index
    %c2_408 = arith.constant 2 : index
    %593 = vector.load %arg6[%c0_405, %c12_406, %c0_407, %c2_408] : memref<1x16x18x18xf32, #tpu.memory_space<vmem>>, vector<1x2x16x16xf32>
    %594 = vector.shape_cast %593 : vector<1x2x16x16xf32> to vector<2x16x16xf32>
    %595 = vector.broadcast %565 : f32 to vector<2x16x16xf32>
    %596 = arith.mulf %594, %595 : vector<2x16x16xf32>
    %597 = arith.addf %592, %596 : vector<2x16x16xf32>
    %c0_409 = arith.constant 0 : index
    %c12_410 = arith.constant 12 : index
    %c1_411 = arith.constant 1 : index
    %c0_412 = arith.constant 0 : index
    %598 = vector.load %arg6[%c0_409, %c12_410, %c1_411, %c0_412] : memref<1x16x18x18xf32, #tpu.memory_space<vmem>>, vector<1x2x16x16xf32>
    %599 = vector.shape_cast %598 : vector<1x2x16x16xf32> to vector<2x16x16xf32>
    %600 = vector.broadcast %568 : f32 to vector<2x16x16xf32>
    %601 = arith.mulf %599, %600 : vector<2x16x16xf32>
    %602 = arith.addf %597, %601 : vector<2x16x16xf32>
    %c0_413 = arith.constant 0 : index
    %c12_414 = arith.constant 12 : index
    %c1_415 = arith.constant 1 : index
    %c1_416 = arith.constant 1 : index
    %603 = vector.load %arg6[%c0_413, %c12_414, %c1_415, %c1_416] : memref<1x16x18x18xf32, #tpu.memory_space<vmem>>, vector<1x2x16x16xf32>
    %604 = vector.shape_cast %603 : vector<1x2x16x16xf32> to vector<2x16x16xf32>
    %605 = vector.broadcast %571 : f32 to vector<2x16x16xf32>
    %606 = arith.mulf %604, %605 : vector<2x16x16xf32>
    %607 = arith.addf %602, %606 : vector<2x16x16xf32>
    %c0_417 = arith.constant 0 : index
    %c12_418 = arith.constant 12 : index
    %c1_419 = arith.constant 1 : index
    %c2_420 = arith.constant 2 : index
    %608 = vector.load %arg6[%c0_417, %c12_418, %c1_419, %c2_420] : memref<1x16x18x18xf32, #tpu.memory_space<vmem>>, vector<1x2x16x16xf32>
    %609 = vector.shape_cast %608 : vector<1x2x16x16xf32> to vector<2x16x16xf32>
    %610 = vector.broadcast %574 : f32 to vector<2x16x16xf32>
    %611 = arith.mulf %609, %610 : vector<2x16x16xf32>
    %612 = arith.addf %607, %611 : vector<2x16x16xf32>
    %c0_421 = arith.constant 0 : index
    %c12_422 = arith.constant 12 : index
    %c2_423 = arith.constant 2 : index
    %c0_424 = arith.constant 0 : index
    %613 = vector.load %arg6[%c0_421, %c12_422, %c2_423, %c0_424] : memref<1x16x18x18xf32, #tpu.memory_space<vmem>>, vector<1x2x16x16xf32>
    %614 = vector.shape_cast %613 : vector<1x2x16x16xf32> to vector<2x16x16xf32>
    %615 = vector.broadcast %577 : f32 to vector<2x16x16xf32>
    %616 = arith.mulf %614, %615 : vector<2x16x16xf32>
    %617 = arith.addf %612, %616 : vector<2x16x16xf32>
    %c0_425 = arith.constant 0 : index
    %c12_426 = arith.constant 12 : index
    %c2_427 = arith.constant 2 : index
    %c1_428 = arith.constant 1 : index
    %618 = vector.load %arg6[%c0_425, %c12_426, %c2_427, %c1_428] : memref<1x16x18x18xf32, #tpu.memory_space<vmem>>, vector<1x2x16x16xf32>
    %619 = vector.shape_cast %618 : vector<1x2x16x16xf32> to vector<2x16x16xf32>
    %620 = vector.broadcast %580 : f32 to vector<2x16x16xf32>
    %621 = arith.mulf %619, %620 : vector<2x16x16xf32>
    %622 = arith.addf %617, %621 : vector<2x16x16xf32>
    %c0_429 = arith.constant 0 : index
    %c12_430 = arith.constant 12 : index
    %c2_431 = arith.constant 2 : index
    %c2_432 = arith.constant 2 : index
    %623 = vector.load %arg6[%c0_429, %c12_430, %c2_431, %c2_432] : memref<1x16x18x18xf32, #tpu.memory_space<vmem>>, vector<1x2x16x16xf32>
    %624 = vector.shape_cast %623 : vector<1x2x16x16xf32> to vector<2x16x16xf32>
    %625 = vector.broadcast %583 : f32 to vector<2x16x16xf32>
    %626 = arith.mulf %624, %625 : vector<2x16x16xf32>
    %627 = arith.addf %622, %626 : vector<2x16x16xf32>
    %c0_433 = arith.constant 0 : index
    %c12_434 = arith.constant 12 : index
    %c1_435 = arith.constant 1 : index
    %c1_436 = arith.constant 1 : index
    %628 = vector.load %arg6[%c0_433, %c12_434, %c1_435, %c1_436] : memref<1x16x18x18xf32, #tpu.memory_space<vmem>>, vector<1x2x16x16xf32>
    %629 = vector.shape_cast %628 : vector<1x2x16x16xf32> to vector<2x16x16xf32>
    %c12_437 = arith.constant 12 : index
    %c0_438 = arith.constant 0 : index
    %c0_439 = arith.constant 0 : index
    %630 = vector.load %arg3[%c12_437, %c0_438, %c0_439] : memref<16x1x1xf32, #tpu.memory_space<vmem>>, vector<2x1x1xf32>
    %631 = vector.broadcast %630 : vector<2x1x1xf32> to vector<2x16x16xf32>
    %632 = arith.mulf %627, %631 : vector<2x16x16xf32>
    %c12_440 = arith.constant 12 : index
    %c0_441 = arith.constant 0 : index
    %c0_442 = arith.constant 0 : index
    %633 = vector.load %arg4[%c12_440, %c0_441, %c0_442] : memref<16x1x1xf32, #tpu.memory_space<vmem>>, vector<2x1x1xf32>
    %634 = vector.broadcast %633 : vector<2x1x1xf32> to vector<2x16x16xf32>
    %635 = arith.mulf %629, %634 : vector<2x16x16xf32>
    %636 = arith.addf %632, %635 : vector<2x16x16xf32>
    %c0_443 = arith.constant 0 : index
    %c12_444 = arith.constant 12 : index
    %c0_445 = arith.constant 0 : index
    %c0_446 = arith.constant 0 : index
    %637 = vector.load %arg5[%c0_443, %c12_444, %c0_445, %c0_446] : memref<1x16x1x1xf32, #tpu.memory_space<vmem>>, vector<1x2x1x1xf32>
    %638 = vector.shape_cast %637 : vector<1x2x1x1xf32> to vector<2x1x1xf32>
    %639 = vector.broadcast %638 : vector<2x1x1xf32> to vector<2x16x16xf32>
    %640 = arith.subf %636, %639 : vector<2x16x16xf32>
    %c0_447 = arith.constant 0 : index
    %c12_448 = arith.constant 12 : index
    %c0_449 = arith.constant 0 : index
    %c0_450 = arith.constant 0 : index
    %641 = vector.load %arg7[%c0_447, %c12_448, %c0_449, %c0_450] : memref<1x16x16x16xf32, #tpu.memory_space<vmem>>, vector<1x2x16x16xf32>
    %642 = vector.shape_cast %641 : vector<1x2x16x16xf32> to vector<2x16x16xf32>
    %643 = vector.shape_cast %640 : vector<2x16x16xf32> to vector<1x2x16x16xf32>
    tpu.vector_store %arg7[%c0_447, %c12_448, %c0_449, %c0_450], %643 {strides = array<i32>} : memref<1x16x16x16xf32, #tpu.memory_space<vmem>>, vector<1x2x16x16xf32>,
    %c8_i32_451 = arith.constant 8 : i32
    %644 = arith.muli %arg1, %c8_i32_451 : i32
    %c7_i32_452 = arith.constant 7 : i32
    %645 = arith.addi %644, %c7_i32_452 : i32
    %c8_i32_453 = arith.constant 8 : i32
    %646 = arith.muli %arg0, %c8_i32_453 : i32
    %647 = arith.addi %646, %645 : i32
    %c9_i32_454 = arith.constant 9 : i32
    %648 = arith.muli %647, %c9_i32_454 : i32
    %c0_i32_455 = arith.constant 0 : i32
    %649 = arith.addi %648, %c0_i32_455 : i32
    %650 = arith.index_cast %649 : i32 to index
    %651 = memref.load %arg2[%650] : memref<144xf32, #tpu.memory_space<smem>>
    %c1_i32_456 = arith.constant 1 : i32
    %652 = arith.addi %648, %c1_i32_456 : i32
    %653 = arith.index_cast %652 : i32 to index
    %654 = memref.load %arg2[%653] : memref<144xf32, #tpu.memory_space<smem>>
    %c2_i32_457 = arith.constant 2 : i32
    %655 = arith.addi %648, %c2_i32_457 : i32
    %656 = arith.index_cast %655 : i32 to index
    %657 = memref.load %arg2[%656] : memref<144xf32, #tpu.memory_space<smem>>
    %c3_i32_458 = arith.constant 3 : i32
    %658 = arith.addi %648, %c3_i32_458 : i32
    %659 = arith.index_cast %658 : i32 to index
    %660 = memref.load %arg2[%659] : memref<144xf32, #tpu.memory_space<smem>>
    %c4_i32_459 = arith.constant 4 : i32
    %661 = arith.addi %648, %c4_i32_459 : i32
    %662 = arith.index_cast %661 : i32 to index
    %663 = memref.load %arg2[%662] : memref<144xf32, #tpu.memory_space<smem>>
    %c5_i32_460 = arith.constant 5 : i32
    %664 = arith.addi %648, %c5_i32_460 : i32
    %665 = arith.index_cast %664 : i32 to index
    %666 = memref.load %arg2[%665] : memref<144xf32, #tpu.memory_space<smem>>
    %c6_i32_461 = arith.constant 6 : i32
    %667 = arith.addi %648, %c6_i32_461 : i32
    %668 = arith.index_cast %667 : i32 to index
    %669 = memref.load %arg2[%668] : memref<144xf32, #tpu.memory_space<smem>>
    %c7_i32_462 = arith.constant 7 : i32
    %670 = arith.addi %648, %c7_i32_462 : i32
    %671 = arith.index_cast %670 : i32 to index
    %672 = memref.load %arg2[%671] : memref<144xf32, #tpu.memory_space<smem>>
    %c8_i32_463 = arith.constant 8 : i32
    %673 = arith.addi %648, %c8_i32_463 : i32
    %674 = arith.index_cast %673 : i32 to index
    %675 = memref.load %arg2[%674] : memref<144xf32, #tpu.memory_space<smem>>
    %c0_464 = arith.constant 0 : index
    %c14 = arith.constant 14 : index
    %c0_465 = arith.constant 0 : index
    %c0_466 = arith.constant 0 : index
    %676 = vector.load %arg6[%c0_464, %c14, %c0_465, %c0_466] : memref<1x16x18x18xf32, #tpu.memory_space<vmem>>, vector<1x2x16x16xf32>
    %677 = vector.shape_cast %676 : vector<1x2x16x16xf32> to vector<2x16x16xf32>
    %678 = vector.broadcast %651 : f32 to vector<2x16x16xf32>
    %679 = arith.mulf %677, %678 : vector<2x16x16xf32>
    %c0_467 = arith.constant 0 : index
    %c14_468 = arith.constant 14 : index
    %c0_469 = arith.constant 0 : index
    %c1_470 = arith.constant 1 : index
    %680 = vector.load %arg6[%c0_467, %c14_468, %c0_469, %c1_470] : memref<1x16x18x18xf32, #tpu.memory_space<vmem>>, vector<1x2x16x16xf32>
    %681 = vector.shape_cast %680 : vector<1x2x16x16xf32> to vector<2x16x16xf32>
    %682 = vector.broadcast %654 : f32 to vector<2x16x16xf32>
    %683 = arith.mulf %681, %682 : vector<2x16x16xf32>
    %684 = arith.addf %679, %683 : vector<2x16x16xf32>
    %c0_471 = arith.constant 0 : index
    %c14_472 = arith.constant 14 : index
    %c0_473 = arith.constant 0 : index
    %c2_474 = arith.constant 2 : index
    %685 = vector.load %arg6[%c0_471, %c14_472, %c0_473, %c2_474] : memref<1x16x18x18xf32, #tpu.memory_space<vmem>>, vector<1x2x16x16xf32>
    %686 = vector.shape_cast %685 : vector<1x2x16x16xf32> to vector<2x16x16xf32>
    %687 = vector.broadcast %657 : f32 to vector<2x16x16xf32>
    %688 = arith.mulf %686, %687 : vector<2x16x16xf32>
    %689 = arith.addf %684, %688 : vector<2x16x16xf32>
    %c0_475 = arith.constant 0 : index
    %c14_476 = arith.constant 14 : index
    %c1_477 = arith.constant 1 : index
    %c0_478 = arith.constant 0 : index
    %690 = vector.load %arg6[%c0_475, %c14_476, %c1_477, %c0_478] : memref<1x16x18x18xf32, #tpu.memory_space<vmem>>, vector<1x2x16x16xf32>
    %691 = vector.shape_cast %690 : vector<1x2x16x16xf32> to vector<2x16x16xf32>
    %692 = vector.broadcast %660 : f32 to vector<2x16x16xf32>
    %693 = arith.mulf %691, %692 : vector<2x16x16xf32>
    %694 = arith.addf %689, %693 : vector<2x16x16xf32>
    %c0_479 = arith.constant 0 : index
    %c14_480 = arith.constant 14 : index
    %c1_481 = arith.constant 1 : index
    %c1_482 = arith.constant 1 : index
    %695 = vector.load %arg6[%c0_479, %c14_480, %c1_481, %c1_482] : memref<1x16x18x18xf32, #tpu.memory_space<vmem>>, vector<1x2x16x16xf32>
    %696 = vector.shape_cast %695 : vector<1x2x16x16xf32> to vector<2x16x16xf32>
    %697 = vector.broadcast %663 : f32 to vector<2x16x16xf32>
    %698 = arith.mulf %696, %697 : vector<2x16x16xf32>
    %699 = arith.addf %694, %698 : vector<2x16x16xf32>
    %c0_483 = arith.constant 0 : index
    %c14_484 = arith.constant 14 : index
    %c1_485 = arith.constant 1 : index
    %c2_486 = arith.constant 2 : index
    %700 = vector.load %arg6[%c0_483, %c14_484, %c1_485, %c2_486] : memref<1x16x18x18xf32, #tpu.memory_space<vmem>>, vector<1x2x16x16xf32>
    %701 = vector.shape_cast %700 : vector<1x2x16x16xf32> to vector<2x16x16xf32>
    %702 = vector.broadcast %666 : f32 to vector<2x16x16xf32>
    %703 = arith.mulf %701, %702 : vector<2x16x16xf32>
    %704 = arith.addf %699, %703 : vector<2x16x16xf32>
    %c0_487 = arith.constant 0 : index
    %c14_488 = arith.constant 14 : index
    %c2_489 = arith.constant 2 : index
    %c0_490 = arith.constant 0 : index
    %705 = vector.load %arg6[%c0_487, %c14_488, %c2_489, %c0_490] : memref<1x16x18x18xf32, #tpu.memory_space<vmem>>, vector<1x2x16x16xf32>
    %706 = vector.shape_cast %705 : vector<1x2x16x16xf32> to vector<2x16x16xf32>
    %707 = vector.broadcast %669 : f32 to vector<2x16x16xf32>
    %708 = arith.mulf %706, %707 : vector<2x16x16xf32>
    %709 = arith.addf %704, %708 : vector<2x16x16xf32>
    %c0_491 = arith.constant 0 : index
    %c14_492 = arith.constant 14 : index
    %c2_493 = arith.constant 2 : index
    %c1_494 = arith.constant 1 : index
    %710 = vector.load %arg6[%c0_491, %c14_492, %c2_493, %c1_494] : memref<1x16x18x18xf32, #tpu.memory_space<vmem>>, vector<1x2x16x16xf32>
    %711 = vector.shape_cast %710 : vector<1x2x16x16xf32> to vector<2x16x16xf32>
    %712 = vector.broadcast %672 : f32 to vector<2x16x16xf32>
    %713 = arith.mulf %711, %712 : vector<2x16x16xf32>
    %714 = arith.addf %709, %713 : vector<2x16x16xf32>
    %c0_495 = arith.constant 0 : index
    %c14_496 = arith.constant 14 : index
    %c2_497 = arith.constant 2 : index
    %c2_498 = arith.constant 2 : index
    %715 = vector.load %arg6[%c0_495, %c14_496, %c2_497, %c2_498] : memref<1x16x18x18xf32, #tpu.memory_space<vmem>>, vector<1x2x16x16xf32>
    %716 = vector.shape_cast %715 : vector<1x2x16x16xf32> to vector<2x16x16xf32>
    %717 = vector.broadcast %675 : f32 to vector<2x16x16xf32>
    %718 = arith.mulf %716, %717 : vector<2x16x16xf32>
    %719 = arith.addf %714, %718 : vector<2x16x16xf32>
    %c0_499 = arith.constant 0 : index
    %c14_500 = arith.constant 14 : index
    %c1_501 = arith.constant 1 : index
    %c1_502 = arith.constant 1 : index
    %720 = vector.load %arg6[%c0_499, %c14_500, %c1_501, %c1_502] : memref<1x16x18x18xf32, #tpu.memory_space<vmem>>, vector<1x2x16x16xf32>
    %721 = vector.shape_cast %720 : vector<1x2x16x16xf32> to vector<2x16x16xf32>
    %c14_503 = arith.constant 14 : index
    %c0_504 = arith.constant 0 : index
    %c0_505 = arith.constant 0 : index
    %722 = vector.load %arg3[%c14_503, %c0_504, %c0_505] : memref<16x1x1xf32, #tpu.memory_space<vmem>>, vector<2x1x1xf32>
    %723 = vector.broadcast %722 : vector<2x1x1xf32> to vector<2x16x16xf32>
    %724 = arith.mulf %719, %723 : vector<2x16x16xf32>
    %c14_506 = arith.constant 14 : index
    %c0_507 = arith.constant 0 : index
    %c0_508 = arith.constant 0 : index
    %725 = vector.load %arg4[%c14_506, %c0_507, %c0_508] : memref<16x1x1xf32, #tpu.memory_space<vmem>>, vector<2x1x1xf32>
    %726 = vector.broadcast %725 : vector<2x1x1xf32> to vector<2x16x16xf32>
    %727 = arith.mulf %721, %726 : vector<2x16x16xf32>
    %728 = arith.addf %724, %727 : vector<2x16x16xf32>
    %c0_509 = arith.constant 0 : index
    %c14_510 = arith.constant 14 : index
    %c0_511 = arith.constant 0 : index
    %c0_512 = arith.constant 0 : index
    %729 = vector.load %arg5[%c0_509, %c14_510, %c0_511, %c0_512] : memref<1x16x1x1xf32, #tpu.memory_space<vmem>>, vector<1x2x1x1xf32>
    %730 = vector.shape_cast %729 : vector<1x2x1x1xf32> to vector<2x1x1xf32>
    %731 = vector.broadcast %730 : vector<2x1x1xf32> to vector<2x16x16xf32>
    %732 = arith.subf %728, %731 : vector<2x16x16xf32>
    %c0_513 = arith.constant 0 : index
    %c14_514 = arith.constant 14 : index
    %c0_515 = arith.constant 0 : index
    %c0_516 = arith.constant 0 : index
    %733 = vector.load %arg7[%c0_513, %c14_514, %c0_515, %c0_516] : memref<1x16x16x16xf32, #tpu.memory_space<vmem>>, vector<1x2x16x16xf32>
    %734 = vector.shape_cast %733 : vector<1x2x16x16xf32> to vector<2x16x16xf32>
    %735 = vector.shape_cast %732 : vector<2x16x16xf32> to vector<1x2x16x16xf32>
    tpu.vector_store %arg7[%c0_513, %c14_514, %c0_515, %c0_516], %735 {strides = array<i32>} : memref<1x16x16x16xf32, #tpu.memory_space<vmem>>, vector<1x2x16x16xf32>,
    return
  }
  func.func @transform_0(%arg0: i32, %arg1: i32) -> i32 {
    %c0_i32 = arith.constant 0 : i32
    %c0_i32_0 = arith.constant 0 : i32
    return %c0_i32 : i32
  }
  func.func @transform_1(%arg0: i32, %arg1: i32) -> (i32, i32, i32) {
    %c0_i32 = arith.constant 0 : i32
    %c0_i32_0 = arith.constant 0 : i32
    %c0_i32_1 = arith.constant 0 : i32
    return %arg1, %c0_i32, %c0_i32_0 : i32, i32, i32
  }
  func.func @transform_2(%arg0: i32, %arg1: i32) -> (i32, i32, i32) {
    %c0_i32 = arith.constant 0 : i32
    %c0_i32_0 = arith.constant 0 : i32
    %c0_i32_1 = arith.constant 0 : i32
    return %arg1, %c0_i32, %c0_i32_0 : i32, i32, i32
  }
  func.func @transform_3(%arg0: i32, %arg1: i32) -> (i32, i32, i32, i32) {
    %c0_i32 = arith.constant 0 : i32
    %c0_i32_0 = arith.constant 0 : i32
    %c0_i32_1 = arith.constant 0 : i32
    return %arg0, %arg1, %c0_i32, %c0_i32_0 : i32, i32, i32, i32
  }
  func.func @transform_4(%arg0: i32, %arg1: i32) -> (i32, i32, i32, i32) {
    %c0_i32 = arith.constant 0 : i32
    %c0_i32_0 = arith.constant 0 : i32
    %c0_i32_1 = arith.constant 0 : i32
    return %arg0, %arg1, %c0_i32, %c0_i32_0 : i32, i32, i32, i32
  }
  func.func @transform_5(%arg0: i32, %arg1: i32) -> (i32, i32, i32, i32) {
    %c0_i32 = arith.constant 0 : i32
    %c0_i32_0 = arith.constant 0 : i32
    %c0_i32_1 = arith.constant 0 : i32
    return %arg0, %arg1, %c0_i32, %c0_i32_0 : i32, i32, i32, i32
  }
}

</mosaic_0001>

<llo_original>
// kernel: tpu_custom_call.1
$region0: #{tpu_custom_call.1}
  #allocation0 [shape = 'u32[]', space=smem, size = 0x4, offset = 0x4, fixed_abs, tag = 'smem constant byte address 0x4 - core index']
  #allocation1 [shape = 'u32[144,128]{1,0:T(1,128)}', space=vmem, size = 0x12000, scoped, tag = 'internal scratch']
  %s0 = inlined_call_operand.vmem [shape: f32[144], index: 0, kind: input, shape index: {}]
  %s1 = inlined_call_operand.vmem [shape: f32[16,1,1], index: 1, kind: input, shape index: {}]
  %s2 = inlined_call_operand.vmem [shape: f32[16,1,1], index: 2, kind: input, shape index: {}]
  %s3 = inlined_call_operand.vmem [shape: f32[2,16,1,1], index: 3, kind: input, shape index: {}]
  %s4 = inlined_call_operand.vmem [shape: f32[2,16,18,18], index: 4, kind: input, shape index: {}]
  %s5 = inlined_call_operand.hbm [shape: f32[2,16,16,16], index: 5, kind: output, shape index: {}]
  %s6 = sld [smem:[#allocation0]]
  $region57: #{tpu_custom_call.1} parent=0
    _
  %s8 = ssub.s32 1, %s6
  %s9 = scalar_select 0, %s8, %s6
  $region1: #{tpu_custom_call.1} parent=0
    #allocation2 [shape = 'u8[1024]{0}', space=smem, size = 0x400, scoped, tag = 'input window, operand 0, single buffered']
    #allocation3 [shape = 's32[2]{0}', space=sflag, size = 0x8, scoped, tag = 'scoped memory for tpu_custom_call.1']
    #allocation4 [shape = 's32[2]{0}', space=sflag, size = 0x8, scoped, tag = 'scoped memory for tpu_custom_call.1']
    #allocation5 [shape = 'u8[262144]{0}', space=vmem, size = 0x40000, scoped, tag = 'output window, operand 0']
    %10 = vsyncpa [#allocation4], 0
    %11 = vsyncpa [#allocation3], 0
    %s12 = scalar_lea.sflag [#allocation3], 1
    %13 = vsyncpa %s12, 0
    loop: start=0, step=1, limit=4
    $region2: #{tpu_custom_call.1} parent=1 // loop_pre_header
      _
    $region3: #{tpu_custom_call.1} parent=1 // loop_header
      %s15 = sphi 0, %s19
      %p16 = scmp.ge.s32.totalorder %s15, 4
      %s22 = sphi 0, %s34
      %s23 = sphi 0, %s30
      %s24 = sphi 0, %s22
      %s25 = sphi 0, %s23
      %s26 = sphi 0, %s24
      %s27 = sphi 0, %s25
      %s35 = sphi 0, %s35
      %s37 = sphi 0, %s35
      %s38 = sphi 0, %s37
      %s52 = sphi 0, %s38
      %s58 = sphi 0, %s60
      %s61 = sphi 0, %s58
      %s62 = sphi 0, %s61
      %s78 = sphi 0, %s62
      %s84 = sphi 0, %s86
      %s87 = sphi 0, %s84
      %s88 = sphi 0, %s87
      %s104 = sphi 0, %s88
      %s112 = sphi 0, %s114
      %s115 = sphi 0, %s112
      %s116 = sphi 0, %s115
      %s132 = sphi 0, %s116
      %s140 = sphi 0, %s142
      %s143 = sphi 0, %s140
      %s144 = sphi 0, %s143
      %s160 = sphi 0, %s144
      %s168 = sphi 0, %s170
      %s171 = sphi 0, %s168
      %s172 = sphi 0, %s171
      %s188 = sphi 0, %s172
    $region4: #{tpu_custom_call.1} parent=1 // loop_header_branch
      %18 = sbr.rel (%p16) target = $region8
    $region5: #{tpu_custom_call.1} parent=1 // loop_body
      %s20 = ssub.s32 %s15, 1
      %s21 = ssub.s32 %s15, 2
      %s28 = sadd.s32 1, %s23
      %p29 = scmp.ge.s32.totalorder %s28, 1
      %s30 = scalar_select %p29, 0, %s28
      %s31 = sadd.s32 1, %s22
      %s32 = scalar_select %p29, %s31, %s22
      %p33 = scmp.ge.s32.totalorder %s32, 2
      %s34 = scalar_select %p33, 0, %s32
      %s36 = sadd.s32 %s35, 1
      %p39 = scmp.eq.s32.totalorder %s15, 1
      %p40 = scmp.ne.s32.totalorder %s35, %s37
      %p41 = scmp.eq.s32.totalorder %s15, 0
      %p42 = por %p40, %p41
      %p43 = scmp.ne.s32.totalorder %s35, %s37
      %p44 = scmp.eq.s32.totalorder %s20, 1
      %p45 = por %p43, %p44
      %p46 = scmp.ne.s32.totalorder %s37, %s38
      %p47 = scmp.eq.s32.totalorder %s20, 0
      %p48 = por %p46, %p47
      %p49 = scmp.ne.s32.totalorder %s37, %s38
      %p50 = scmp.eq.s32.totalorder %s21, 1
      %p51 = por %p49, %p50
      %p53 = scmp.ne.s32.totalorder %s38, %s52
      %p54 = scmp.eq.s32.totalorder %s21, 0
      %p55 = por %p53, %p54
      %s56 = ssub.s32 %s23, %s30
      %p57 = scmp.eq.s32.totalorder %s56, 0
      %s59 = sadd.s32 %s58, 1
      %s60 = scalar_select %p57, %s58, %s59
      %p63 = pneg %p57
      %p64 = scmp.eq.s32.totalorder %s15, 1
      %p65 = por %p63, %p64
      %p66 = scmp.ne.s32.totalorder %s58, %s61
      %p67 = scmp.eq.s32.totalorder %s15, 0
      %p68 = por %p66, %p67
      %p69 = scmp.ne.s32.totalorder %s58, %s61
      %p70 = scmp.eq.s32.totalorder %s20, 1
      %p71 = por %p69, %p70
      %p72 = scmp.ne.s32.totalorder %s61, %s62
      %p73 = scmp.eq.s32.totalorder %s20, 0
      %p74 = por %p72, %p73
      %p75 = scmp.ne.s32.totalorder %s61, %s62
      %p76 = scmp.eq.s32.totalorder %s21, 1
      %p77 = por %p75, %p76
      %p79 = scmp.ne.s32.totalorder %s62, %s78
      %p80 = scmp.eq.s32.totalorder %s21, 0
      %p81 = por %p79, %p80
      %s82 = ssub.s32 %s23, %s30
      %p83 = scmp.eq.s32.totalorder %s82, 0
      %s85 = sadd.s32 %s84, 1
      %s86 = scalar_select %p83, %s84, %s85
      %p89 = pneg %p83
      %p90 = scmp.eq.s32.totalorder %s15, 1
      %p91 = por %p89, %p90
      %p92 = scmp.ne.s32.totalorder %s84, %s87
      %p93 = scmp.eq.s32.totalorder %s15, 0
      %p94 = por %p92, %p93
      %p95 = scmp.ne.s32.totalorder %s84, %s87
      %p96 = scmp.eq.s32.totalorder %s20, 1
      %p97 = por %p95, %p96
      %p98 = scmp.ne.s32.totalorder %s87, %s88
      %p99 = scmp.eq.s32.totalorder %s20, 0
      %p100 = por %p98, %p99
      %p101 = scmp.ne.s32.totalorder %s87, %s88
      %p102 = scmp.eq.s32.totalorder %s21, 1
      %p103 = por %p101, %p102
      %p105 = scmp.ne.s32.totalorder %s88, %s104
      %p106 = scmp.eq.s32.totalorder %s21, 0
      %p107 = por %p105, %p106
      %s108 = ssub.s32 %s22, %s34
      %s109 = ssub.s32 %s23, %s30
      %s110 = sor.u32 %s108, %s109
      %p111 = scmp.eq.s32.totalorder %s110, 0
      %s113 = sadd.s32 %s112, 1
      %s114 = scalar_select %p111, %s112, %s113
      %p117 = pneg %p111
      %p118 = scmp.eq.s32.totalorder %s15, 1
      %p119 = por %p117, %p118
      %p120 = scmp.ne.s32.totalorder %s112, %s115
      %p121 = scmp.eq.s32.totalorder %s15, 0
      %p122 = por %p120, %p121
      %p123 = scmp.ne.s32.totalorder %s112, %s115
      %p124 = scmp.eq.s32.totalorder %s20, 1
      %p125 = por %p123, %p124
      %p126 = scmp.ne.s32.totalorder %s115, %s116
      %p127 = scmp.eq.s32.totalorder %s20, 0
      %p128 = por %p126, %p127
      %p129 = scmp.ne.s32.totalorder %s115, %s116
      %p130 = scmp.eq.s32.totalorder %s21, 1
      %p131 = por %p129, %p130
      %p133 = scmp.ne.s32.totalorder %s116, %s132
      %p134 = scmp.eq.s32.totalorder %s21, 0
      %p135 = por %p133, %p134
      %s136 = ssub.s32 %s22, %s34
      %s137 = ssub.s32 %s23, %s30
      %s138 = sor.u32 %s136, %s137
      %p139 = scmp.eq.s32.totalorder %s138, 0
      %s141 = sadd.s32 %s140, 1
      %s142 = scalar_select %p139, %s140, %s141
      %p145 = pneg %p139
      %p146 = scmp.eq.s32.totalorder %s15, 1
      %p147 = por %p145, %p146
      %p148 = scmp.ne.s32.totalorder %s140, %s143
      %p149 = scmp.eq.s32.totalorder %s15, 0
      %p150 = por %p148, %p149
      %p151 = scmp.ne.s32.totalorder %s140, %s143
      %p152 = scmp.eq.s32.totalorder %s20, 1
      %p153 = por %p151, %p152
      %p154 = scmp.ne.s32.totalorder %s143, %s144
      %p155 = scmp.eq.s32.totalorder %s20, 0
      %p156 = por %p154, %p155
      %p157 = scmp.ne.s32.totalorder %s143, %s144
      %p158 = scmp.eq.s32.totalorder %s21, 1
      %p159 = por %p157, %p158
      %p161 = scmp.ne.s32.totalorder %s144, %s160
      %p162 = scmp.eq.s32.totalorder %s21, 0
      %p163 = por %p161, %p162
      %s164 = ssub.s32 %s22, %s34
      %s165 = ssub.s32 %s23, %s30
      %s166 = sor.u32 %s164, %s165
      %p167 = scmp.eq.s32.totalorder %s166, 0
      %s169 = sadd.s32 %s168, 1
      %s170 = scalar_select %p167, %s168, %s169
      %p173 = pneg %p167
      %p174 = scmp.eq.s32.totalorder %s15, 1
      %p175 = por %p173, %p174
      %p176 = scmp.ne.s32.totalorder %s168, %s171
      %p177 = scmp.eq.s32.totalorder %s15, 0
      %p178 = por %p176, %p177
      %p179 = scmp.ne.s32.totalorder %s168, %s171
      %p180 = scmp.eq.s32.totalorder %s20, 1
      %p181 = por %p179, %p180
      %p182 = scmp.ne.s32.totalorder %s171, %s172
      %p183 = scmp.eq.s32.totalorder %s20, 0
      %p184 = por %p182, %p183
      %p185 = scmp.ne.s32.totalorder %s171, %s172
      %p186 = scmp.eq.s32.totalorder %s21, 1
      %p187 = por %p185, %p186
      %p189 = scmp.ne.s32.totalorder %s172, %s188
      %p190 = scmp.eq.s32.totalorder %s21, 0
      %p191 = por %p189, %p190
      %p192 = scmp.le.s32.totalorder 1, %s15
      %p193 = scmp.lt.s32.totalorder %s15, 3
      %p194 = pnand %p192, %p193
      %p195 = pneg %p194
      // Predicated region
      $region9: #{tpu_custom_call.1} parent=5 // pred_check
        _
      $region10: #{tpu_custom_call.1} parent=5 // pred_check_branch
        %197 = sbr.rel (%p194) target = $region12
      $region11: #{tpu_custom_call.1} parent=5 // pred_region
        %s198 = ssub.s32 %s15, 1
        // Predicated region
        $region13: #{tpu_custom_call.1} parent=11 // pred_check
          %p199 = pneg %p48
        $region14: #{tpu_custom_call.1} parent=11 // pred_check_branch
          %201 = sbr.rel (%p199) target = $region16
        $region15: #{tpu_custom_call.1} parent=11 // pred_region
          %s203 = ssub.s32 32, 32
          %204 = vsyncadd [#allocation4], %s203
          %s206 = sshll.u32 %s0, 4
          %s207 = int_to_ptr.vmem [resolvable:$true] %s206
          %209 = dma.vmem_to_smem %s207, 32, [#allocation2], [#allocation4]
        $region16: #{tpu_custom_call.1} parent=11 // pred_fallthru
          _
        // Predicated region
        $region17: #{tpu_custom_call.1} parent=11 // pred_check
          %p210 = pneg %p74
        $region18: #{tpu_custom_call.1} parent=11 // pred_check_branch
          %212 = sbr.rel (%p210) target = $region20
        $region19: #{tpu_custom_call.1} parent=11 // pred_region
          %s213 = smul.u32 16, %s25
          %p214 = scmp.lt.s32.totalorder %s213, 15
          %s215 = scalar_select %p214, %s213, 15
          %s216 = scalar_lea.vmem %s1, %s215
          %s217 = smul.u32 16, %s25
        $region20: #{tpu_custom_call.1} parent=11 // pred_fallthru
          _
        // Predicated region
        $region21: #{tpu_custom_call.1} parent=11 // pred_check
          %p218 = pneg %p100
        $region22: #{tpu_custom_call.1} parent=11 // pred_check_branch
          %220 = sbr.rel (%p218) target = $region24
        $region23: #{tpu_custom_call.1} parent=11 // pred_region
          %s221 = smul.u32 16, %s25
          %p222 = scmp.lt.s32.totalorder %s221, 15
          %s223 = scalar_select %p222, %s221, 15
          %s224 = scalar_lea.vmem %s2, %s223
          %s225 = smul.u32 16, %s25
        $region24: #{tpu_custom_call.1} parent=11 // pred_fallthru
          _
      $region12: #{tpu_custom_call.1} parent=5 // pred_fallthru
        _
      %p226 = scmp.lt.s32.totalorder %s15, 2
      // Predicated region
      $region25: #{tpu_custom_call.1} parent=5 // pred_check
        %p227 = pneg %p226
      $region26: #{tpu_custom_call.1} parent=5 // pred_check_branch
        %229 = sbr.rel (%p227) target = $region28
      $region27: #{tpu_custom_call.1} parent=5 // pred_region
        // Predicated region
        $region29: #{tpu_custom_call.1} parent=27 // pred_check
          %p230 = pneg %p122
        $region30: #{tpu_custom_call.1} parent=27 // pred_check_branch
          %232 = sbr.rel (%p230) target = $region32
        $region31: #{tpu_custom_call.1} parent=27 // pred_region
          %s233 = smul.u32 16, %s23
          %p234 = scmp.lt.s32.totalorder %s22, 1
          %s235 = scalar_select %p234, %s22, 1
          %p236 = scmp.lt.s32.totalorder %s233, 15
          %s237 = scalar_select %p236, %s233, 15
          %s238 = smul.addr %s235, 16
          %s239 = sadd.s32 %s237, %s238
          %s240 = scalar_lea.vmem %s3, %s239
          %s241 = smul.u32 16, %s23
        $region32: #{tpu_custom_call.1} parent=27 // pred_fallthru
          _
        // Predicated region
        $region33: #{tpu_custom_call.1} parent=27 // pred_check
          %p242 = pneg %p150
        $region34: #{tpu_custom_call.1} parent=27 // pred_check_branch
          %244 = sbr.rel (%p242) target = $region36
        $region35: #{tpu_custom_call.1} parent=27 // pred_region
          %s245 = smul.u32 16, %s23
          %p246 = scmp.lt.s32.totalorder %s22, 1
          %s247 = scalar_select %p246, %s22, 1
          %p248 = scmp.lt.s32.totalorder %s245, 15
          %s249 = scalar_select %p248, %s245, 15
          %s250 = smul.addr %s249, 3
          %s251 = smul.addr %s247, 48
          %s252 = sadd.s32 %s250, %s251
          %s253 = smul.addr %s252, 8
          %s254 = scalar_lea.vmem %s4, %s253
          %s255 = smul.u32 16, %s23
        $region36: #{tpu_custom_call.1} parent=27 // pred_fallthru
          _
      $region28: #{tpu_custom_call.1} parent=5 // pred_fallthru
        _
      %p256 = scmp.le.s32.totalorder 1, %s15
      %p257 = scmp.lt.s32.totalorder %s15, 3
      %p258 = pnand %p256, %p257
      %p259 = pneg %p258
      // Predicated region
      $region37: #{tpu_custom_call.1} parent=5 // pred_check
        _
      $region38: #{tpu_custom_call.1} parent=5 // pred_check_branch
        %261 = sbr.rel (%p258) target = $region40
      $region39: #{tpu_custom_call.1} parent=5 // pred_region
        %s262 = ssub.s32 %s15, 1
        // Predicated region
        $region41: #{tpu_custom_call.1} parent=39 // pred_check
          %p263 = pneg %p48
        $region42: #{tpu_custom_call.1} parent=39 // pred_check_branch
          %265 = sbr.rel (%p263) target = $region44
        $region43: #{tpu_custom_call.1} parent=39 // pred_region
          %266 = dma.done [#allocation4], 32
        $region44: #{tpu_custom_call.1} parent=39 // pred_fallthru
          _
        %267 = sfence
        %p268 = pneg %p48
        %p269 = pneg %p45
        %s270 = smul.u32 16, %s25
        %p271 = scmp.lt.s32.totalorder %s270, 15
        %s272 = scalar_select %p271, %s270, 15
        %s273 = scalar_lea.vmem %s1, %s272
        %p274 = pneg %p74
        %p275 = pneg %p71
        %s276 = smul.u32 16, %s25
        %p277 = scmp.lt.s32.totalorder %s276, 15
        %s278 = scalar_select %p277, %s276, 15
        %s279 = scalar_lea.vmem %s2, %s278
        %p280 = pneg %p100
        %p281 = pneg %p97
        %s282 = smul.u32 16, %s25
        %p283 = scmp.lt.s32.totalorder %s24, 1
        %s284 = scalar_select %p283, %s24, 1
        %p285 = scmp.lt.s32.totalorder %s282, 15
        %s286 = scalar_select %p285, %s282, 15
        %s287 = smul.addr %s284, 16
        %s288 = sadd.s32 %s286, %s287
        %s289 = scalar_lea.vmem %s3, %s288
        %p290 = pneg %p128
        %p291 = pneg %p125
        %s292 = smul.u32 16, %s25
        %p293 = scmp.lt.s32.totalorder %s24, 1
        %s294 = scalar_select %p293, %s24, 1
        %p295 = scmp.lt.s32.totalorder %s292, 15
        %s296 = scalar_select %p295, %s292, 15
        %s297 = smul.addr %s296, 3
        %s298 = smul.addr %s294, 48
        %s299 = sadd.s32 %s297, %s298
        %s300 = smul.addr %s299, 8
        %s301 = scalar_lea.vmem %s4, %s300
        %p302 = pneg %p156
        %p303 = pneg %p153
        %p304 = pneg %p184
        %p305 = pneg %p181
        %s306 = sand.u32 %s171, 1
        %s307 = scalar_lea.sflag [#allocation3], %s306
        %s308 = sand.u32 %s171, 1
        %s309 = smul.addr %s308, 256
        %s310 = scalar_lea.vmem [#allocation5], %s309
        %s311 = smul.u32 16, %s25
        %p312 = scmp.lt.s32.totalorder %s311, 15
        %s313 = scalar_select %p312, %s311, 15
        %s314 = scalar_lea.vmem %s1, %s313
        %s315 = smul.u32 16, %s25
        %s316 = smul.u32 16, %s25
        %p317 = scmp.lt.s32.totalorder %s316, 15
        %s318 = scalar_select %p317, %s316, 15
        %s319 = scalar_lea.vmem %s2, %s318
        %s320 = smul.u32 16, %s25
        %s321 = smul.u32 16, %s25
        %p322 = scmp.lt.s32.totalorder %s24, 1
        %s323 = scalar_select %p322, %s24, 1
        %p324 = scmp.lt.s32.totalorder %s321, 15
        %s325 = scalar_select %p324, %s321, 15
        %s326 = smul.addr %s323, 16
        %s327 = sadd.s32 %s325, %s326
        %s328 = scalar_lea.vmem %s3, %s327
        %s329 = smul.u32 16, %s25
        %s330 = smul.u32 16, %s25
        %p331 = scmp.lt.s32.totalorder %s24, 1
        %s332 = scalar_select %p331, %s24, 1
        %p333 = scmp.lt.s32.totalorder %s330, 15
        %s334 = scalar_select %p333, %s330, 15
        %s335 = smul.addr %s334, 3
        %s336 = smul.addr %s332, 48
        %s337 = sadd.s32 %s335, %s336
        %s338 = smul.addr %s337, 8
        %s339 = scalar_lea.vmem %s4, %s338
        %s340 = smul.u32 16, %s25
        %s341 = smul.u32 16, %s25
        %s342 = smul.u32 %s25, 8
        %s343 = smul.u32 %s24, 8
        %s344 = sadd.s32 %s343, %s342
        %s345 = smul.u32 %s344, 9
        %s346 = sld [smem:[#allocation2 + %s345]]
        %s347 = sadd.s32 %s345, 1
        %s348 = sld [smem:[#allocation2 + %s347]]
        %s349 = sadd.s32 %s345, 2
        %s350 = sld [smem:[#allocation2 + %s349]]
        %s351 = sadd.s32 %s345, 3
        %s352 = sld [smem:[#allocation2 + %s351]]
        %s353 = sadd.s32 %s345, 4
        %s354 = sld [smem:[#allocation2 + %s353]]
        %s355 = sadd.s32 %s345, 5
        %s356 = sld [smem:[#allocation2 + %s355]]
        %s357 = sadd.s32 %s345, 6
        %s358 = sld [smem:[#allocation2 + %s357]]
        %s359 = sadd.s32 %s345, 7
        %s360 = sld [smem:[#allocation2 + %s359]]
        %s361 = sadd.s32 %s345, 8
        %s362 = sld [smem:[#allocation2 + %s361]]
        %v363 = vld [vmem:[%s339] sm:$0xff]
        %v364 = vld [vmem:[%s339 + $0x8] sm:$0xff]
        %v365 = vld [vmem:[%s339 + $0x18] sm:$0xff]
        %v366 = vld [vmem:[%s339 + $0x20] sm:$0xff]
        %v367 = vstv %s346
        %v368 = vmul.f32 %v363, %v367
        %v369 = vmul.f32 %v364, %v367
        %v370 = vmul.f32 %v365, %v367
        %v371 = vmul.f32 %v366, %v367
        %v372 = vstv %s348
        %v373 = vmul.f32 %v363, %v372
        %v374 = vmul.f32 %v364, %v372
        %v375 = vmul.f32 %v365, %v372
        %v376 = vmul.f32 %v366, %v372
        %381 = vrot.lane.b32.xlu0 %v373, 127
        %v382 = vpop.permute.xlu0 %381
        %383 = vrot.lane.b32.xlu0 %v374, 127
        %v384 = vpop.permute.xlu0 %383
        %385 = vrot.lane.b32.xlu0 %v375, 127
        %v386 = vpop.permute.xlu0 %385
        %387 = vrot.lane.b32.xlu0 %v376, 127
        %v388 = vpop.permute.xlu0 %387
        %v393 = vadd.f32 %v368, %v382
        %v394 = vadd.f32 %v369, %v384
        %v395 = vadd.f32 %v370, %v386
        %v396 = vadd.f32 %v371, %v388
        %v397 = vstv %s350
        %v398 = vmul.f32 %v363, %v397
        %v399 = vmul.f32 %v364, %v397
        %v400 = vmul.f32 %v365, %v397
        %v401 = vmul.f32 %v366, %v397
        %406 = vrot.lane.b32.xlu0 %v398, 126
        %v407 = vpop.permute.xlu0 %406
        %408 = vrot.lane.b32.xlu0 %v399, 126
        %v409 = vpop.permute.xlu0 %408
        %410 = vrot.lane.b32.xlu0 %v400, 126
        %v411 = vpop.permute.xlu0 %410
        %412 = vrot.lane.b32.xlu0 %v401, 126
        %v413 = vpop.permute.xlu0 %412
        %v418 = vadd.f32 %v393, %v407
        %v419 = vadd.f32 %v394, %v409
        %v420 = vadd.f32 %v395, %v411
        %v421 = vadd.f32 %v396, %v413
        %v422 = vld [vmem:[%s339 + $0x1] sm:$0xff]
        %v423 = vld [vmem:[%s339 + $0x9] sm:$0xff]
        %v424 = vld [vmem:[%s339 + $0x19] sm:$0xff]
        %v425 = vld [vmem:[%s339 + $0x21] sm:$0xff]
        %v426 = vstv %s352
        %v427 = vmul.f32 %v422, %v426
        %v428 = vmul.f32 %v423, %v426
        %v429 = vmul.f32 %v424, %v426
        %v430 = vmul.f32 %v425, %v426
        %v431 = vadd.f32 %v418, %v427
        %v432 = vadd.f32 %v419, %v428
        %v433 = vadd.f32 %v420, %v429
        %v434 = vadd.f32 %v421, %v430
        %v435 = vstv %s354
        %v436 = vmul.f32 %v422, %v435
        %v437 = vmul.f32 %v423, %v435
        %v438 = vmul.f32 %v424, %v435
        %v439 = vmul.f32 %v425, %v435
        %444 = vrot.lane.b32.xlu0 %v436, 127
        %v445 = vpop.permute.xlu0 %444
        %446 = vrot.lane.b32.xlu0 %v437, 127
        %v447 = vpop.permute.xlu0 %446
        %448 = vrot.lane.b32.xlu0 %v438, 127
        %v449 = vpop.permute.xlu0 %448
        %450 = vrot.lane.b32.xlu0 %v439, 127
        %v451 = vpop.permute.xlu0 %450
        %v456 = vadd.f32 %v431, %v445
        %v457 = vadd.f32 %v432, %v447
        %v458 = vadd.f32 %v433, %v449
        %v459 = vadd.f32 %v434, %v451
        %v460 = vstv %s356
        %v461 = vmul.f32 %v422, %v460
        %v462 = vmul.f32 %v423, %v460
        %v463 = vmul.f32 %v424, %v460
        %v464 = vmul.f32 %v425, %v460
        %469 = vrot.lane.b32.xlu0 %v461, 126
        %v470 = vpop.permute.xlu0 %469
        %471 = vrot.lane.b32.xlu0 %v462, 126
        %v472 = vpop.permute.xlu0 %471
        %473 = vrot.lane.b32.xlu0 %v463, 126
        %v474 = vpop.permute.xlu0 %473
        %475 = vrot.lane.b32.xlu0 %v464, 126
        %v476 = vpop.permute.xlu0 %475
        %v481 = vadd.f32 %v456, %v470
        %v482 = vadd.f32 %v457, %v472
        %v483 = vadd.f32 %v458, %v474
        %v484 = vadd.f32 %v459, %v476
        %v485 = vld [vmem:[%s339 + $0x2] sm:$0xff]
        %v486 = vld [vmem:[%s339 + $0xa] sm:$0xff]
        %v487 = vld [vmem:[%s339 + $0x1a] sm:$0xff]
        %v488 = vld [vmem:[%s339 + $0x22] sm:$0xff]
        %v489 = vstv %s358
        %v490 = vmul.f32 %v485, %v489
        %v491 = vmul.f32 %v486, %v489
        %v492 = vmul.f32 %v487, %v489
        %v493 = vmul.f32 %v488, %v489
        %v494 = vadd.f32 %v481, %v490
        %v495 = vadd.f32 %v482, %v491
        %v496 = vadd.f32 %v483, %v492
        %v497 = vadd.f32 %v484, %v493
        %v498 = vstv %s360
        %v499 = vmul.f32 %v485, %v498
        %v500 = vmul.f32 %v486, %v498
        %v501 = vmul.f32 %v487, %v498
        %v502 = vmul.f32 %v488, %v498
        %507 = vrot.lane.b32.xlu0 %v499, 127
        %v508 = vpop.permute.xlu0 %507
        %509 = vrot.lane.b32.xlu0 %v500, 127
        %v510 = vpop.permute.xlu0 %509
        %511 = vrot.lane.b32.xlu0 %v501, 127
        %v512 = vpop.permute.xlu0 %511
        %513 = vrot.lane.b32.xlu0 %v502, 127
        %v514 = vpop.permute.xlu0 %513
        %v519 = vadd.f32 %v494, %v508
        %v520 = vadd.f32 %v495, %v510
        %v521 = vadd.f32 %v496, %v512
        %v522 = vadd.f32 %v497, %v514
        %v523 = vstv %s362
        %v524 = vmul.f32 %v485, %v523
        %v525 = vmul.f32 %v486, %v523
        %v526 = vmul.f32 %v487, %v523
        %v527 = vmul.f32 %v488, %v523
        %532 = vrot.lane.b32.xlu0 %v524, 126
        %v533 = vpop.permute.xlu0 %532
        %534 = vrot.lane.b32.xlu0 %v525, 126
        %v535 = vpop.permute.xlu0 %534
        %536 = vrot.lane.b32.xlu0 %v526, 126
        %v537 = vpop.permute.xlu0 %536
        %538 = vrot.lane.b32.xlu0 %v527, 126
        %v539 = vpop.permute.xlu0 %538
        %v544 = vadd.f32 %v519, %v533
        %v545 = vadd.f32 %v520, %v535
        %v546 = vadd.f32 %v521, %v537
        %v547 = vadd.f32 %v522, %v539
        %v548 = vld [vmem:[%s314] sm:$0x1]
        %v549 = vld [vmem:[%s314 + $0x1] sm:$0x1]
        %v552 = vlaneseq
        %v553 = vshrl.u32 %v552, 7
        %v554 = vsub.s32 0, %v553
        %v555 = vrot.slane %v548, %v554
        %v556 = vlaneseq
        %v557 = vshrl.u32 %v556, 7
        %v558 = vsub.s32 0, %v557
        %v559 = vrot.slane %v549, %v558
        %560 = vset.pattern.permute.xlu0 0
        %561 = vperm.xlu0 %560, %v555
        %v562 = vpop.permute.xlu0 %561
        %564 = vset.pattern.permute.xlu0 0
        %565 = vperm.xlu0 %564, %v559
        %v566 = vpop.permute.xlu0 %565
        %v568 = vmul.f32 %v544, %v562
        %v569 = vmul.f32 %v545, %v562
        %v570 = vmul.f32 %v546, %v566
        %v571 = vmul.f32 %v547, %v566
        %v572 = vld [vmem:[%s319] sm:$0x1]
        %v573 = vld [vmem:[%s319 + $0x1] sm:$0x1]
        %v576 = vlaneseq
        %v577 = vshrl.u32 %v576, 7
        %v578 = vsub.s32 0, %v577
        %v579 = vrot.slane %v572, %v578
        %v580 = vlaneseq
        %v581 = vshrl.u32 %v580, 7
        %v582 = vsub.s32 0, %v581
        %v583 = vrot.slane %v573, %v582
        %584 = vset.pattern.permute.xlu0 0
        %585 = vperm.xlu0 %584, %v579
        %v586 = vpop.permute.xlu0 %585
        %588 = vset.pattern.permute.xlu0 0
        %589 = vperm.xlu0 %588, %v583
        %v590 = vpop.permute.xlu0 %589
        %v592 = vmul.f32 %v422, %v586
        %v593 = vmul.f32 %v423, %v586
        %v594 = vmul.f32 %v424, %v590
        %v595 = vmul.f32 %v425, %v590
        %600 = vrot.lane.b32.xlu0 %v592, 127
        %v601 = vpop.permute.xlu0 %600
        %602 = vrot.lane.b32.xlu0 %v593, 127
        %v603 = vpop.permute.xlu0 %602
        %604 = vrot.lane.b32.xlu0 %v594, 127
        %v605 = vpop.permute.xlu0 %604
        %606 = vrot.lane.b32.xlu0 %v595, 127
        %v607 = vpop.permute.xlu0 %606
        %v612 = vadd.f32 %v568, %v601
        %v613 = vadd.f32 %v569, %v603
        %v614 = vadd.f32 %v570, %v605
        %v615 = vadd.f32 %v571, %v607
        %v616 = vld [vmem:[%s328] sm:$0x1]
        %v617 = vld [vmem:[%s328 + $0x1] sm:$0x1]
        %v620 = vlaneseq
        %v621 = vshrl.u32 %v620, 7
        %v622 = vsub.s32 0, %v621
        %v623 = vrot.slane %v616, %v622
        %v624 = vlaneseq
        %v625 = vshrl.u32 %v624, 7
        %v626 = vsub.s32 0, %v625
        %v627 = vrot.slane %v617, %v626
        %628 = vset.pattern.permute.xlu0 0
        %629 = vperm.xlu0 %628, %v623
        %v630 = vpop.permute.xlu0 %629
        %632 = vset.pattern.permute.xlu0 0
        %633 = vperm.xlu0 %632, %v627
        %v634 = vpop.permute.xlu0 %633
        %v636 = vsub.f32 %v612, %v630
        %v637 = vsub.f32 %v613, %v630
        %v638 = vsub.f32 %v614, %v634
        %v639 = vsub.f32 %v615, %v634
        %vm640 = vcmask 130048
        %641 = vst.msk [vmem:[%s310] sm:$0xff] %vm640, %v636
        %642 = vst.msk [vmem:[%s310 + $0x8] sm:$0xff] %vm640, %v637
        %643 = vst.msk [vmem:[%s310 + $0x10] sm:$0xff] %vm640, %v638
        %644 = vst.msk [vmem:[%s310 + $0x18] sm:$0xff] %vm640, %v639
        %s645 = sadd.s32 %s342, 1
        %s646 = sadd.s32 %s343, %s645
        %s647 = smul.u32 %s646, 9
        %s648 = sld [smem:[#allocation2 + %s647]]
        %s649 = sadd.s32 %s647, 1
        %s650 = sld [smem:[#allocation2 + %s649]]
        %s651 = sadd.s32 %s647, 2
        %s652 = sld [smem:[#allocation2 + %s651]]
        %s653 = sadd.s32 %s647, 3
        %s654 = sld [smem:[#allocation2 + %s653]]
        %s655 = sadd.s32 %s647, 4
        %s656 = sld [smem:[#allocation2 + %s655]]
        %s657 = sadd.s32 %s647, 5
        %s658 = sld [smem:[#allocation2 + %s657]]
        %s659 = sadd.s32 %s647, 6
        %s660 = sld [smem:[#allocation2 + %s659]]
        %s661 = sadd.s32 %s647, 7
        %s662 = sld [smem:[#allocation2 + %s661]]
        %s663 = sadd.s32 %s647, 8
        %s664 = sld [smem:[#allocation2 + %s663]]
        %s665 = scalar_lea.vmem %s339, 48
        %v666 = vld [vmem:[%s665] sm:$0xff]
        %v667 = vld [vmem:[%s665 + $0x8] sm:$0xff]
        %v668 = vld [vmem:[%s665 + $0x18] sm:$0xff]
        %v669 = vld [vmem:[%s665 + $0x20] sm:$0xff]
        %v670 = vstv %s648
        %v671 = vmul.f32 %v666, %v670
        %v672 = vmul.f32 %v667, %v670
        %v673 = vmul.f32 %v668, %v670
        %v674 = vmul.f32 %v669, %v670
        %v675 = vstv %s650
        %v676 = vmul.f32 %v666, %v675
        %v677 = vmul.f32 %v667, %v675
        %v678 = vmul.f32 %v668, %v675
        %v679 = vmul.f32 %v669, %v675
        %684 = vrot.lane.b32.xlu0 %v676, 127
        %v685 = vpop.permute.xlu0 %684
        %686 = vrot.lane.b32.xlu0 %v677, 127
        %v687 = vpop.permute.xlu0 %686
        %688 = vrot.lane.b32.xlu0 %v678, 127
        %v689 = vpop.permute.xlu0 %688
        %690 = vrot.lane.b32.xlu0 %v679, 127
        %v691 = vpop.permute.xlu0 %690
        %v696 = vadd.f32 %v671, %v685
        %v697 = vadd.f32 %v672, %v687
        %v698 = vadd.f32 %v673, %v689
        %v699 = vadd.f32 %v674, %v691
        %v700 = vstv %s652
        %v701 = vmul.f32 %v666, %v700
        %v702 = vmul.f32 %v667, %v700
        %v703 = vmul.f32 %v668, %v700
        %v704 = vmul.f32 %v669, %v700
        %709 = vrot.lane.b32.xlu0 %v701, 126
        %v710 = vpop.permute.xlu0 %709
        %711 = vrot.lane.b32.xlu0 %v702, 126
        %v712 = vpop.permute.xlu0 %711
        %713 = vrot.lane.b32.xlu0 %v703, 126
        %v714 = vpop.permute.xlu0 %713
        %715 = vrot.lane.b32.xlu0 %v704, 126
        %v716 = vpop.permute.xlu0 %715
        %v721 = vadd.f32 %v696, %v710
        %v722 = vadd.f32 %v697, %v712
        %v723 = vadd.f32 %v698, %v714
        %v724 = vadd.f32 %v699, %v716
        %v725 = vld [vmem:[%s665 + $0x1] sm:$0xff]
        %v726 = vld [vmem:[%s665 + $0x9] sm:$0xff]
        %v727 = vld [vmem:[%s665 + $0x19] sm:$0xff]
        %v728 = vld [vmem:[%s665 + $0x21] sm:$0xff]
        %v729 = vstv %s654
        %v730 = vmul.f32 %v725, %v729
        %v731 = vmul.f32 %v726, %v729
        %v732 = vmul.f32 %v727, %v729
        %v733 = vmul.f32 %v728, %v729
        %v734 = vadd.f32 %v721, %v730
        %v735 = vadd.f32 %v722, %v731
        %v736 = vadd.f32 %v723, %v732
        %v737 = vadd.f32 %v724, %v733
        %v738 = vstv %s656
        %v739 = vmul.f32 %v725, %v738
        %v740 = vmul.f32 %v726, %v738
        %v741 = vmul.f32 %v727, %v738
        %v742 = vmul.f32 %v728, %v738
        %747 = vrot.lane.b32.xlu0 %v739, 127
        %v748 = vpop.permute.xlu0 %747
        %749 = vrot.lane.b32.xlu0 %v740, 127
        %v750 = vpop.permute.xlu0 %749
        %751 = vrot.lane.b32.xlu0 %v741, 127
        %v752 = vpop.permute.xlu0 %751
        %753 = vrot.lane.b32.xlu0 %v742, 127
        %v754 = vpop.permute.xlu0 %753
        %v759 = vadd.f32 %v734, %v748
        %v760 = vadd.f32 %v735, %v750
        %v761 = vadd.f32 %v736, %v752
        %v762 = vadd.f32 %v737, %v754
        %v763 = vstv %s658
        %v764 = vmul.f32 %v725, %v763
        %v765 = vmul.f32 %v726, %v763
        %v766 = vmul.f32 %v727, %v763
        %v767 = vmul.f32 %v728, %v763
        %772 = vrot.lane.b32.xlu0 %v764, 126
        %v773 = vpop.permute.xlu0 %772
        %774 = vrot.lane.b32.xlu0 %v765, 126
        %v775 = vpop.permute.xlu0 %774
        %776 = vrot.lane.b32.xlu0 %v766, 126
        %v777 = vpop.permute.xlu0 %776
        %778 = vrot.lane.b32.xlu0 %v767, 126
        %v779 = vpop.permute.xlu0 %778
        %v784 = vadd.f32 %v759, %v773
        %v785 = vadd.f32 %v760, %v775
        %v786 = vadd.f32 %v761, %v777
        %v787 = vadd.f32 %v762, %v779
        %v788 = vld [vmem:[%s665 + $0x2] sm:$0xff]
        %v789 = vld [vmem:[%s665 + $0xa] sm:$0xff]
        %v790 = vld [vmem:[%s665 + $0x1a] sm:$0xff]
        %v791 = vld [vmem:[%s665 + $0x22] sm:$0xff]
        %v792 = vstv %s660
        %v793 = vmul.f32 %v788, %v792
        %v794 = vmul.f32 %v789, %v792
        %v795 = vmul.f32 %v790, %v792
        %v796 = vmul.f32 %v791, %v792
        %v797 = vadd.f32 %v784, %v793
        %v798 = vadd.f32 %v785, %v794
        %v799 = vadd.f32 %v786, %v795
        %v800 = vadd.f32 %v787, %v796
        %v801 = vstv %s662
        %v802 = vmul.f32 %v788, %v801
        %v803 = vmul.f32 %v789, %v801
        %v804 = vmul.f32 %v790, %v801
        %v805 = vmul.f32 %v791, %v801
        %810 = vrot.lane.b32.xlu0 %v802, 127
        %v811 = vpop.permute.xlu0 %810
        %812 = vrot.lane.b32.xlu0 %v803, 127
        %v813 = vpop.permute.xlu0 %812
        %814 = vrot.lane.b32.xlu0 %v804, 127
        %v815 = vpop.permute.xlu0 %814
        %816 = vrot.lane.b32.xlu0 %v805, 127
        %v817 = vpop.permute.xlu0 %816
        %v822 = vadd.f32 %v797, %v811
        %v823 = vadd.f32 %v798, %v813
        %v824 = vadd.f32 %v799, %v815
        %v825 = vadd.f32 %v800, %v817
        %v826 = vstv %s664
        %v827 = vmul.f32 %v788, %v826
        %v828 = vmul.f32 %v789, %v826
        %v829 = vmul.f32 %v790, %v826
        %v830 = vmul.f32 %v791, %v826
        %835 = vrot.lane.b32.xlu0 %v827, 126
        %v836 = vpop.permute.xlu0 %835
        %837 = vrot.lane.b32.xlu0 %v828, 126
        %v838 = vpop.permute.xlu0 %837
        %839 = vrot.lane.b32.xlu0 %v829, 126
        %v840 = vpop.permute.xlu0 %839
        %841 = vrot.lane.b32.xlu0 %v830, 126
        %v842 = vpop.permute.xlu0 %841
        %v847 = vadd.f32 %v822, %v836
        %v848 = vadd.f32 %v823, %v838
        %v849 = vadd.f32 %v824, %v840
        %v850 = vadd.f32 %v825, %v842
        %s851 = scalar_lea.vmem %s314, 2
        %v852 = vld [vmem:[%s851] sm:$0x1]
        %v853 = vld [vmem:[%s851 + $0x1] sm:$0x1]
        %v856 = vlaneseq
        %v857 = vshrl.u32 %v856, 7
        %v858 = vsub.s32 0, %v857
        %v859 = vrot.slane %v852, %v858
        %v860 = vlaneseq
        %v861 = vshrl.u32 %v860, 7
        %v862 = vsub.s32 0, %v861
        %v863 = vrot.slane %v853, %v862
        %864 = vset.pattern.permute.xlu0 0
        %865 = vperm.xlu0 %864, %v859
        %v866 = vpop.permute.xlu0 %865
        %868 = vset.pattern.permute.xlu0 0
        %869 = vperm.xlu0 %868, %v863
        %v870 = vpop.permute.xlu0 %869
        %v872 = vmul.f32 %v847, %v866
        %v873 = vmul.f32 %v848, %v866
        %v874 = vmul.f32 %v849, %v870
        %v875 = vmul.f32 %v850, %v870
        %s876 = scalar_lea.vmem %s319, 2
        %v877 = vld [vmem:[%s876] sm:$0x1]
        %v878 = vld [vmem:[%s876 + $0x1] sm:$0x1]
        %v881 = vlaneseq
        %v882 = vshrl.u32 %v881, 7
        %v883 = vsub.s32 0, %v882
        %v884 = vrot.slane %v877, %v883
        %v885 = vlaneseq
        %v886 = vshrl.u32 %v885, 7
        %v887 = vsub.s32 0, %v886
        %v888 = vrot.slane %v878, %v887
        %889 = vset.pattern.permute.xlu0 0
        %890 = vperm.xlu0 %889, %v884
        %v891 = vpop.permute.xlu0 %890
        %893 = vset.pattern.permute.xlu0 0
        %894 = vperm.xlu0 %893, %v888
        %v895 = vpop.permute.xlu0 %894
        %v897 = vmul.f32 %v725, %v891
        %v898 = vmul.f32 %v726, %v891
        %v899 = vmul.f32 %v727, %v895
        %v900 = vmul.f32 %v728, %v895
        %905 = vrot.lane.b32.xlu0 %v897, 127
        %v906 = vpop.permute.xlu0 %905
        %907 = vrot.lane.b32.xlu0 %v898, 127
        %v908 = vpop.permute.xlu0 %907
        %909 = vrot.lane.b32.xlu0 %v899, 127
        %v910 = vpop.permute.xlu0 %909
        %911 = vrot.lane.b32.xlu0 %v900, 127
        %v912 = vpop.permute.xlu0 %911
        %v917 = vadd.f32 %v872, %v906
        %v918 = vadd.f32 %v873, %v908
        %v919 = vadd.f32 %v874, %v910
        %v920 = vadd.f32 %v875, %v912
        %s921 = scalar_lea.vmem %s328, 2
        %v922 = vld [vmem:[%s921] sm:$0x1]
        %v923 = vld [vmem:[%s921 + $0x1] sm:$0x1]
        %v926 = vlaneseq
        %v927 = vshrl.u32 %v926, 7
        %v928 = vsub.s32 0, %v927
        %v929 = vrot.slane %v922, %v928
        %v930 = vlaneseq
        %v931 = vshrl.u32 %v930, 7
        %v932 = vsub.s32 0, %v931
        %v933 = vrot.slane %v923, %v932
        %934 = vset.pattern.permute.xlu0 0
        %935 = vperm.xlu0 %934, %v929
        %v936 = vpop.permute.xlu0 %935
        %938 = vset.pattern.permute.xlu0 0
        %939 = vperm.xlu0 %938, %v933
        %v940 = vpop.permute.xlu0 %939
        %v942 = vsub.f32 %v917, %v936
        %v943 = vsub.f32 %v918, %v936
        %v944 = vsub.f32 %v919, %v940
        %v945 = vsub.f32 %v920, %v940
        %s946 = scalar_lea.vmem %s310, 32 [#allocation5]
        %947 = vst.msk [vmem:[%s946] sm:$0xff] %vm640, %v942
        %948 = vst.msk [vmem:[%s946 + $0x8] sm:$0xff] %vm640, %v943
        %949 = vst.msk [vmem:[%s946 + $0x10] sm:$0xff] %vm640, %v944
        %950 = vst.msk [vmem:[%s946 + $0x18] sm:$0xff] %vm640, %v945
        %s951 = sadd.s32 %s342, 2
        %s952 = sadd.s32 %s343, %s951
        %s953 = smul.u32 %s952, 9
        %s954 = sld [smem:[#allocation2 + %s953]]
        %s955 = sadd.s32 %s953, 1
        %s956 = sld [smem:[#allocation2 + %s955]]
        %s957 = sadd.s32 %s953, 2
        %s958 = sld [smem:[#allocation2 + %s957]]
        %s959 = sadd.s32 %s953, 3
        %s960 = sld [smem:[#allocation2 + %s959]]
        %s961 = sadd.s32 %s953, 4
        %s962 = sld [smem:[#allocation2 + %s961]]
        %s963 = sadd.s32 %s953, 5
        %s964 = sld [smem:[#allocation2 + %s963]]
        %s965 = sadd.s32 %s953, 6
        %s966 = sld [smem:[#allocation2 + %s965]]
        %s967 = sadd.s32 %s953, 7
        %s968 = sld [smem:[#allocation2 + %s967]]
        %s969 = sadd.s32 %s953, 8
        %s970 = sld [smem:[#allocation2 + %s969]]
        %s971 = scalar_lea.vmem %s339, 96
        %v972 = vld [vmem:[%s971] sm:$0xff]
        %v973 = vld [vmem:[%s971 + $0x8] sm:$0xff]
        %v974 = vld [vmem:[%s971 + $0x18] sm:$0xff]
        %v975 = vld [vmem:[%s971 + $0x20] sm:$0xff]
        %v976 = vstv %s954
        %v977 = vmul.f32 %v972, %v976
        %v978 = vmul.f32 %v973, %v976
        %v979 = vmul.f32 %v974, %v976
        %v980 = vmul.f32 %v975, %v976
        %v981 = vstv %s956
        %v982 = vmul.f32 %v972, %v981
        %v983 = vmul.f32 %v973, %v981
        %v984 = vmul.f32 %v974, %v981
        %v985 = vmul.f32 %v975, %v981
        %990 = vrot.lane.b32.xlu0 %v982, 127
        %v991 = vpop.permute.xlu0 %990
        %992 = vrot.lane.b32.xlu0 %v983, 127
        %v993 = vpop.permute.xlu0 %992
        %994 = vrot.lane.b32.xlu0 %v984, 127
        %v995 = vpop.permute.xlu0 %994
        %996 = vrot.lane.b32.xlu0 %v985, 127
        %v997 = vpop.permute.xlu0 %996
        %v1002 = vadd.f32 %v977, %v991
        %v1003 = vadd.f32 %v978, %v993
        %v1004 = vadd.f32 %v979, %v995
        %v1005 = vadd.f32 %v980, %v997
        %v1006 = vstv %s958
        %v1007 = vmul.f32 %v972, %v1006
        %v1008 = vmul.f32 %v973, %v1006
        %v1009 = vmul.f32 %v974, %v1006
        %v1010 = vmul.f32 %v975, %v1006
        %1015 = vrot.lane.b32.xlu0 %v1007, 126
        %v1016 = vpop.permute.xlu0 %1015
        %1017 = vrot.lane.b32.xlu0 %v1008, 126
        %v1018 = vpop.permute.xlu0 %1017
        %1019 = vrot.lane.b32.xlu0 %v1009, 126
        %v1020 = vpop.permute.xlu0 %1019
        %1021 = vrot.lane.b32.xlu0 %v1010, 126
        %v1022 = vpop.permute.xlu0 %1021
        %v1027 = vadd.f32 %v1002, %v1016
        %v1028 = vadd.f32 %v1003, %v1018
        %v1029 = vadd.f32 %v1004, %v1020
        %v1030 = vadd.f32 %v1005, %v1022
        %v1031 = vld [vmem:[%s971 + $0x1] sm:$0xff]
        %v1032 = vld [vmem:[%s971 + $0x9] sm:$0xff]
        %v1033 = vld [vmem:[%s971 + $0x19] sm:$0xff]
        %v1034 = vld [vmem:[%s971 + $0x21] sm:$0xff]
        %v1035 = vstv %s960
        %v1036 = vmul.f32 %v1031, %v1035
        %v1037 = vmul.f32 %v1032, %v1035
        %v1038 = vmul.f32 %v1033, %v1035
        %v1039 = vmul.f32 %v1034, %v1035
        %v1040 = vadd.f32 %v1027, %v1036
        %v1041 = vadd.f32 %v1028, %v1037
        %v1042 = vadd.f32 %v1029, %v1038
        %v1043 = vadd.f32 %v1030, %v1039
        %v1044 = vstv %s962
        %v1045 = vmul.f32 %v1031, %v1044
        %v1046 = vmul.f32 %v1032, %v1044
        %v1047 = vmul.f32 %v1033, %v1044
        %v1048 = vmul.f32 %v1034, %v1044
        %1053 = vrot.lane.b32.xlu0 %v1045, 127
        %v1054 = vpop.permute.xlu0 %1053
        %1055 = vrot.lane.b32.xlu0 %v1046, 127
        %v1056 = vpop.permute.xlu0 %1055
        %1057 = vrot.lane.b32.xlu0 %v1047, 127
        %v1058 = vpop.permute.xlu0 %1057
        %1059 = vrot.lane.b32.xlu0 %v1048, 127
        %v1060 = vpop.permute.xlu0 %1059
        %v1065 = vadd.f32 %v1040, %v1054
        %v1066 = vadd.f32 %v1041, %v1056
        %v1067 = vadd.f32 %v1042, %v1058
        %v1068 = vadd.f32 %v1043, %v1060
        %v1069 = vstv %s964
        %v1070 = vmul.f32 %v1031, %v1069
        %v1071 = vmul.f32 %v1032, %v1069
        %v1072 = vmul.f32 %v1033, %v1069
        %v1073 = vmul.f32 %v1034, %v1069
        %1078 = vrot.lane.b32.xlu0 %v1070, 126
        %v1079 = vpop.permute.xlu0 %1078
        %1080 = vrot.lane.b32.xlu0 %v1071, 126
        %v1081 = vpop.permute.xlu0 %1080
        %1082 = vrot.lane.b32.xlu0 %v1072, 126
        %v1083 = vpop.permute.xlu0 %1082
        %1084 = vrot.lane.b32.xlu0 %v1073, 126
        %v1085 = vpop.permute.xlu0 %1084
        %v1090 = vadd.f32 %v1065, %v1079
        %v1091 = vadd.f32 %v1066, %v1081
        %v1092 = vadd.f32 %v1067, %v1083
        %v1093 = vadd.f32 %v1068, %v1085
        %v1094 = vld [vmem:[%s971 + $0x2] sm:$0xff]
        %v1095 = vld [vmem:[%s971 + $0xa] sm:$0xff]
        %v1096 = vld [vmem:[%s971 + $0x1a] sm:$0xff]
        %v1097 = vld [vmem:[%s971 + $0x22] sm:$0xff]
        %v1098 = vstv %s966
        %v1099 = vmul.f32 %v1094, %v1098
        %v1100 = vmul.f32 %v1095, %v1098
        %v1101 = vmul.f32 %v1096, %v1098
        %v1102 = vmul.f32 %v1097, %v1098
        %v1103 = vadd.f32 %v1090, %v1099
        %v1104 = vadd.f32 %v1091, %v1100
        %v1105 = vadd.f32 %v1092, %v1101
        %v1106 = vadd.f32 %v1093, %v1102
        %v1107 = vstv %s968
        %v1108 = vmul.f32 %v1094, %v1107
        %v1109 = vmul.f32 %v1095, %v1107
        %v1110 = vmul.f32 %v1096, %v1107
        %v1111 = vmul.f32 %v1097, %v1107
        %1116 = vrot.lane.b32.xlu0 %v1108, 127
        %v1117 = vpop.permute.xlu0 %1116
        %1118 = vrot.lane.b32.xlu0 %v1109, 127
        %v1119 = vpop.permute.xlu0 %1118
        %1120 = vrot.lane.b32.xlu0 %v1110, 127
        %v1121 = vpop.permute.xlu0 %1120
        %1122 = vrot.lane.b32.xlu0 %v1111, 127
        %v1123 = vpop.permute.xlu0 %1122
        %v1128 = vadd.f32 %v1103, %v1117
        %v1129 = vadd.f32 %v1104, %v1119
        %v1130 = vadd.f32 %v1105, %v1121
        %v1131 = vadd.f32 %v1106, %v1123
        %v1132 = vstv %s970
        %v1133 = vmul.f32 %v1094, %v1132
        %v1134 = vmul.f32 %v1095, %v1132
        %v1135 = vmul.f32 %v1096, %v1132
        %v1136 = vmul.f32 %v1097, %v1132
        %1141 = vrot.lane.b32.xlu0 %v1133, 126
        %v1142 = vpop.permute.xlu0 %1141
        %1143 = vrot.lane.b32.xlu0 %v1134, 126
        %v1144 = vpop.permute.xlu0 %1143
        %1145 = vrot.lane.b32.xlu0 %v1135, 126
        %v1146 = vpop.permute.xlu0 %1145
        %1147 = vrot.lane.b32.xlu0 %v1136, 126
        %v1148 = vpop.permute.xlu0 %1147
        %v1153 = vadd.f32 %v1128, %v1142
        %v1154 = vadd.f32 %v1129, %v1144
        %v1155 = vadd.f32 %v1130, %v1146
        %v1156 = vadd.f32 %v1131, %v1148
        %s1157 = scalar_lea.vmem %s314, 4
        %v1158 = vld [vmem:[%s1157] sm:$0x1]
        %v1159 = vld [vmem:[%s1157 + $0x1] sm:$0x1]
        %v1162 = vlaneseq
        %v1163 = vshrl.u32 %v1162, 7
        %v1164 = vsub.s32 0, %v1163
        %v1165 = vrot.slane %v1158, %v1164
        %v1166 = vlaneseq
        %v1167 = vshrl.u32 %v1166, 7
        %v1168 = vsub.s32 0, %v1167
        %v1169 = vrot.slane %v1159, %v1168
        %1170 = vset.pattern.permute.xlu0 0
        %1171 = vperm.xlu0 %1170, %v1165
        %v1172 = vpop.permute.xlu0 %1171
        %1174 = vset.pattern.permute.xlu0 0
        %1175 = vperm.xlu0 %1174, %v1169
        %v1176 = vpop.permute.xlu0 %1175
        %v1178 = vmul.f32 %v1153, %v1172
        %v1179 = vmul.f32 %v1154, %v1172
        %v1180 = vmul.f32 %v1155, %v1176
        %v1181 = vmul.f32 %v1156, %v1176
        %s1182 = scalar_lea.vmem %s319, 4
        %v1183 = vld [vmem:[%s1182] sm:$0x1]
        %v1184 = vld [vmem:[%s1182 + $0x1] sm:$0x1]
        %v1187 = vlaneseq
        %v1188 = vshrl.u32 %v1187, 7
        %v1189 = vsub.s32 0, %v1188
        %v1190 = vrot.slane %v1183, %v1189
        %v1191 = vlaneseq
        %v1192 = vshrl.u32 %v1191, 7
        %v1193 = vsub.s32 0, %v1192
        %v1194 = vrot.slane %v1184, %v1193
        %1195 = vset.pattern.permute.xlu0 0
        %1196 = vperm.xlu0 %1195, %v1190
        %v1197 = vpop.permute.xlu0 %1196
        %1199 = vset.pattern.permute.xlu0 0
        %1200 = vperm.xlu0 %1199, %v1194
        %v1201 = vpop.permute.xlu0 %1200
        %v1203 = vmul.f32 %v1031, %v1197
        %v1204 = vmul.f32 %v1032, %v1197
        %v1205 = vmul.f32 %v1033, %v1201
        %v1206 = vmul.f32 %v1034, %v1201
        %1211 = vrot.lane.b32.xlu0 %v1203, 127
        %v1212 = vpop.permute.xlu0 %1211
        %1213 = vrot.lane.b32.xlu0 %v1204, 127
        %v1214 = vpop.permute.xlu0 %1213
        %1215 = vrot.lane.b32.xlu0 %v1205, 127
        %v1216 = vpop.permute.xlu0 %1215
        %1217 = vrot.lane.b32.xlu0 %v1206, 127
        %v1218 = vpop.permute.xlu0 %1217
        %v1223 = vadd.f32 %v1178, %v1212
        %v1224 = vadd.f32 %v1179, %v1214
        %v1225 = vadd.f32 %v1180, %v1216
        %v1226 = vadd.f32 %v1181, %v1218
        %s1227 = scalar_lea.vmem %s328, 4
        %v1228 = vld [vmem:[%s1227] sm:$0x1]
        %v1229 = vld [vmem:[%s1227 + $0x1] sm:$0x1]
        %v1232 = vlaneseq
        %v1233 = vshrl.u32 %v1232, 7
        %v1234 = vsub.s32 0, %v1233
        %v1235 = vrot.slane %v1228, %v1234
        %v1236 = vlaneseq
        %v1237 = vshrl.u32 %v1236, 7
        %v1238 = vsub.s32 0, %v1237
        %v1239 = vrot.slane %v1229, %v1238
        %1240 = vset.pattern.permute.xlu0 0
        %1241 = vperm.xlu0 %1240, %v1235
        %v1242 = vpop.permute.xlu0 %1241
        %1244 = vset.pattern.permute.xlu0 0
        %1245 = vperm.xlu0 %1244, %v1239
        %v1246 = vpop.permute.xlu0 %1245
        %v1248 = vsub.f32 %v1223, %v1242
        %v1249 = vsub.f32 %v1224, %v1242
        %v1250 = vsub.f32 %v1225, %v1246
        %v1251 = vsub.f32 %v1226, %v1246
        %s1252 = scalar_lea.vmem %s310, 64 [#allocation5]
        %1253 = vst.msk [vmem:[%s1252] sm:$0xff] %vm640, %v1248
        %1254 = vst.msk [vmem:[%s1252 + $0x8] sm:$0xff] %vm640, %v1249
        %1255 = vst.msk [vmem:[%s1252 + $0x10] sm:$0xff] %vm640, %v1250
        %1256 = vst.msk [vmem:[%s1252 + $0x18] sm:$0xff] %vm640, %v1251
        %s1257 = sadd.s32 %s342, 3
        %s1258 = sadd.s32 %s343, %s1257
        %s1259 = smul.u32 %s1258, 9
        %s1260 = sld [smem:[#allocation2 + %s1259]]
        %s1261 = sadd.s32 %s1259, 1
        %s1262 = sld [smem:[#allocation2 + %s1261]]
        %s1263 = sadd.s32 %s1259, 2
        %s1264 = sld [smem:[#allocation2 + %s1263]]
        %s1265 = sadd.s32 %s1259, 3
        %s1266 = sld [smem:[#allocation2 + %s1265]]
        %s1267 = sadd.s32 %s1259, 4
        %s1268 = sld [smem:[#allocation2 + %s1267]]
        %s1269 = sadd.s32 %s1259, 5
        %s1270 = sld [smem:[#allocation2 + %s1269]]
        %s1271 = sadd.s32 %s1259, 6
        %s1272 = sld [smem:[#allocation2 + %s1271]]
        %s1273 = sadd.s32 %s1259, 7
        %s1274 = sld [smem:[#allocation2 + %s1273]]
        %s1275 = sadd.s32 %s1259, 8
        %s1276 = sld [smem:[#allocation2 + %s1275]]
        %s1277 = scalar_lea.vmem %s339, 144
        %v1278 = vld [vmem:[%s1277] sm:$0xff]
        %v1279 = vld [vmem:[%s1277 + $0x8] sm:$0xff]
        %v1280 = vld [vmem:[%s1277 + $0x18] sm:$0xff]
        %v1281 = vld [vmem:[%s1277 + $0x20] sm:$0xff]
        %v1282 = vstv %s1260
        %v1283 = vmul.f32 %v1278, %v1282
        %v1284 = vmul.f32 %v1279, %v1282
        %v1285 = vmul.f32 %v1280, %v1282
        %v1286 = vmul.f32 %v1281, %v1282
        %v1287 = vstv %s1262
        %v1288 = vmul.f32 %v1278, %v1287
        %v1289 = vmul.f32 %v1279, %v1287
        %v1290 = vmul.f32 %v1280, %v1287
        %v1291 = vmul.f32 %v1281, %v1287
        %1296 = vrot.lane.b32.xlu0 %v1288, 127
        %v1297 = vpop.permute.xlu0 %1296
        %1298 = vrot.lane.b32.xlu0 %v1289, 127
        %v1299 = vpop.permute.xlu0 %1298
        %1300 = vrot.lane.b32.xlu0 %v1290, 127
        %v1301 = vpop.permute.xlu0 %1300
        %1302 = vrot.lane.b32.xlu0 %v1291, 127
        %v1303 = vpop.permute.xlu0 %1302
        %v1308 = vadd.f32 %v1283, %v1297
        %v1309 = vadd.f32 %v1284, %v1299
        %v1310 = vadd.f32 %v1285, %v1301
        %v1311 = vadd.f32 %v1286, %v1303
        %v1312 = vstv %s1264
        %v1313 = vmul.f32 %v1278, %v1312
        %v1314 = vmul.f32 %v1279, %v1312
        %v1315 = vmul.f32 %v1280, %v1312
        %v1316 = vmul.f32 %v1281, %v1312
        %1321 = vrot.lane.b32.xlu0 %v1313, 126
        %v1322 = vpop.permute.xlu0 %1321
        %1323 = vrot.lane.b32.xlu0 %v1314, 126
        %v1324 = vpop.permute.xlu0 %1323
        %1325 = vrot.lane.b32.xlu0 %v1315, 126
        %v1326 = vpop.permute.xlu0 %1325
        %1327 = vrot.lane.b32.xlu0 %v1316, 126
        %v1328 = vpop.permute.xlu0 %1327
        %v1333 = vadd.f32 %v1308, %v1322
        %v1334 = vadd.f32 %v1309, %v1324
        %v1335 = vadd.f32 %v1310, %v1326
        %v1336 = vadd.f32 %v1311, %v1328
        %v1337 = vld [vmem:[%s1277 + $0x1] sm:$0xff]
        %v1338 = vld [vmem:[%s1277 + $0x9] sm:$0xff]
        %v1339 = vld [vmem:[%s1277 + $0x19] sm:$0xff]
        %v1340 = vld [vmem:[%s1277 + $0x21] sm:$0xff]
        %v1341 = vstv %s1266
        %v1342 = vmul.f32 %v1337, %v1341
        %v1343 = vmul.f32 %v1338, %v1341
        %v1344 = vmul.f32 %v1339, %v1341
        %v1345 = vmul.f32 %v1340, %v1341
        %v1346 = vadd.f32 %v1333, %v1342
        %v1347 = vadd.f32 %v1334, %v1343
        %v1348 = vadd.f32 %v1335, %v1344
        %v1349 = vadd.f32 %v1336, %v1345
        %v1350 = vstv %s1268
        %v1351 = vmul.f32 %v1337, %v1350
        %v1352 = vmul.f32 %v1338, %v1350
        %v1353 = vmul.f32 %v1339, %v1350
        %v1354 = vmul.f32 %v1340, %v1350
        %1359 = vrot.lane.b32.xlu0 %v1351, 127
        %v1360 = vpop.permute.xlu0 %1359
        %1361 = vrot.lane.b32.xlu0 %v1352, 127
        %v1362 = vpop.permute.xlu0 %1361
        %1363 = vrot.lane.b32.xlu0 %v1353, 127
        %v1364 = vpop.permute.xlu0 %1363
        %1365 = vrot.lane.b32.xlu0 %v1354, 127
        %v1366 = vpop.permute.xlu0 %1365
        %v1371 = vadd.f32 %v1346, %v1360
        %v1372 = vadd.f32 %v1347, %v1362
        %v1373 = vadd.f32 %v1348, %v1364
        %v1374 = vadd.f32 %v1349, %v1366
        %v1375 = vstv %s1270
        %v1376 = vmul.f32 %v1337, %v1375
        %v1377 = vmul.f32 %v1338, %v1375
        %v1378 = vmul.f32 %v1339, %v1375
        %v1379 = vmul.f32 %v1340, %v1375
        %1384 = vrot.lane.b32.xlu0 %v1376, 126
        %v1385 = vpop.permute.xlu0 %1384
        %1386 = vrot.lane.b32.xlu0 %v1377, 126
        %v1387 = vpop.permute.xlu0 %1386
        %1388 = vrot.lane.b32.xlu0 %v1378, 126
        %v1389 = vpop.permute.xlu0 %1388
        %1390 = vrot.lane.b32.xlu0 %v1379, 126
        %v1391 = vpop.permute.xlu0 %1390
        %v1396 = vadd.f32 %v1371, %v1385
        %v1397 = vadd.f32 %v1372, %v1387
        %v1398 = vadd.f32 %v1373, %v1389
        %v1399 = vadd.f32 %v1374, %v1391
        %v1400 = vld [vmem:[%s1277 + $0x2] sm:$0xff]
        %v1401 = vld [vmem:[%s1277 + $0xa] sm:$0xff]
        %v1402 = vld [vmem:[%s1277 + $0x1a] sm:$0xff]
        %v1403 = vld [vmem:[%s1277 + $0x22] sm:$0xff]
        %v1404 = vstv %s1272
        %v1405 = vmul.f32 %v1400, %v1404
        %v1406 = vmul.f32 %v1401, %v1404
        %v1407 = vmul.f32 %v1402, %v1404
        %v1408 = vmul.f32 %v1403, %v1404
        %v1409 = vadd.f32 %v1396, %v1405
        %v1410 = vadd.f32 %v1397, %v1406
        %v1411 = vadd.f32 %v1398, %v1407
        %v1412 = vadd.f32 %v1399, %v1408
        %v1413 = vstv %s1274
        %v1414 = vmul.f32 %v1400, %v1413
        %v1415 = vmul.f32 %v1401, %v1413
        %v1416 = vmul.f32 %v1402, %v1413
        %v1417 = vmul.f32 %v1403, %v1413
        %1422 = vrot.lane.b32.xlu0 %v1414, 127
        %v1423 = vpop.permute.xlu0 %1422
        %1424 = vrot.lane.b32.xlu0 %v1415, 127
        %v1425 = vpop.permute.xlu0 %1424
        %1426 = vrot.lane.b32.xlu0 %v1416, 127
        %v1427 = vpop.permute.xlu0 %1426
        %1428 = vrot.lane.b32.xlu0 %v1417, 127
        %v1429 = vpop.permute.xlu0 %1428
        %v1434 = vadd.f32 %v1409, %v1423
        %v1435 = vadd.f32 %v1410, %v1425
        %v1436 = vadd.f32 %v1411, %v1427
        %v1437 = vadd.f32 %v1412, %v1429
        %v1438 = vstv %s1276
        %v1439 = vmul.f32 %v1400, %v1438
        %v1440 = vmul.f32 %v1401, %v1438
        %v1441 = vmul.f32 %v1402, %v1438
        %v1442 = vmul.f32 %v1403, %v1438
        %1447 = vrot.lane.b32.xlu0 %v1439, 126
        %v1448 = vpop.permute.xlu0 %1447
        %1449 = vrot.lane.b32.xlu0 %v1440, 126
        %v1450 = vpop.permute.xlu0 %1449
        %1451 = vrot.lane.b32.xlu0 %v1441, 126
        %v1452 = vpop.permute.xlu0 %1451
        %1453 = vrot.lane.b32.xlu0 %v1442, 126
        %v1454 = vpop.permute.xlu0 %1453
        %v1459 = vadd.f32 %v1434, %v1448
        %v1460 = vadd.f32 %v1435, %v1450
        %v1461 = vadd.f32 %v1436, %v1452
        %v1462 = vadd.f32 %v1437, %v1454
        %s1463 = scalar_lea.vmem %s314, 6
        %v1464 = vld [vmem:[%s1463] sm:$0x1]
        %v1465 = vld [vmem:[%s1463 + $0x1] sm:$0x1]
        %v1468 = vlaneseq
        %v1469 = vshrl.u32 %v1468, 7
        %v1470 = vsub.s32 0, %v1469
        %v1471 = vrot.slane %v1464, %v1470
        %v1472 = vlaneseq
        %v1473 = vshrl.u32 %v1472, 7
        %v1474 = vsub.s32 0, %v1473
        %v1475 = vrot.slane %v1465, %v1474
        %1476 = vset.pattern.permute.xlu0 0
        %1477 = vperm.xlu0 %1476, %v1471
        %v1478 = vpop.permute.xlu0 %1477
        %1480 = vset.pattern.permute.xlu0 0
        %1481 = vperm.xlu0 %1480, %v1475
        %v1482 = vpop.permute.xlu0 %1481
        %v1484 = vmul.f32 %v1459, %v1478
        %v1485 = vmul.f32 %v1460, %v1478
        %v1486 = vmul.f32 %v1461, %v1482
        %v1487 = vmul.f32 %v1462, %v1482
        %s1488 = scalar_lea.vmem %s319, 6
        %v1489 = vld [vmem:[%s1488] sm:$0x1]
        %v1490 = vld [vmem:[%s1488 + $0x1] sm:$0x1]
        %v1493 = vlaneseq
        %v1494 = vshrl.u32 %v1493, 7
        %v1495 = vsub.s32 0, %v1494
        %v1496 = vrot.slane %v1489, %v1495
        %v1497 = vlaneseq
        %v1498 = vshrl.u32 %v1497, 7
        %v1499 = vsub.s32 0, %v1498
        %v1500 = vrot.slane %v1490, %v1499
        %1501 = vset.pattern.permute.xlu0 0
        %1502 = vperm.xlu0 %1501, %v1496
        %v1503 = vpop.permute.xlu0 %1502
        %1505 = vset.pattern.permute.xlu0 0
        %1506 = vperm.xlu0 %1505, %v1500
        %v1507 = vpop.permute.xlu0 %1506
        %v1509 = vmul.f32 %v1337, %v1503
        %v1510 = vmul.f32 %v1338, %v1503
        %v1511 = vmul.f32 %v1339, %v1507
        %v1512 = vmul.f32 %v1340, %v1507
        %1517 = vrot.lane.b32.xlu0 %v1509, 127
        %v1518 = vpop.permute.xlu0 %1517
        %1519 = vrot.lane.b32.xlu0 %v1510, 127
        %v1520 = vpop.permute.xlu0 %1519
        %1521 = vrot.lane.b32.xlu0 %v1511, 127
        %v1522 = vpop.permute.xlu0 %1521
        %1523 = vrot.lane.b32.xlu0 %v1512, 127
        %v1524 = vpop.permute.xlu0 %1523
        %v1529 = vadd.f32 %v1484, %v1518
        %v1530 = vadd.f32 %v1485, %v1520
        %v1531 = vadd.f32 %v1486, %v1522
        %v1532 = vadd.f32 %v1487, %v1524
        %s1533 = scalar_lea.vmem %s328, 6
        %v1534 = vld [vmem:[%s1533] sm:$0x1]
        %v1535 = vld [vmem:[%s1533 + $0x1] sm:$0x1]
        %v1538 = vlaneseq
        %v1539 = vshrl.u32 %v1538, 7
        %v1540 = vsub.s32 0, %v1539
        %v1541 = vrot.slane %v1534, %v1540
        %v1542 = vlaneseq
        %v1543 = vshrl.u32 %v1542, 7
        %v1544 = vsub.s32 0, %v1543
        %v1545 = vrot.slane %v1535, %v1544
        %1546 = vset.pattern.permute.xlu0 0
        %1547 = vperm.xlu0 %1546, %v1541
        %v1548 = vpop.permute.xlu0 %1547
        %1550 = vset.pattern.permute.xlu0 0
        %1551 = vperm.xlu0 %1550, %v1545
        %v1552 = vpop.permute.xlu0 %1551
        %v1554 = vsub.f32 %v1529, %v1548
        %v1555 = vsub.f32 %v1530, %v1548
        %v1556 = vsub.f32 %v1531, %v1552
        %v1557 = vsub.f32 %v1532, %v1552
        %s1558 = scalar_lea.vmem %s310, 96 [#allocation5]
        %1559 = vst.msk [vmem:[%s1558] sm:$0xff] %vm640, %v1554
        %1560 = vst.msk [vmem:[%s1558 + $0x8] sm:$0xff] %vm640, %v1555
        %1561 = vst.msk [vmem:[%s1558 + $0x10] sm:$0xff] %vm640, %v1556
        %1562 = vst.msk [vmem:[%s1558 + $0x18] sm:$0xff] %vm640, %v1557
        %s1563 = sadd.s32 %s342, 4
        %s1564 = sadd.s32 %s343, %s1563
        %s1565 = smul.u32 %s1564, 9
        %s1566 = sld [smem:[#allocation2 + %s1565]]
        %s1567 = sadd.s32 %s1565, 1
        %s1568 = sld [smem:[#allocation2 + %s1567]]
        %s1569 = sadd.s32 %s1565, 2
        %s1570 = sld [smem:[#allocation2 + %s1569]]
        %s1571 = sadd.s32 %s1565, 3
        %s1572 = sld [smem:[#allocation2 + %s1571]]
        %s1573 = sadd.s32 %s1565, 4
        %s1574 = sld [smem:[#allocation2 + %s1573]]
        %s1575 = sadd.s32 %s1565, 5
        %s1576 = sld [smem:[#allocation2 + %s1575]]
        %s1577 = sadd.s32 %s1565, 6
        %s1578 = sld [smem:[#allocation2 + %s1577]]
        %s1579 = sadd.s32 %s1565, 7
        %s1580 = sld [smem:[#allocation2 + %s1579]]
        %s1581 = sadd.s32 %s1565, 8
        %s1582 = sld [smem:[#allocation2 + %s1581]]
        %s1583 = scalar_lea.vmem %s339, 192
        %v1584 = vld [vmem:[%s1583] sm:$0xff]
        %v1585 = vld [vmem:[%s1583 + $0x8] sm:$0xff]
        %v1586 = vld [vmem:[%s1583 + $0x18] sm:$0xff]
        %v1587 = vld [vmem:[%s1583 + $0x20] sm:$0xff]
        %v1588 = vstv %s1566
        %v1589 = vmul.f32 %v1584, %v1588
        %v1590 = vmul.f32 %v1585, %v1588
        %v1591 = vmul.f32 %v1586, %v1588
        %v1592 = vmul.f32 %v1587, %v1588
        %v1593 = vstv %s1568
        %v1594 = vmul.f32 %v1584, %v1593
        %v1595 = vmul.f32 %v1585, %v1593
        %v1596 = vmul.f32 %v1586, %v1593
        %v1597 = vmul.f32 %v1587, %v1593
        %1602 = vrot.lane.b32.xlu0 %v1594, 127
        %v1603 = vpop.permute.xlu0 %1602
        %1604 = vrot.lane.b32.xlu0 %v1595, 127
        %v1605 = vpop.permute.xlu0 %1604
        %1606 = vrot.lane.b32.xlu0 %v1596, 127
        %v1607 = vpop.permute.xlu0 %1606
        %1608 = vrot.lane.b32.xlu0 %v1597, 127
        %v1609 = vpop.permute.xlu0 %1608
        %v1614 = vadd.f32 %v1589, %v1603
        %v1615 = vadd.f32 %v1590, %v1605
        %v1616 = vadd.f32 %v1591, %v1607
        %v1617 = vadd.f32 %v1592, %v1609
        %v1618 = vstv %s1570
        %v1619 = vmul.f32 %v1584, %v1618
        %v1620 = vmul.f32 %v1585, %v1618
        %v1621 = vmul.f32 %v1586, %v1618
        %v1622 = vmul.f32 %v1587, %v1618
        %1627 = vrot.lane.b32.xlu0 %v1619, 126
        %v1628 = vpop.permute.xlu0 %1627
        %1629 = vrot.lane.b32.xlu0 %v1620, 126
        %v1630 = vpop.permute.xlu0 %1629
        %1631 = vrot.lane.b32.xlu0 %v1621, 126
        %v1632 = vpop.permute.xlu0 %1631
        %1633 = vrot.lane.b32.xlu0 %v1622, 126
        %v1634 = vpop.permute.xlu0 %1633
        %v1639 = vadd.f32 %v1614, %v1628
        %v1640 = vadd.f32 %v1615, %v1630
        %v1641 = vadd.f32 %v1616, %v1632
        %v1642 = vadd.f32 %v1617, %v1634
        %v1643 = vld [vmem:[%s1583 + $0x1] sm:$0xff]
        %v1644 = vld [vmem:[%s1583 + $0x9] sm:$0xff]
        %v1645 = vld [vmem:[%s1583 + $0x19] sm:$0xff]
        %v1646 = vld [vmem:[%s1583 + $0x21] sm:$0xff]
        %v1647 = vstv %s1572
        %v1648 = vmul.f32 %v1643, %v1647
        %v1649 = vmul.f32 %v1644, %v1647
        %v1650 = vmul.f32 %v1645, %v1647
        %v1651 = vmul.f32 %v1646, %v1647
        %v1652 = vadd.f32 %v1639, %v1648
        %v1653 = vadd.f32 %v1640, %v1649
        %v1654 = vadd.f32 %v1641, %v1650
        %v1655 = vadd.f32 %v1642, %v1651
        %v1656 = vstv %s1574
        %v1657 = vmul.f32 %v1643, %v1656
        %v1658 = vmul.f32 %v1644, %v1656
        %v1659 = vmul.f32 %v1645, %v1656
        %v1660 = vmul.f32 %v1646, %v1656
        %1665 = vrot.lane.b32.xlu0 %v1657, 127
        %v1666 = vpop.permute.xlu0 %1665
        %1667 = vrot.lane.b32.xlu0 %v1658, 127
        %v1668 = vpop.permute.xlu0 %1667
        %1669 = vrot.lane.b32.xlu0 %v1659, 127
        %v1670 = vpop.permute.xlu0 %1669
        %1671 = vrot.lane.b32.xlu0 %v1660, 127
        %v1672 = vpop.permute.xlu0 %1671
        %v1677 = vadd.f32 %v1652, %v1666
        %v1678 = vadd.f32 %v1653, %v1668
        %v1679 = vadd.f32 %v1654, %v1670
        %v1680 = vadd.f32 %v1655, %v1672
        %v1681 = vstv %s1576
        %v1682 = vmul.f32 %v1643, %v1681
        %v1683 = vmul.f32 %v1644, %v1681
        %v1684 = vmul.f32 %v1645, %v1681
        %v1685 = vmul.f32 %v1646, %v1681
        %1690 = vrot.lane.b32.xlu0 %v1682, 126
        %v1691 = vpop.permute.xlu0 %1690
        %1692 = vrot.lane.b32.xlu0 %v1683, 126
        %v1693 = vpop.permute.xlu0 %1692
        %1694 = vrot.lane.b32.xlu0 %v1684, 126
        %v1695 = vpop.permute.xlu0 %1694
        %1696 = vrot.lane.b32.xlu0 %v1685, 126
        %v1697 = vpop.permute.xlu0 %1696
        %v1702 = vadd.f32 %v1677, %v1691
        %v1703 = vadd.f32 %v1678, %v1693
        %v1704 = vadd.f32 %v1679, %v1695
        %v1705 = vadd.f32 %v1680, %v1697
        %v1706 = vld [vmem:[%s1583 + $0x2] sm:$0xff]
        %v1707 = vld [vmem:[%s1583 + $0xa] sm:$0xff]
        %v1708 = vld [vmem:[%s1583 + $0x1a] sm:$0xff]
        %v1709 = vld [vmem:[%s1583 + $0x22] sm:$0xff]
        %v1710 = vstv %s1578
        %v1711 = vmul.f32 %v1706, %v1710
        %v1712 = vmul.f32 %v1707, %v1710
        %v1713 = vmul.f32 %v1708, %v1710
        %v1714 = vmul.f32 %v1709, %v1710
        %v1715 = vadd.f32 %v1702, %v1711
        %v1716 = vadd.f32 %v1703, %v1712
        %v1717 = vadd.f32 %v1704, %v1713
        %v1718 = vadd.f32 %v1705, %v1714
        %v1719 = vstv %s1580
        %v1720 = vmul.f32 %v1706, %v1719
        %v1721 = vmul.f32 %v1707, %v1719
        %v1722 = vmul.f32 %v1708, %v1719
        %v1723 = vmul.f32 %v1709, %v1719
        %1728 = vrot.lane.b32.xlu0 %v1720, 127
        %v1729 = vpop.permute.xlu0 %1728
        %1730 = vrot.lane.b32.xlu0 %v1721, 127
        %v1731 = vpop.permute.xlu0 %1730
        %1732 = vrot.lane.b32.xlu0 %v1722, 127
        %v1733 = vpop.permute.xlu0 %1732
        %1734 = vrot.lane.b32.xlu0 %v1723, 127
        %v1735 = vpop.permute.xlu0 %1734
        %v1740 = vadd.f32 %v1715, %v1729
        %v1741 = vadd.f32 %v1716, %v1731
        %v1742 = vadd.f32 %v1717, %v1733
        %v1743 = vadd.f32 %v1718, %v1735
        %v1744 = vstv %s1582
        %v1745 = vmul.f32 %v1706, %v1744
        %v1746 = vmul.f32 %v1707, %v1744
        %v1747 = vmul.f32 %v1708, %v1744
        %v1748 = vmul.f32 %v1709, %v1744
        %1753 = vrot.lane.b32.xlu0 %v1745, 126
        %v1754 = vpop.permute.xlu0 %1753
        %1755 = vrot.lane.b32.xlu0 %v1746, 126
        %v1756 = vpop.permute.xlu0 %1755
        %1757 = vrot.lane.b32.xlu0 %v1747, 126
        %v1758 = vpop.permute.xlu0 %1757
        %1759 = vrot.lane.b32.xlu0 %v1748, 126
        %v1760 = vpop.permute.xlu0 %1759
        %v1765 = vadd.f32 %v1740, %v1754
        %v1766 = vadd.f32 %v1741, %v1756
        %v1767 = vadd.f32 %v1742, %v1758
        %v1768 = vadd.f32 %v1743, %v1760
        %s1769 = scalar_lea.vmem %s314, 8
        %v1770 = vld [vmem:[%s1769] sm:$0x1]
        %v1771 = vld [vmem:[%s1769 + $0x1] sm:$0x1]
        %v1774 = vlaneseq
        %v1775 = vshrl.u32 %v1774, 7
        %v1776 = vsub.s32 0, %v1775
        %v1777 = vrot.slane %v1770, %v1776
        %v1778 = vlaneseq
        %v1779 = vshrl.u32 %v1778, 7
        %v1780 = vsub.s32 0, %v1779
        %v1781 = vrot.slane %v1771, %v1780
        %1782 = vset.pattern.permute.xlu0 0
        %1783 = vperm.xlu0 %1782, %v1777
        %v1784 = vpop.permute.xlu0 %1783
        %1786 = vset.pattern.permute.xlu0 0
        %1787 = vperm.xlu0 %1786, %v1781
        %v1788 = vpop.permute.xlu0 %1787
        %v1790 = vmul.f32 %v1765, %v1784
        %v1791 = vmul.f32 %v1766, %v1784
        %v1792 = vmul.f32 %v1767, %v1788
        %v1793 = vmul.f32 %v1768, %v1788
        %s1794 = scalar_lea.vmem %s319, 8
        %v1795 = vld [vmem:[%s1794] sm:$0x1]
        %v1796 = vld [vmem:[%s1794 + $0x1] sm:$0x1]
        %v1799 = vlaneseq
        %v1800 = vshrl.u32 %v1799, 7
        %v1801 = vsub.s32 0, %v1800
        %v1802 = vrot.slane %v1795, %v1801
        %v1803 = vlaneseq
        %v1804 = vshrl.u32 %v1803, 7
        %v1805 = vsub.s32 0, %v1804
        %v1806 = vrot.slane %v1796, %v1805
        %1807 = vset.pattern.permute.xlu0 0
        %1808 = vperm.xlu0 %1807, %v1802
        %v1809 = vpop.permute.xlu0 %1808
        %1811 = vset.pattern.permute.xlu0 0
        %1812 = vperm.xlu0 %1811, %v1806
        %v1813 = vpop.permute.xlu0 %1812
        %v1815 = vmul.f32 %v1643, %v1809
        %v1816 = vmul.f32 %v1644, %v1809
        %v1817 = vmul.f32 %v1645, %v1813
        %v1818 = vmul.f32 %v1646, %v1813
        %1823 = vrot.lane.b32.xlu0 %v1815, 127
        %v1824 = vpop.permute.xlu0 %1823
        %1825 = vrot.lane.b32.xlu0 %v1816, 127
        %v1826 = vpop.permute.xlu0 %1825
        %1827 = vrot.lane.b32.xlu0 %v1817, 127
        %v1828 = vpop.permute.xlu0 %1827
        %1829 = vrot.lane.b32.xlu0 %v1818, 127
        %v1830 = vpop.permute.xlu0 %1829
        %v1835 = vadd.f32 %v1790, %v1824
        %v1836 = vadd.f32 %v1791, %v1826
        %v1837 = vadd.f32 %v1792, %v1828
        %v1838 = vadd.f32 %v1793, %v1830
        %s1839 = scalar_lea.vmem %s328, 8
        %v1840 = vld [vmem:[%s1839] sm:$0x1]
        %v1841 = vld [vmem:[%s1839 + $0x1] sm:$0x1]
        %v1844 = vlaneseq
        %v1845 = vshrl.u32 %v1844, 7
        %v1846 = vsub.s32 0, %v1845
        %v1847 = vrot.slane %v1840, %v1846
        %v1848 = vlaneseq
        %v1849 = vshrl.u32 %v1848, 7
        %v1850 = vsub.s32 0, %v1849
        %v1851 = vrot.slane %v1841, %v1850
        %1852 = vset.pattern.permute.xlu0 0
        %1853 = vperm.xlu0 %1852, %v1847
        %v1854 = vpop.permute.xlu0 %1853
        %1856 = vset.pattern.permute.xlu0 0
        %1857 = vperm.xlu0 %1856, %v1851
        %v1858 = vpop.permute.xlu0 %1857
        %v1860 = vsub.f32 %v1835, %v1854
        %v1861 = vsub.f32 %v1836, %v1854
        %v1862 = vsub.f32 %v1837, %v1858
        %v1863 = vsub.f32 %v1838, %v1858
        %s1864 = scalar_lea.vmem %s310, 128 [#allocation5]
        %1865 = vst.msk [vmem:[%s1864] sm:$0xff] %vm640, %v1860
        %1866 = vst.msk [vmem:[%s1864 + $0x8] sm:$0xff] %vm640, %v1861
        %1867 = vst.msk [vmem:[%s1864 + $0x10] sm:$0xff] %vm640, %v1862
        %1868 = vst.msk [vmem:[%s1864 + $0x18] sm:$0xff] %vm640, %v1863
        %s1869 = sadd.s32 %s342, 5
        %s1870 = sadd.s32 %s343, %s1869
        %s1871 = smul.u32 %s1870, 9
        %s1872 = sld [smem:[#allocation2 + %s1871]]
        %s1873 = sadd.s32 %s1871, 1
        %s1874 = sld [smem:[#allocation2 + %s1873]]
        %s1875 = sadd.s32 %s1871, 2
        %s1876 = sld [smem:[#allocation2 + %s1875]]
        %s1877 = sadd.s32 %s1871, 3
        %s1878 = sld [smem:[#allocation2 + %s1877]]
        %s1879 = sadd.s32 %s1871, 4
        %s1880 = sld [smem:[#allocation2 + %s1879]]
        %s1881 = sadd.s32 %s1871, 5
        %s1882 = sld [smem:[#allocation2 + %s1881]]
        %s1883 = sadd.s32 %s1871, 6
        %s1884 = sld [smem:[#allocation2 + %s1883]]
        %s1885 = sadd.s32 %s1871, 7
        %s1886 = sld [smem:[#allocation2 + %s1885]]
        %s1887 = sadd.s32 %s1871, 8
        %s1888 = sld [smem:[#allocation2 + %s1887]]
        %s1889 = scalar_lea.vmem %s339, 240
        %v1890 = vld [vmem:[%s1889] sm:$0xff]
        %v1891 = vld [vmem:[%s1889 + $0x8] sm:$0xff]
        %v1892 = vld [vmem:[%s1889 + $0x18] sm:$0xff]
        %v1893 = vld [vmem:[%s1889 + $0x20] sm:$0xff]
        %v1894 = vstv %s1872
        %v1895 = vmul.f32 %v1890, %v1894
        %v1896 = vmul.f32 %v1891, %v1894
        %v1897 = vmul.f32 %v1892, %v1894
        %v1898 = vmul.f32 %v1893, %v1894
        %v1899 = vstv %s1874
        %v1900 = vmul.f32 %v1890, %v1899
        %v1901 = vmul.f32 %v1891, %v1899
        %v1902 = vmul.f32 %v1892, %v1899
        %v1903 = vmul.f32 %v1893, %v1899
        %1908 = vrot.lane.b32.xlu0 %v1900, 127
        %v1909 = vpop.permute.xlu0 %1908
        %1910 = vrot.lane.b32.xlu0 %v1901, 127
        %v1911 = vpop.permute.xlu0 %1910
        %1912 = vrot.lane.b32.xlu0 %v1902, 127
        %v1913 = vpop.permute.xlu0 %1912
        %1914 = vrot.lane.b32.xlu0 %v1903, 127
        %v1915 = vpop.permute.xlu0 %1914
        %v1920 = vadd.f32 %v1895, %v1909
        %v1921 = vadd.f32 %v1896, %v1911
        %v1922 = vadd.f32 %v1897, %v1913
        %v1923 = vadd.f32 %v1898, %v1915
        %v1924 = vstv %s1876
        %v1925 = vmul.f32 %v1890, %v1924
        %v1926 = vmul.f32 %v1891, %v1924
        %v1927 = vmul.f32 %v1892, %v1924
        %v1928 = vmul.f32 %v1893, %v1924
        %1933 = vrot.lane.b32.xlu0 %v1925, 126
        %v1934 = vpop.permute.xlu0 %1933
        %1935 = vrot.lane.b32.xlu0 %v1926, 126
        %v1936 = vpop.permute.xlu0 %1935
        %1937 = vrot.lane.b32.xlu0 %v1927, 126
        %v1938 = vpop.permute.xlu0 %1937
        %1939 = vrot.lane.b32.xlu0 %v1928, 126
        %v1940 = vpop.permute.xlu0 %1939
        %v1945 = vadd.f32 %v1920, %v1934
        %v1946 = vadd.f32 %v1921, %v1936
        %v1947 = vadd.f32 %v1922, %v1938
        %v1948 = vadd.f32 %v1923, %v1940
        %v1949 = vld [vmem:[%s1889 + $0x1] sm:$0xff]
        %v1950 = vld [vmem:[%s1889 + $0x9] sm:$0xff]
        %v1951 = vld [vmem:[%s1889 + $0x19] sm:$0xff]
        %v1952 = vld [vmem:[%s1889 + $0x21] sm:$0xff]
        %v1953 = vstv %s1878
        %v1954 = vmul.f32 %v1949, %v1953
        %v1955 = vmul.f32 %v1950, %v1953
        %v1956 = vmul.f32 %v1951, %v1953
        %v1957 = vmul.f32 %v1952, %v1953
        %v1958 = vadd.f32 %v1945, %v1954
        %v1959 = vadd.f32 %v1946, %v1955
        %v1960 = vadd.f32 %v1947, %v1956
        %v1961 = vadd.f32 %v1948, %v1957
        %v1962 = vstv %s1880
        %v1963 = vmul.f32 %v1949, %v1962
        %v1964 = vmul.f32 %v1950, %v1962
        %v1965 = vmul.f32 %v1951, %v1962
        %v1966 = vmul.f32 %v1952, %v1962
        %1971 = vrot.lane.b32.xlu0 %v1963, 127
        %v1972 = vpop.permute.xlu0 %1971
        %1973 = vrot.lane.b32.xlu0 %v1964, 127
        %v1974 = vpop.permute.xlu0 %1973
        %1975 = vrot.lane.b32.xlu0 %v1965, 127
        %v1976 = vpop.permute.xlu0 %1975
        %1977 = vrot.lane.b32.xlu0 %v1966, 127
        %v1978 = vpop.permute.xlu0 %1977
        %v1983 = vadd.f32 %v1958, %v1972
        %v1984 = vadd.f32 %v1959, %v1974
        %v1985 = vadd.f32 %v1960, %v1976
        %v1986 = vadd.f32 %v1961, %v1978
        %v1987 = vstv %s1882
        %v1988 = vmul.f32 %v1949, %v1987
        %v1989 = vmul.f32 %v1950, %v1987
        %v1990 = vmul.f32 %v1951, %v1987
        %v1991 = vmul.f32 %v1952, %v1987
        %1996 = vrot.lane.b32.xlu0 %v1988, 126
        %v1997 = vpop.permute.xlu0 %1996
        %1998 = vrot.lane.b32.xlu0 %v1989, 126
        %v1999 = vpop.permute.xlu0 %1998
        %2000 = vrot.lane.b32.xlu0 %v1990, 126
        %v2001 = vpop.permute.xlu0 %2000
        %2002 = vrot.lane.b32.xlu0 %v1991, 126
        %v2003 = vpop.permute.xlu0 %2002
        %v2008 = vadd.f32 %v1983, %v1997
        %v2009 = vadd.f32 %v1984, %v1999
        %v2010 = vadd.f32 %v1985, %v2001
        %v2011 = vadd.f32 %v1986, %v2003
        %v2012 = vld [vmem:[%s1889 + $0x2] sm:$0xff]
        %v2013 = vld [vmem:[%s1889 + $0xa] sm:$0xff]
        %v2014 = vld [vmem:[%s1889 + $0x1a] sm:$0xff]
        %v2015 = vld [vmem:[%s1889 + $0x22] sm:$0xff]
        %v2016 = vstv %s1884
        %v2017 = vmul.f32 %v2012, %v2016
        %v2018 = vmul.f32 %v2013, %v2016
        %v2019 = vmul.f32 %v2014, %v2016
        %v2020 = vmul.f32 %v2015, %v2016
        %v2021 = vadd.f32 %v2008, %v2017
        %v2022 = vadd.f32 %v2009, %v2018
        %v2023 = vadd.f32 %v2010, %v2019
        %v2024 = vadd.f32 %v2011, %v2020
        %v2025 = vstv %s1886
        %v2026 = vmul.f32 %v2012, %v2025
        %v2027 = vmul.f32 %v2013, %v2025
        %v2028 = vmul.f32 %v2014, %v2025
        %v2029 = vmul.f32 %v2015, %v2025
        %2034 = vrot.lane.b32.xlu0 %v2026, 127
        %v2035 = vpop.permute.xlu0 %2034
        %2036 = vrot.lane.b32.xlu0 %v2027, 127
        %v2037 = vpop.permute.xlu0 %2036
        %2038 = vrot.lane.b32.xlu0 %v2028, 127
        %v2039 = vpop.permute.xlu0 %2038
        %2040 = vrot.lane.b32.xlu0 %v2029, 127
        %v2041 = vpop.permute.xlu0 %2040
        %v2046 = vadd.f32 %v2021, %v2035
        %v2047 = vadd.f32 %v2022, %v2037
        %v2048 = vadd.f32 %v2023, %v2039
        %v2049 = vadd.f32 %v2024, %v2041
        %v2050 = vstv %s1888
        %v2051 = vmul.f32 %v2012, %v2050
        %v2052 = vmul.f32 %v2013, %v2050
        %v2053 = vmul.f32 %v2014, %v2050
        %v2054 = vmul.f32 %v2015, %v2050
        %2059 = vrot.lane.b32.xlu0 %v2051, 126
        %v2060 = vpop.permute.xlu0 %2059
        %2061 = vrot.lane.b32.xlu0 %v2052, 126
        %v2062 = vpop.permute.xlu0 %2061
        %2063 = vrot.lane.b32.xlu0 %v2053, 126
        %v2064 = vpop.permute.xlu0 %2063
        %2065 = vrot.lane.b32.xlu0 %v2054, 126
        %v2066 = vpop.permute.xlu0 %2065
        %v2071 = vadd.f32 %v2046, %v2060
        %v2072 = vadd.f32 %v2047, %v2062
        %v2073 = vadd.f32 %v2048, %v2064
        %v2074 = vadd.f32 %v2049, %v2066
        %s2075 = scalar_lea.vmem %s314, 10
        %v2076 = vld [vmem:[%s2075] sm:$0x1]
        %v2077 = vld [vmem:[%s2075 + $0x1] sm:$0x1]
        %v2080 = vlaneseq
        %v2081 = vshrl.u32 %v2080, 7
        %v2082 = vsub.s32 0, %v2081
        %v2083 = vrot.slane %v2076, %v2082
        %v2084 = vlaneseq
        %v2085 = vshrl.u32 %v2084, 7
        %v2086 = vsub.s32 0, %v2085
        %v2087 = vrot.slane %v2077, %v2086
        %2088 = vset.pattern.permute.xlu0 0
        %2089 = vperm.xlu0 %2088, %v2083
        %v2090 = vpop.permute.xlu0 %2089
        %2092 = vset.pattern.permute.xlu0 0
        %2093 = vperm.xlu0 %2092, %v2087
        %v2094 = vpop.permute.xlu0 %2093
        %v2096 = vmul.f32 %v2071, %v2090
        %v2097 = vmul.f32 %v2072, %v2090
        %v2098 = vmul.f32 %v2073, %v2094
        %v2099 = vmul.f32 %v2074, %v2094
        %s2100 = scalar_lea.vmem %s319, 10
        %v2101 = vld [vmem:[%s2100] sm:$0x1]
        %v2102 = vld [vmem:[%s2100 + $0x1] sm:$0x1]
        %v2105 = vlaneseq
        %v2106 = vshrl.u32 %v2105, 7
        %v2107 = vsub.s32 0, %v2106
        %v2108 = vrot.slane %v2101, %v2107
        %v2109 = vlaneseq
        %v2110 = vshrl.u32 %v2109, 7
        %v2111 = vsub.s32 0, %v2110
        %v2112 = vrot.slane %v2102, %v2111
        %2113 = vset.pattern.permute.xlu0 0
        %2114 = vperm.xlu0 %2113, %v2108
        %v2115 = vpop.permute.xlu0 %2114
        %2117 = vset.pattern.permute.xlu0 0
        %2118 = vperm.xlu0 %2117, %v2112
        %v2119 = vpop.permute.xlu0 %2118
        %v2121 = vmul.f32 %v1949, %v2115
        %v2122 = vmul.f32 %v1950, %v2115
        %v2123 = vmul.f32 %v1951, %v2119
        %v2124 = vmul.f32 %v1952, %v2119
        %2129 = vrot.lane.b32.xlu0 %v2121, 127
        %v2130 = vpop.permute.xlu0 %2129
        %2131 = vrot.lane.b32.xlu0 %v2122, 127
        %v2132 = vpop.permute.xlu0 %2131
        %2133 = vrot.lane.b32.xlu0 %v2123, 127
        %v2134 = vpop.permute.xlu0 %2133
        %2135 = vrot.lane.b32.xlu0 %v2124, 127
        %v2136 = vpop.permute.xlu0 %2135
        %v2141 = vadd.f32 %v2096, %v2130
        %v2142 = vadd.f32 %v2097, %v2132
        %v2143 = vadd.f32 %v2098, %v2134
        %v2144 = vadd.f32 %v2099, %v2136
        %s2145 = scalar_lea.vmem %s328, 10
        %v2146 = vld [vmem:[%s2145] sm:$0x1]
        %v2147 = vld [vmem:[%s2145 + $0x1] sm:$0x1]
        %v2150 = vlaneseq
        %v2151 = vshrl.u32 %v2150, 7
        %v2152 = vsub.s32 0, %v2151
        %v2153 = vrot.slane %v2146, %v2152
        %v2154 = vlaneseq
        %v2155 = vshrl.u32 %v2154, 7
        %v2156 = vsub.s32 0, %v2155
        %v2157 = vrot.slane %v2147, %v2156
        %2158 = vset.pattern.permute.xlu0 0
        %2159 = vperm.xlu0 %2158, %v2153
        %v2160 = vpop.permute.xlu0 %2159
        %2162 = vset.pattern.permute.xlu0 0
        %2163 = vperm.xlu0 %2162, %v2157
        %v2164 = vpop.permute.xlu0 %2163
        %v2166 = vsub.f32 %v2141, %v2160
        %v2167 = vsub.f32 %v2142, %v2160
        %v2168 = vsub.f32 %v2143, %v2164
        %v2169 = vsub.f32 %v2144, %v2164
        %s2170 = scalar_lea.vmem %s310, 160 [#allocation5]
        %2171 = vst.msk [vmem:[%s2170] sm:$0xff] %vm640, %v2166
        %2172 = vst.msk [vmem:[%s2170 + $0x8] sm:$0xff] %vm640, %v2167
        %2173 = vst.msk [vmem:[%s2170 + $0x10] sm:$0xff] %vm640, %v2168
        %2174 = vst.msk [vmem:[%s2170 + $0x18] sm:$0xff] %vm640, %v2169
        %s2175 = sadd.s32 %s342, 6
        %s2176 = sadd.s32 %s343, %s2175
        %s2177 = smul.u32 %s2176, 9
        %s2178 = sld [smem:[#allocation2 + %s2177]]
        %s2179 = sadd.s32 %s2177, 1
        %s2180 = sld [smem:[#allocation2 + %s2179]]
        %s2181 = sadd.s32 %s2177, 2
        %s2182 = sld [smem:[#allocation2 + %s2181]]
        %s2183 = sadd.s32 %s2177, 3
        %s2184 = sld [smem:[#allocation2 + %s2183]]
        %s2185 = sadd.s32 %s2177, 4
        %s2186 = sld [smem:[#allocation2 + %s2185]]
        %s2187 = sadd.s32 %s2177, 5
        %s2188 = sld [smem:[#allocation2 + %s2187]]
        %s2189 = sadd.s32 %s2177, 6
        %s2190 = sld [smem:[#allocation2 + %s2189]]
        %s2191 = sadd.s32 %s2177, 7
        %s2192 = sld [smem:[#allocation2 + %s2191]]
        %s2193 = sadd.s32 %s2177, 8
        %s2194 = sld [smem:[#allocation2 + %s2193]]
        %s2195 = scalar_lea.vmem %s339, 288
        %v2196 = vld [vmem:[%s2195] sm:$0xff]
        %v2197 = vld [vmem:[%s2195 + $0x8] sm:$0xff]
        %v2198 = vld [vmem:[%s2195 + $0x18] sm:$0xff]
        %v2199 = vld [vmem:[%s2195 + $0x20] sm:$0xff]
        %v2200 = vstv %s2178
        %v2201 = vmul.f32 %v2196, %v2200
        %v2202 = vmul.f32 %v2197, %v2200
        %v2203 = vmul.f32 %v2198, %v2200
        %v2204 = vmul.f32 %v2199, %v2200
        %v2205 = vstv %s2180
        %v2206 = vmul.f32 %v2196, %v2205
        %v2207 = vmul.f32 %v2197, %v2205
        %v2208 = vmul.f32 %v2198, %v2205
        %v2209 = vmul.f32 %v2199, %v2205
        %2214 = vrot.lane.b32.xlu0 %v2206, 127
        %v2215 = vpop.permute.xlu0 %2214
        %2216 = vrot.lane.b32.xlu0 %v2207, 127
        %v2217 = vpop.permute.xlu0 %2216
        %2218 = vrot.lane.b32.xlu0 %v2208, 127
        %v2219 = vpop.permute.xlu0 %2218
        %2220 = vrot.lane.b32.xlu0 %v2209, 127
        %v2221 = vpop.permute.xlu0 %2220
        %v2226 = vadd.f32 %v2201, %v2215
        %v2227 = vadd.f32 %v2202, %v2217
        %v2228 = vadd.f32 %v2203, %v2219
        %v2229 = vadd.f32 %v2204, %v2221
        %v2230 = vstv %s2182
        %v2231 = vmul.f32 %v2196, %v2230
        %v2232 = vmul.f32 %v2197, %v2230
        %v2233 = vmul.f32 %v2198, %v2230
        %v2234 = vmul.f32 %v2199, %v2230
        %2239 = vrot.lane.b32.xlu0 %v2231, 126
        %v2240 = vpop.permute.xlu0 %2239
        %2241 = vrot.lane.b32.xlu0 %v2232, 126
        %v2242 = vpop.permute.xlu0 %2241
        %2243 = vrot.lane.b32.xlu0 %v2233, 126
        %v2244 = vpop.permute.xlu0 %2243
        %2245 = vrot.lane.b32.xlu0 %v2234, 126
        %v2246 = vpop.permute.xlu0 %2245
        %v2251 = vadd.f32 %v2226, %v2240
        %v2252 = vadd.f32 %v2227, %v2242
        %v2253 = vadd.f32 %v2228, %v2244
        %v2254 = vadd.f32 %v2229, %v2246
        %v2255 = vld [vmem:[%s2195 + $0x1] sm:$0xff]
        %v2256 = vld [vmem:[%s2195 + $0x9] sm:$0xff]
        %v2257 = vld [vmem:[%s2195 + $0x19] sm:$0xff]
        %v2258 = vld [vmem:[%s2195 + $0x21] sm:$0xff]
        %v2259 = vstv %s2184
        %v2260 = vmul.f32 %v2255, %v2259
        %v2261 = vmul.f32 %v2256, %v2259
        %v2262 = vmul.f32 %v2257, %v2259
        %v2263 = vmul.f32 %v2258, %v2259
        %v2264 = vadd.f32 %v2251, %v2260
        %v2265 = vadd.f32 %v2252, %v2261
        %v2266 = vadd.f32 %v2253, %v2262
        %v2267 = vadd.f32 %v2254, %v2263
        %v2268 = vstv %s2186
        %v2269 = vmul.f32 %v2255, %v2268
        %v2270 = vmul.f32 %v2256, %v2268
        %v2271 = vmul.f32 %v2257, %v2268
        %v2272 = vmul.f32 %v2258, %v2268
        %2277 = vrot.lane.b32.xlu0 %v2269, 127
        %v2278 = vpop.permute.xlu0 %2277
        %2279 = vrot.lane.b32.xlu0 %v2270, 127
        %v2280 = vpop.permute.xlu0 %2279
        %2281 = vrot.lane.b32.xlu0 %v2271, 127
        %v2282 = vpop.permute.xlu0 %2281
        %2283 = vrot.lane.b32.xlu0 %v2272, 127
        %v2284 = vpop.permute.xlu0 %2283
        %v2289 = vadd.f32 %v2264, %v2278
        %v2290 = vadd.f32 %v2265, %v2280
        %v2291 = vadd.f32 %v2266, %v2282
        %v2292 = vadd.f32 %v2267, %v2284
        %v2293 = vstv %s2188
        %v2294 = vmul.f32 %v2255, %v2293
        %v2295 = vmul.f32 %v2256, %v2293
        %v2296 = vmul.f32 %v2257, %v2293
        %v2297 = vmul.f32 %v2258, %v2293
        %2302 = vrot.lane.b32.xlu0 %v2294, 126
        %v2303 = vpop.permute.xlu0 %2302
        %2304 = vrot.lane.b32.xlu0 %v2295, 126
        %v2305 = vpop.permute.xlu0 %2304
        %2306 = vrot.lane.b32.xlu0 %v2296, 126
        %v2307 = vpop.permute.xlu0 %2306
        %2308 = vrot.lane.b32.xlu0 %v2297, 126
        %v2309 = vpop.permute.xlu0 %2308
        %v2314 = vadd.f32 %v2289, %v2303
        %v2315 = vadd.f32 %v2290, %v2305
        %v2316 = vadd.f32 %v2291, %v2307
        %v2317 = vadd.f32 %v2292, %v2309
        %v2318 = vld [vmem:[%s2195 + $0x2] sm:$0xff]
        %v2319 = vld [vmem:[%s2195 + $0xa] sm:$0xff]
        %v2320 = vld [vmem:[%s2195 + $0x1a] sm:$0xff]
        %v2321 = vld [vmem:[%s2195 + $0x22] sm:$0xff]
        %v2322 = vstv %s2190
        %v2323 = vmul.f32 %v2318, %v2322
        %v2324 = vmul.f32 %v2319, %v2322
        %v2325 = vmul.f32 %v2320, %v2322
        %v2326 = vmul.f32 %v2321, %v2322
        %v2327 = vadd.f32 %v2314, %v2323
        %v2328 = vadd.f32 %v2315, %v2324
        %v2329 = vadd.f32 %v2316, %v2325
        %v2330 = vadd.f32 %v2317, %v2326
        %v2331 = vstv %s2192
        %v2332 = vmul.f32 %v2318, %v2331
        %v2333 = vmul.f32 %v2319, %v2331
        %v2334 = vmul.f32 %v2320, %v2331
        %v2335 = vmul.f32 %v2321, %v2331
        %2340 = vrot.lane.b32.xlu0 %v2332, 127
        %v2341 = vpop.permute.xlu0 %2340
        %2342 = vrot.lane.b32.xlu0 %v2333, 127
        %v2343 = vpop.permute.xlu0 %2342
        %2344 = vrot.lane.b32.xlu0 %v2334, 127
        %v2345 = vpop.permute.xlu0 %2344
        %2346 = vrot.lane.b32.xlu0 %v2335, 127
        %v2347 = vpop.permute.xlu0 %2346
        %v2352 = vadd.f32 %v2327, %v2341
        %v2353 = vadd.f32 %v2328, %v2343
        %v2354 = vadd.f32 %v2329, %v2345
        %v2355 = vadd.f32 %v2330, %v2347
        %v2356 = vstv %s2194
        %v2357 = vmul.f32 %v2318, %v2356
        %v2358 = vmul.f32 %v2319, %v2356
        %v2359 = vmul.f32 %v2320, %v2356
        %v2360 = vmul.f32 %v2321, %v2356
        %2365 = vrot.lane.b32.xlu0 %v2357, 126
        %v2366 = vpop.permute.xlu0 %2365
        %2367 = vrot.lane.b32.xlu0 %v2358, 126
        %v2368 = vpop.permute.xlu0 %2367
        %2369 = vrot.lane.b32.xlu0 %v2359, 126
        %v2370 = vpop.permute.xlu0 %2369
        %2371 = vrot.lane.b32.xlu0 %v2360, 126
        %v2372 = vpop.permute.xlu0 %2371
        %v2377 = vadd.f32 %v2352, %v2366
        %v2378 = vadd.f32 %v2353, %v2368
        %v2379 = vadd.f32 %v2354, %v2370
        %v2380 = vadd.f32 %v2355, %v2372
        %s2381 = scalar_lea.vmem %s314, 12
        %v2382 = vld [vmem:[%s2381] sm:$0x1]
        %v2383 = vld [vmem:[%s2381 + $0x1] sm:$0x1]
        %v2386 = vlaneseq
        %v2387 = vshrl.u32 %v2386, 7
        %v2388 = vsub.s32 0, %v2387
        %v2389 = vrot.slane %v2382, %v2388
        %v2390 = vlaneseq
        %v2391 = vshrl.u32 %v2390, 7
        %v2392 = vsub.s32 0, %v2391
        %v2393 = vrot.slane %v2383, %v2392
        %2394 = vset.pattern.permute.xlu0 0
        %2395 = vperm.xlu0 %2394, %v2389
        %v2396 = vpop.permute.xlu0 %2395
        %2398 = vset.pattern.permute.xlu0 0
        %2399 = vperm.xlu0 %2398, %v2393
        %v2400 = vpop.permute.xlu0 %2399
        %v2402 = vmul.f32 %v2377, %v2396
        %v2403 = vmul.f32 %v2378, %v2396
        %v2404 = vmul.f32 %v2379, %v2400
        %v2405 = vmul.f32 %v2380, %v2400
        %s2406 = scalar_lea.vmem %s319, 12
        %v2407 = vld [vmem:[%s2406] sm:$0x1]
        %v2408 = vld [vmem:[%s2406 + $0x1] sm:$0x1]
        %v2411 = vlaneseq
        %v2412 = vshrl.u32 %v2411, 7
        %v2413 = vsub.s32 0, %v2412
        %v2414 = vrot.slane %v2407, %v2413
        %v2415 = vlaneseq
        %v2416 = vshrl.u32 %v2415, 7
        %v2417 = vsub.s32 0, %v2416
        %v2418 = vrot.slane %v2408, %v2417
        %2419 = vset.pattern.permute.xlu0 0
        %2420 = vperm.xlu0 %2419, %v2414
        %v2421 = vpop.permute.xlu0 %2420
        %2423 = vset.pattern.permute.xlu0 0
        %2424 = vperm.xlu0 %2423, %v2418
        %v2425 = vpop.permute.xlu0 %2424
        %v2427 = vmul.f32 %v2255, %v2421
        %v2428 = vmul.f32 %v2256, %v2421
        %v2429 = vmul.f32 %v2257, %v2425
        %v2430 = vmul.f32 %v2258, %v2425
        %2435 = vrot.lane.b32.xlu0 %v2427, 127
        %v2436 = vpop.permute.xlu0 %2435
        %2437 = vrot.lane.b32.xlu0 %v2428, 127
        %v2438 = vpop.permute.xlu0 %2437
        %2439 = vrot.lane.b32.xlu0 %v2429, 127
        %v2440 = vpop.permute.xlu0 %2439
        %2441 = vrot.lane.b32.xlu0 %v2430, 127
        %v2442 = vpop.permute.xlu0 %2441
        %v2447 = vadd.f32 %v2402, %v2436
        %v2448 = vadd.f32 %v2403, %v2438
        %v2449 = vadd.f32 %v2404, %v2440
        %v2450 = vadd.f32 %v2405, %v2442
        %s2451 = scalar_lea.vmem %s328, 12
        %v2452 = vld [vmem:[%s2451] sm:$0x1]
        %v2453 = vld [vmem:[%s2451 + $0x1] sm:$0x1]
        %v2456 = vlaneseq
        %v2457 = vshrl.u32 %v2456, 7
        %v2458 = vsub.s32 0, %v2457
        %v2459 = vrot.slane %v2452, %v2458
        %v2460 = vlaneseq
        %v2461 = vshrl.u32 %v2460, 7
        %v2462 = vsub.s32 0, %v2461
        %v2463 = vrot.slane %v2453, %v2462
        %2464 = vset.pattern.permute.xlu0 0
        %2465 = vperm.xlu0 %2464, %v2459
        %v2466 = vpop.permute.xlu0 %2465
        %2468 = vset.pattern.permute.xlu0 0
        %2469 = vperm.xlu0 %2468, %v2463
        %v2470 = vpop.permute.xlu0 %2469
        %v2472 = vsub.f32 %v2447, %v2466
        %v2473 = vsub.f32 %v2448, %v2466
        %v2474 = vsub.f32 %v2449, %v2470
        %v2475 = vsub.f32 %v2450, %v2470
        %s2476 = scalar_lea.vmem %s310, 192 [#allocation5]
        %2477 = vst.msk [vmem:[%s2476] sm:$0xff] %vm640, %v2472
        %2478 = vst.msk [vmem:[%s2476 + $0x8] sm:$0xff] %vm640, %v2473
        %2479 = vst.msk [vmem:[%s2476 + $0x10] sm:$0xff] %vm640, %v2474
        %2480 = vst.msk [vmem:[%s2476 + $0x18] sm:$0xff] %vm640, %v2475
        %s2481 = sadd.s32 %s342, 7
        %s2482 = sadd.s32 %s343, %s2481
        %s2483 = smul.u32 %s2482, 9
        %s2484 = sld [smem:[#allocation2 + %s2483]]
        %s2485 = sadd.s32 %s2483, 1
        %s2486 = sld [smem:[#allocation2 + %s2485]]
        %s2487 = sadd.s32 %s2483, 2
        %s2488 = sld [smem:[#allocation2 + %s2487]]
        %s2489 = sadd.s32 %s2483, 3
        %s2490 = sld [smem:[#allocation2 + %s2489]]
        %s2491 = sadd.s32 %s2483, 4
        %s2492 = sld [smem:[#allocation2 + %s2491]]
        %s2493 = sadd.s32 %s2483, 5
        %s2494 = sld [smem:[#allocation2 + %s2493]]
        %s2495 = sadd.s32 %s2483, 6
        %s2496 = sld [smem:[#allocation2 + %s2495]]
        %s2497 = sadd.s32 %s2483, 7
        %s2498 = sld [smem:[#allocation2 + %s2497]]
        %s2499 = sadd.s32 %s2483, 8
        %s2500 = sld [smem:[#allocation2 + %s2499]]
        %s2501 = scalar_lea.vmem %s339, 336
        %v2502 = vld [vmem:[%s2501] sm:$0xff]
        %v2503 = vld [vmem:[%s2501 + $0x8] sm:$0xff]
        %v2504 = vld [vmem:[%s2501 + $0x18] sm:$0xff]
        %v2505 = vld [vmem:[%s2501 + $0x20] sm:$0xff]
        %v2506 = vstv %s2484
        %v2507 = vmul.f32 %v2502, %v2506
        %v2508 = vmul.f32 %v2503, %v2506
        %v2509 = vmul.f32 %v2504, %v2506
        %v2510 = vmul.f32 %v2505, %v2506
        %v2511 = vstv %s2486
        %v2512 = vmul.f32 %v2502, %v2511
        %v2513 = vmul.f32 %v2503, %v2511
        %v2514 = vmul.f32 %v2504, %v2511
        %v2515 = vmul.f32 %v2505, %v2511
        %2520 = vrot.lane.b32.xlu0 %v2512, 127
        %v2521 = vpop.permute.xlu0 %2520
        %2522 = vrot.lane.b32.xlu0 %v2513, 127
        %v2523 = vpop.permute.xlu0 %2522
        %2524 = vrot.lane.b32.xlu0 %v2514, 127
        %v2525 = vpop.permute.xlu0 %2524
        %2526 = vrot.lane.b32.xlu0 %v2515, 127
        %v2527 = vpop.permute.xlu0 %2526
        %v2532 = vadd.f32 %v2507, %v2521
        %v2533 = vadd.f32 %v2508, %v2523
        %v2534 = vadd.f32 %v2509, %v2525
        %v2535 = vadd.f32 %v2510, %v2527
        %v2536 = vstv %s2488
        %v2537 = vmul.f32 %v2502, %v2536
        %v2538 = vmul.f32 %v2503, %v2536
        %v2539 = vmul.f32 %v2504, %v2536
        %v2540 = vmul.f32 %v2505, %v2536
        %2545 = vrot.lane.b32.xlu0 %v2537, 126
        %v2546 = vpop.permute.xlu0 %2545
        %2547 = vrot.lane.b32.xlu0 %v2538, 126
        %v2548 = vpop.permute.xlu0 %2547
        %2549 = vrot.lane.b32.xlu0 %v2539, 126
        %v2550 = vpop.permute.xlu0 %2549
        %2551 = vrot.lane.b32.xlu0 %v2540, 126
        %v2552 = vpop.permute.xlu0 %2551
        %v2557 = vadd.f32 %v2532, %v2546
        %v2558 = vadd.f32 %v2533, %v2548
        %v2559 = vadd.f32 %v2534, %v2550
        %v2560 = vadd.f32 %v2535, %v2552
        %v2561 = vld [vmem:[%s2501 + $0x1] sm:$0xff]
        %v2562 = vld [vmem:[%s2501 + $0x9] sm:$0xff]
        %v2563 = vld [vmem:[%s2501 + $0x19] sm:$0xff]
        %v2564 = vld [vmem:[%s2501 + $0x21] sm:$0xff]
        %v2565 = vstv %s2490
        %v2566 = vmul.f32 %v2561, %v2565
        %v2567 = vmul.f32 %v2562, %v2565
        %v2568 = vmul.f32 %v2563, %v2565
        %v2569 = vmul.f32 %v2564, %v2565
        %v2570 = vadd.f32 %v2557, %v2566
        %v2571 = vadd.f32 %v2558, %v2567
        %v2572 = vadd.f32 %v2559, %v2568
        %v2573 = vadd.f32 %v2560, %v2569
        %v2574 = vstv %s2492
        %v2575 = vmul.f32 %v2561, %v2574
        %v2576 = vmul.f32 %v2562, %v2574
        %v2577 = vmul.f32 %v2563, %v2574
        %v2578 = vmul.f32 %v2564, %v2574
        %2583 = vrot.lane.b32.xlu0 %v2575, 127
        %v2584 = vpop.permute.xlu0 %2583
        %2585 = vrot.lane.b32.xlu0 %v2576, 127
        %v2586 = vpop.permute.xlu0 %2585
        %2587 = vrot.lane.b32.xlu0 %v2577, 127
        %v2588 = vpop.permute.xlu0 %2587
        %2589 = vrot.lane.b32.xlu0 %v2578, 127
        %v2590 = vpop.permute.xlu0 %2589
        %v2595 = vadd.f32 %v2570, %v2584
        %v2596 = vadd.f32 %v2571, %v2586
        %v2597 = vadd.f32 %v2572, %v2588
        %v2598 = vadd.f32 %v2573, %v2590
        %v2599 = vstv %s2494
        %v2600 = vmul.f32 %v2561, %v2599
        %v2601 = vmul.f32 %v2562, %v2599
        %v2602 = vmul.f32 %v2563, %v2599
        %v2603 = vmul.f32 %v2564, %v2599
        %2608 = vrot.lane.b32.xlu0 %v2600, 126
        %v2609 = vpop.permute.xlu0 %2608
        %2610 = vrot.lane.b32.xlu0 %v2601, 126
        %v2611 = vpop.permute.xlu0 %2610
        %2612 = vrot.lane.b32.xlu0 %v2602, 126
        %v2613 = vpop.permute.xlu0 %2612
        %2614 = vrot.lane.b32.xlu0 %v2603, 126
        %v2615 = vpop.permute.xlu0 %2614
        %v2620 = vadd.f32 %v2595, %v2609
        %v2621 = vadd.f32 %v2596, %v2611
        %v2622 = vadd.f32 %v2597, %v2613
        %v2623 = vadd.f32 %v2598, %v2615
        %v2624 = vld [vmem:[%s2501 + $0x2] sm:$0xff]
        %v2625 = vld [vmem:[%s2501 + $0xa] sm:$0xff]
        %v2626 = vld [vmem:[%s2501 + $0x1a] sm:$0xff]
        %v2627 = vld [vmem:[%s2501 + $0x22] sm:$0xff]
        %v2628 = vstv %s2496
        %v2629 = vmul.f32 %v2624, %v2628
        %v2630 = vmul.f32 %v2625, %v2628
        %v2631 = vmul.f32 %v2626, %v2628
        %v2632 = vmul.f32 %v2627, %v2628
        %v2633 = vadd.f32 %v2620, %v2629
        %v2634 = vadd.f32 %v2621, %v2630
        %v2635 = vadd.f32 %v2622, %v2631
        %v2636 = vadd.f32 %v2623, %v2632
        %v2637 = vstv %s2498
        %v2638 = vmul.f32 %v2624, %v2637
        %v2639 = vmul.f32 %v2625, %v2637
        %v2640 = vmul.f32 %v2626, %v2637
        %v2641 = vmul.f32 %v2627, %v2637
        %2646 = vrot.lane.b32.xlu0 %v2638, 127
        %v2647 = vpop.permute.xlu0 %2646
        %2648 = vrot.lane.b32.xlu0 %v2639, 127
        %v2649 = vpop.permute.xlu0 %2648
        %2650 = vrot.lane.b32.xlu0 %v2640, 127
        %v2651 = vpop.permute.xlu0 %2650
        %2652 = vrot.lane.b32.xlu0 %v2641, 127
        %v2653 = vpop.permute.xlu0 %2652
        %v2658 = vadd.f32 %v2633, %v2647
        %v2659 = vadd.f32 %v2634, %v2649
        %v2660 = vadd.f32 %v2635, %v2651
        %v2661 = vadd.f32 %v2636, %v2653
        %v2662 = vstv %s2500
        %v2663 = vmul.f32 %v2624, %v2662
        %v2664 = vmul.f32 %v2625, %v2662
        %v2665 = vmul.f32 %v2626, %v2662
        %v2666 = vmul.f32 %v2627, %v2662
        %2671 = vrot.lane.b32.xlu0 %v2663, 126
        %v2672 = vpop.permute.xlu0 %2671
        %2673 = vrot.lane.b32.xlu0 %v2664, 126
        %v2674 = vpop.permute.xlu0 %2673
        %2675 = vrot.lane.b32.xlu0 %v2665, 126
        %v2676 = vpop.permute.xlu0 %2675
        %2677 = vrot.lane.b32.xlu0 %v2666, 126
        %v2678 = vpop.permute.xlu0 %2677
        %v2683 = vadd.f32 %v2658, %v2672
        %v2684 = vadd.f32 %v2659, %v2674
        %v2685 = vadd.f32 %v2660, %v2676
        %v2686 = vadd.f32 %v2661, %v2678
        %s2687 = scalar_lea.vmem %s314, 14
        %v2688 = vld [vmem:[%s2687] sm:$0x1]
        %v2689 = vld [vmem:[%s2687 + $0x1] sm:$0x1]
        %v2692 = vlaneseq
        %v2693 = vshrl.u32 %v2692, 7
        %v2694 = vsub.s32 0, %v2693
        %v2695 = vrot.slane %v2688, %v2694
        %v2696 = vlaneseq
        %v2697 = vshrl.u32 %v2696, 7
        %v2698 = vsub.s32 0, %v2697
        %v2699 = vrot.slane %v2689, %v2698
        %2700 = vset.pattern.permute.xlu0 0
        %2701 = vperm.xlu0 %2700, %v2695
        %v2702 = vpop.permute.xlu0 %2701
        %2704 = vset.pattern.permute.xlu0 0
        %2705 = vperm.xlu0 %2704, %v2699
        %v2706 = vpop.permute.xlu0 %2705
        %v2708 = vmul.f32 %v2683, %v2702
        %v2709 = vmul.f32 %v2684, %v2702
        %v2710 = vmul.f32 %v2685, %v2706
        %v2711 = vmul.f32 %v2686, %v2706
        %s2712 = scalar_lea.vmem %s319, 14
        %v2713 = vld [vmem:[%s2712] sm:$0x1]
        %v2714 = vld [vmem:[%s2712 + $0x1] sm:$0x1]
        %v2717 = vlaneseq
        %v2718 = vshrl.u32 %v2717, 7
        %v2719 = vsub.s32 0, %v2718
        %v2720 = vrot.slane %v2713, %v2719
        %v2721 = vlaneseq
        %v2722 = vshrl.u32 %v2721, 7
        %v2723 = vsub.s32 0, %v2722
        %v2724 = vrot.slane %v2714, %v2723
        %2725 = vset.pattern.permute.xlu0 0
        %2726 = vperm.xlu0 %2725, %v2720
        %v2727 = vpop.permute.xlu0 %2726
        %2729 = vset.pattern.permute.xlu0 0
        %2730 = vperm.xlu0 %2729, %v2724
        %v2731 = vpop.permute.xlu0 %2730
        %v2733 = vmul.f32 %v2561, %v2727
        %v2734 = vmul.f32 %v2562, %v2727
        %v2735 = vmul.f32 %v2563, %v2731
        %v2736 = vmul.f32 %v2564, %v2731
        %2741 = vrot.lane.b32.xlu0 %v2733, 127
        %v2742 = vpop.permute.xlu0 %2741
        %2743 = vrot.lane.b32.xlu0 %v2734, 127
        %v2744 = vpop.permute.xlu0 %2743
        %2745 = vrot.lane.b32.xlu0 %v2735, 127
        %v2746 = vpop.permute.xlu0 %2745
        %2747 = vrot.lane.b32.xlu0 %v2736, 127
        %v2748 = vpop.permute.xlu0 %2747
        %v2753 = vadd.f32 %v2708, %v2742
        %v2754 = vadd.f32 %v2709, %v2744
        %v2755 = vadd.f32 %v2710, %v2746
        %v2756 = vadd.f32 %v2711, %v2748
        %s2757 = scalar_lea.vmem %s328, 14
        %v2758 = vld [vmem:[%s2757] sm:$0x1]
        %v2759 = vld [vmem:[%s2757 + $0x1] sm:$0x1]
        %v2762 = vlaneseq
        %v2763 = vshrl.u32 %v2762, 7
        %v2764 = vsub.s32 0, %v2763
        %v2765 = vrot.slane %v2758, %v2764
        %v2766 = vlaneseq
        %v2767 = vshrl.u32 %v2766, 7
        %v2768 = vsub.s32 0, %v2767
        %v2769 = vrot.slane %v2759, %v2768
        %2770 = vset.pattern.permute.xlu0 0
        %2771 = vperm.xlu0 %2770, %v2765
        %v2772 = vpop.permute.xlu0 %2771
        %2774 = vset.pattern.permute.xlu0 0
        %2775 = vperm.xlu0 %2774, %v2769
        %v2776 = vpop.permute.xlu0 %2775
        %v2778 = vsub.f32 %v2753, %v2772
        %v2779 = vsub.f32 %v2754, %v2772
        %v2780 = vsub.f32 %v2755, %v2776
        %v2781 = vsub.f32 %v2756, %v2776
        %s2782 = scalar_lea.vmem %s310, 224 [#allocation5]
        %2783 = vst.msk [vmem:[%s2782] sm:$0xff] %vm640, %v2778
        %2784 = vst.msk [vmem:[%s2782 + $0x8] sm:$0xff] %vm640, %v2779
        %2785 = vst.msk [vmem:[%s2782 + $0x10] sm:$0xff] %vm640, %v2780
        %2786 = vst.msk [vmem:[%s2782 + $0x18] sm:$0xff] %vm640, %v2781
        %s2787 = sand.u32 %s171, 1
        %s2788 = scalar_lea.sflag [#allocation3], %s2787
        %s2789 = sand.u32 %s171, 1
        %s2790 = smul.addr %s2789, 256
        %s2791 = scalar_lea.vmem [#allocation5], %s2790
        // Predicated region
        $region45: #{tpu_custom_call.1} parent=39 // pred_check
          %p2792 = pneg %p181
        $region46: #{tpu_custom_call.1} parent=39 // pred_check_branch
          %2794 = sbr.rel (%p2792) target = $region48
        $region47: #{tpu_custom_call.1} parent=39 // pred_region
          %s2795 = smul.u32 16, %s25
          %s2797 = ssub.s32 4096, 4096
          %2798 = vsyncadd %s2788, %s2797
          %s2799 = smul.addr %s2795, 2
          %s2800 = smul.addr %s24, 32
          %s2801 = sadd.s32 %s2799, %s2800
          %s2802 = smul.addr %s2801, 128
          %s2803 = scalar_lea.hbm %s5, %s2802
          %s2804 = sshll.u32 %s2791, 4
          %s2805 = int_to_ptr.vmem [resolvable:$true] %s2804
          %2810 = dma.vmem_to_hbm [thread:$0]  %s2805, 4096, %s2803, %s2788, 128, 128, 8
        $region48: #{tpu_custom_call.1} parent=39 // pred_fallthru
          _
      $region40: #{tpu_custom_call.1} parent=5 // pred_fallthru
        _
      %p2811 = scmp.le.s32.totalorder 2, %s15
      // Predicated region
      $region49: #{tpu_custom_call.1} parent=5 // pred_check
        %p2812 = pneg %p2811
      $region50: #{tpu_custom_call.1} parent=5 // pred_check_branch
        %2814 = sbr.rel (%p2812) target = $region52
      $region51: #{tpu_custom_call.1} parent=5 // pred_region
        %s2815 = ssub.s32 %s15, 2
        // Predicated region
        $region53: #{tpu_custom_call.1} parent=51 // pred_check
          %p2816 = pneg %p187
        $region54: #{tpu_custom_call.1} parent=51 // pred_check_branch
          %2818 = sbr.rel (%p2816) target = $region56
        $region55: #{tpu_custom_call.1} parent=51 // pred_region
          %s2819 = sand.u32 %s172, 1
          %s2820 = scalar_lea.sflag [#allocation3], %s2819
          %s2821 = sand.u32 %s172, 1
          %s2822 = smul.addr %s2821, 256
          %s2823 = scalar_lea.vmem [#allocation5], %s2822
          %2824 = dma.done %s2820, 4096
        $region56: #{tpu_custom_call.1} parent=51 // pred_fallthru
          _
      $region52: #{tpu_custom_call.1} parent=5 // pred_fallthru
        _
    $region6: #{tpu_custom_call.1} parent=1 // loop_footer
      %s19 = sadd.s32 1, %s15
    $region7: #{tpu_custom_call.1} parent=1 // loop_footer_branch
      %14 = sbr.rel target = $region3
    $region8: #{tpu_custom_call.1} parent=1 // loop_exit
      _
    %2825 = vsyncpa [#allocation3], 1
    %s2826 = scalar_lea.sflag [#allocation3], 1
    %2827 = vsyncpa %s2826, 1
    %2828 = vsyncpa [#allocation4], 1
    %s2829 = scalar_lea.sflag [#allocation4], 1
    %2830 = vsyncpa %s2829, 1

</llo_original>
